<compile_context>
chip_gen: v6e
topology: v6e:2x2x1
jax: 0.10.0
libtpu: 0.0.40
codegen_flags: <defaults>
</compile_context>

<pallas_src>
import math

import jax
import jax.numpy as jnp
from jax import lax
from jax.experimental import pallas as pl
from jax.experimental.pallas import tpu as pltpu


_VMEM = pl.BlockSpec(memory_space=pltpu.MemorySpace.VMEM)


# ----------------------------------------------------------------------------
# Fused kernel: MLP + hoisted LSTM input projection -> biLSTM recurrence ->
# self-attention ('only_self') + fc3.  Everything between stages stays in VMEM.
#
#   x_ref:    (T*B, I)  time-major rows of the raw input
#   len_ref:  (B, 1)    int32 valid sequence lengths
#   w1/w2:    bf16 MLP weights, b1/b2 f32 biases
#   wg_ref:   (H, 8*H2) bf16 = concat(wih_f, wih_r), bg_ref (1, 8*H2) f32
#   whhf/whhr:(H2, 4*H2) bf16 recurrent weights per direction
#   w3_ref:   (2*H2, C) bf16, b3_ref (1, C) f32
#   out_ref:  (B, T, C) f32 (batch-first, matches the PyTorch module output)
# Scratch (VMEM):
#   gf_scr/gr_scr: (T, B, 4*H2) gate pre-activations per direction
#   of_scr/or_scr: (T, B, H2)   LSTM outputs per direction
# ----------------------------------------------------------------------------
def fused_dblstm_kernel(x_ref, len_ref,
                        w1_ref, b1_ref, w2_ref, b2_ref,
                        wg_ref, bg_ref, whhf_ref, whhr_ref,
                        w3_ref, b3_ref,
                        out_ref,
                        gf_scr, gr_scr, of_scr, or_scr):
    T, B, G = gf_scr.shape          # G = 4*H2
    H2 = G // 4

    # --- Stage 1: fc1+ReLU -> fc2+ReLU -> hoisted LSTM input projection -----
    x = x_ref[...].astype(jnp.bfloat16)                          # (T*B, I)
    h = jnp.dot(x, w1_ref[...], preferred_element_type=jnp.float32)
    h = jnp.maximum(h + b1_ref[...], 0.0)
    h = jnp.dot(h.astype(jnp.bfloat16), w2_ref[...],
                preferred_element_type=jnp.float32)
    h = jnp.maximum(h + b2_ref[...], 0.0)
    g = jnp.dot(h.astype(jnp.bfloat16), wg_ref[...],
                preferred_element_type=jnp.float32)
    g = g + bg_ref[...]                                          # (T*B, 8*H2)

    # Scatter into time-major, direction-major gate scratches (static loop;
    # keeps the serial recurrence free of lane sub-slicing).
    g_f_all = g[:, 0:G]
    g_r_all = g[:, G:2 * G]
    for t in range(T):
        gf_scr[t] = g_f_all[t * B:(t + 1) * B, :]
        gr_scr[t] = g_r_all[t * B:(t + 1) * B, :]

    # --- Stage 2: bidirectional LSTM recurrence (packed-sequence masking) ---
    lens = len_ref[...]                                          # (B, 1) int32
    whh_f = whhf_ref[...]                                        # (H2, G) bf16
    whh_r = whhr_ref[...]

    def cell(gates, c):
        i_g = jax.nn.sigmoid(gates[:, 0:H2])
        f_g = jax.nn.sigmoid(gates[:, H2:2 * H2])
        g_g = jnp.tanh(gates[:, 2 * H2:3 * H2])
        o_g = jax.nn.sigmoid(gates[:, 3 * H2:4 * H2])
        c_new = f_g * c + i_g * g_g
        h_new = o_g * jnp.tanh(c_new)
        return h_new, c_new

    zeros = jnp.zeros((B, H2), jnp.float32)

    def step(i, carry):
        h_f, c_f, h_r, c_r = carry
        t_f = i
        t_r = T - 1 - i

        # Two small independent recurrent matmuls (no stacked concat).
        rec_f = jnp.dot(h_f.astype(jnp.bfloat16), whh_f,
                        preferred_element_type=jnp.float32)      # (B, G)
        rec_r = jnp.dot(h_r.astype(jnp.bfloat16), whh_r,
                        preferred_element_type=jnp.float32)

        h_f_new, c_f_new = cell(gf_scr[t_f] + rec_f, c_f)
        h_r_new, c_r_new = cell(gr_scr[t_r] + rec_r, c_r)

        vf = t_f < lens                                          # (B, 1) bool
        vr = t_r < lens

        of_scr[t_f] = jnp.where(vf, h_f_new, 0.0)                # full-block store
        or_scr[t_r] = jnp.where(vr, h_r_new, 0.0)

        h_f = jnp.where(vf, h_f_new, h_f)
        c_f = jnp.where(vf, c_f_new, c_f)
        h_r = jnp.where(vr, h_r_new, h_r)
        c_r = jnp.where(vr, c_r_new, c_r)
        return (h_f, c_f, h_r, c_r)

    # Fully unrolled: T is static and small -> cross-iteration scheduling.
    lax.fori_loop(0, T, step, (zeros, zeros, zeros, zeros), unroll=True)

    # --- Stage 3: scaled-dot-product self-attention + fc3 -------------------
    xf = of_scr[...]                                             # (T, B, H2)
    xr = or_scr[...]
    w3 = w3_ref[...]                                             # (2*H2, C) bf16
    b3 = b3_ref[...]                                             # (1, C) f32
    scale = 1.0 / math.sqrt(2 * H2)

    for b in range(B):                 # static unroll; B is small here
        xb = jnp.concatenate([xf[:, b, :], xr[:, b, :]], axis=-1)  # (T, 2*H2)
        xb_bf = xb.astype(jnp.bfloat16)
        scores = lax.dot_general(
            xb_bf, xb_bf, (((1,), (1,)), ((), ())),
            preferred_element_type=jnp.float32) * scale            # (T, T)
        m = jnp.max(scores, axis=-1, keepdims=True)
        e = jnp.exp(scores - m)
        denom = jnp.sum(e, axis=-1, keepdims=True)
        p = e * pl.reciprocal(denom, approx=True)                  # softmax
        ctx = jnp.dot(p.astype(jnp.bfloat16), xb_bf,
                      preferred_element_type=jnp.float32)          # (T, 2*H2)
        y = jnp.dot(ctx.astype(jnp.bfloat16), w3,
                    preferred_element_type=jnp.float32) + b3       # (T, C)
        out_ref[b] = y


# ----------------------------------------------------------------------------
# One-time parameter preprocessing (outside the per-call forward).
# ----------------------------------------------------------------------------
def prepare_params(params):
    return {
        'w1': params['w1'].astype(jnp.bfloat16),
        'b1': params['b1'].astype(jnp.float32),
        'w2': params['w2'].astype(jnp.bfloat16),
        'b2': params['b2'].astype(jnp.float32),
        'wg': jnp.concatenate([params['wih_f'], params['wih_r']],
                              axis=1).astype(jnp.bfloat16),       # (H, 8*H2)
        'bg': jnp.concatenate([params['b_f'], params['b_r']],
                              axis=1).astype(jnp.float32),        # (1, 8*H2)
        'whh_f': params['whh_f'].astype(jnp.bfloat16),            # (H2, 4*H2)
        'whh_r': params['whh_r'].astype(jnp.bfloat16),
        'w3': params['w3'].astype(jnp.bfloat16),
        'b3': params['b3'].astype(jnp.float32),
    }


# ----------------------------------------------------------------------------
# Forward wrapper: one pallas_call (plus a tiny raw-input relayout).
# ----------------------------------------------------------------------------
@jax.jit
def dblstm_forward(x, x_len, prep):
    B, T, I = x.shape
    H2 = prep['whh_f'].shape[0]
    G = 4 * H2
    C = prep['w3'].shape[1]

    x_rows = jnp.transpose(x, (1, 0, 2)).reshape(T * B, I)   # tiny relayout
    lens = x_len.reshape(B, 1).astype(jnp.int32)

    return pl.pallas_call(
        fused_dblstm_kernel,
        out_shape=jax.ShapeDtypeStruct((B, T, C), jnp.float32),
        in_specs=[_VMEM] * 12,
        out_specs=_VMEM,
        scratch_shapes=[
            pltpu.VMEM((T, B, G), jnp.float32),    # forward gate pre-acts
            pltpu.VMEM((T, B, G), jnp.float32),    # reverse gate pre-acts
            pltpu.VMEM((T, B, H2), jnp.float32),   # forward LSTM outputs
            pltpu.VMEM((T, B, H2), jnp.float32),   # reverse LSTM outputs
        ],
        compiler_params=pltpu.CompilerParams(
            vmem_limit_bytes=32 * 1024 * 1024),
    )(x_rows, lens,
      prep['w1'], prep['b1'], prep['w2'], prep['b2'],
      prep['wg'], prep['bg'], prep['whh_f'], prep['whh_r'],
      prep['w3'], prep['b3'])


# ----------------------------------------------------------------------------
# Pure-JAX reference (f32, same math) for a sanity check.
# ----------------------------------------------------------------------------
def reference_forward(x, x_len, params):
    B, T, I = x.shape
    H2 = params['whh_f'].shape[0]

    h = jax.nn.relu(x @ params['w1'] + params['b1'])
    h = jax.nn.relu(h @ params['w2'] + params['b2'])

    def run_dir(xs, wih, whh, b, reverse):
        hh = jnp.zeros((B, H2), jnp.float32)
        cc = jnp.zeros((B, H2), jnp.float32)
        out = jnp.zeros((B, T, H2), jnp.float32)
        ts = range(T - 1, -1, -1) if reverse else range(T)
        for t in ts:
            gates = xs[:, t, :] @ wih + hh @ whh + b
            i_g = jax.nn.sigmoid(gates[:, :H2])
            f_g = jax.nn.sigmoid(gates[:, H2:2 * H2])
            g_g = jnp.tanh(gates[:, 2 * H2:3 * H2])
            o_g = jax.nn.sigmoid(gates[:, 3 * H2:])
            c_new = f_g * cc + i_g * g_g
            h_new = o_g * jnp.tanh(c_new)
            m = (t < x_len)[:, None].astype(jnp.float32)
            out = out.at[:, t, :].set(m * h_new)
            hh = m * h_new + (1.0 - m) * hh
            cc = m * c_new + (1.0 - m) * cc
        return out

    of = run_dir(h, params['wih_f'], params['whh_f'], params['b_f'], False)
    orv = run_dir(h, params['wih_r'], params['whh_r'], params['b_r'], True)
    lstm_out = jnp.concatenate([of, orv], axis=-1)

    D = lstm_out.shape[-1]
    scores = jnp.einsum('btd,bsd->bts', lstm_out, lstm_out) / math.sqrt(D)
    p = jax.nn.softmax(scores, axis=-1)
    ctx = jnp.einsum('bts,bsd->btd', p, lstm_out)
    return ctx @ params['w3'] + params['b3']


# ----------------------------------------------------------------------------
# Deterministic parameter init + demo run
# ----------------------------------------------------------------------------
def make_params(key, input_size, hidden_size, hidden_size_2, num_classes):
    ks = jax.random.split(key, 11)
    g = lambda k, shape: (0.1 * jax.random.normal(k, shape)).astype(jnp.float32)
    H, H2 = hidden_size, hidden_size_2
    return {
        'w1': g(ks[0], (input_size, H)),  'b1': g(ks[1], (1, H)),
        'w2': g(ks[2], (H, H)),           'b2': g(ks[3], (1, H)),
        'wih_f': g(ks[4], (H, 4 * H2)),   'whh_f': g(ks[5], (H2, 4 * H2)),
        'b_f': g(ks[6], (1, 4 * H2)),
        'wih_r': g(ks[7], (H, 4 * H2)),   'whh_r': g(ks[8], (H2, 4 * H2)),
        'b_r': g(ks[9], (1, 4 * H2)),
        'w3': g(ks[10], (2 * H2, num_classes)),
        'b3': jnp.zeros((1, num_classes), jnp.float32),
    }


if __name__ == "__main__":
    # args: input_size=16, hidden_size=32, hidden_size_2=32, num_classes=8,
    #       self_att='only_self'
    B, T = 2, 8
    input_size, hidden_size, hidden_size_2, num_classes = 16, 32, 32, 8

    key = jax.random.PRNGKey(0)
    k_x, k_p = jax.random.split(key)
    x = jax.random.normal(k_x, (B, T, input_size), dtype=jnp.float32)
    x_len = jnp.array([T, T - 3], dtype=jnp.int32)   # padded-sequence lengths

    params = make_params(k_p, input_size, hidden_size, hidden_size_2,
                         num_classes)
    prep = prepare_params(params)          # one-time weight preprocessing

    out = jax.block_until_ready(dblstm_forward(x, x_len, prep))
    assert out.shape == (B, T, num_classes)
    assert bool(jnp.all(jnp.isfinite(out)))

    ref = reference_forward(x, x_len, params)
    err = float(jnp.max(jnp.abs(out - ref)))
    # bf16 matmuls + approx reciprocal vs f32 reference
    assert err < 5e-2, f"max abs diff {err}"

    print("KERNEL_OK")
</pallas_src>

<mosaic_0001>
module attributes {stable_mosaic.version = 11 : i64} {
  func.func @fused_dblstm_kernel(%arg0: memref<16x16xf32, #tpu.memory_space<vmem>>, %arg1: memref<2x1xi32, #tpu.memory_space<vmem>>, %arg2: memref<16x32xbf16, #tpu.memory_space<vmem>>, %arg3: memref<1x32xf32, #tpu.memory_space<vmem>>, %arg4: memref<32x32xbf16, #tpu.memory_space<vmem>>, %arg5: memref<1x32xf32, #tpu.memory_space<vmem>>, %arg6: memref<32x256xbf16, #tpu.memory_space<vmem>>, %arg7: memref<1x256xf32, #tpu.memory_space<vmem>>, %arg8: memref<32x128xbf16, #tpu.memory_space<vmem>>, %arg9: memref<32x128xbf16, #tpu.memory_space<vmem>>, %arg10: memref<64x8xbf16, #tpu.memory_space<vmem>>, %arg11: memref<1x8xf32, #tpu.memory_space<vmem>>, %arg12: memref<2x8x8xf32, #tpu.memory_space<vmem>>, %arg13: memref<8x2x128xf32, #tpu.memory_space<vmem>>, %arg14: memref<8x2x128xf32, #tpu.memory_space<vmem>>, %arg15: memref<8x2x32xf32, #tpu.memory_space<vmem>>, %arg16: memref<8x2x32xf32, #tpu.memory_space<vmem>>) attributes {dimension_semantics = [], scalar_prefetch = 0 : i64, scratch_operands = 4 : i64, tpu.core_type = #tpu.core_type<tc>} {
    %c0 = arith.constant 0 : index
    %c0_0 = arith.constant 0 : index
    %0 = vector.load %arg0[%c0, %c0_0] : memref<16x16xf32, #tpu.memory_space<vmem>>, vector<16x16xf32>
    %1 = arith.truncf %0 : vector<16x16xf32> to vector<16x16xbf16>
    %c0_1 = arith.constant 0 : index
    %c0_2 = arith.constant 0 : index
    %2 = vector.load %arg2[%c0_1, %c0_2] : memref<16x32xbf16, #tpu.memory_space<vmem>>, vector<16x32xbf16>
    %cst = arith.constant dense<0.000000e+00> : vector<16x32xf32>
    %3 = tpu.matmul %1, %2, %cst {dimension_numbers = #tpu.dot_dimension_numbers<[1], [0], [0], [1], [0, 0, 1, 1], [], []>} : vector<16x16xbf16>, vector<16x32xbf16>, vector<16x32xf32> -> vector<16x32xf32>
    %c0_3 = arith.constant 0 : index
    %c0_4 = arith.constant 0 : index
    %4 = vector.load %arg3[%c0_3, %c0_4] : memref<1x32xf32, #tpu.memory_space<vmem>>, vector<1x32xf32>
    %5 = vector.broadcast %4 : vector<1x32xf32> to vector<16x32xf32>
    %6 = arith.addf %3, %5 : vector<16x32xf32>
    %cst_5 = arith.constant 0.000000e+00 : f32
    %7 = vector.broadcast %cst_5 : f32 to vector<16x32xf32>
    %8 = arith.maximumf %6, %7 : vector<16x32xf32>
    %9 = arith.truncf %8 : vector<16x32xf32> to vector<16x32xbf16>
    %c0_6 = arith.constant 0 : index
    %c0_7 = arith.constant 0 : index
    %10 = vector.load %arg4[%c0_6, %c0_7] : memref<32x32xbf16, #tpu.memory_space<vmem>>, vector<32x32xbf16>
    %cst_8 = arith.constant dense<0.000000e+00> : vector<16x32xf32>
    %11 = tpu.matmul %9, %10, %cst_8 {dimension_numbers = #tpu.dot_dimension_numbers<[1], [0], [0], [1], [0, 0, 1, 1], [], []>} : vector<16x32xbf16>, vector<32x32xbf16>, vector<16x32xf32> -> vector<16x32xf32>
    %c0_9 = arith.constant 0 : index
    %c0_10 = arith.constant 0 : index
    %12 = vector.load %arg5[%c0_9, %c0_10] : memref<1x32xf32, #tpu.memory_space<vmem>>, vector<1x32xf32>
    %13 = vector.broadcast %12 : vector<1x32xf32> to vector<16x32xf32>
    %14 = arith.addf %11, %13 : vector<16x32xf32>
    %cst_11 = arith.constant 0.000000e+00 : f32
    %15 = vector.broadcast %cst_11 : f32 to vector<16x32xf32>
    %16 = arith.maximumf %14, %15 : vector<16x32xf32>
    %17 = arith.truncf %16 : vector<16x32xf32> to vector<16x32xbf16>
    %c0_12 = arith.constant 0 : index
    %c0_13 = arith.constant 0 : index
    %18 = vector.load %arg6[%c0_12, %c0_13] : memref<32x256xbf16, #tpu.memory_space<vmem>>, vector<32x256xbf16>
    %cst_14 = arith.constant dense<0.000000e+00> : vector<16x256xf32>
    %19 = tpu.matmul %17, %18, %cst_14 {dimension_numbers = #tpu.dot_dimension_numbers<[1], [0], [0], [1], [0, 0, 1, 1], [], []>} : vector<16x32xbf16>, vector<32x256xbf16>, vector<16x256xf32> -> vector<16x256xf32>
    %c0_15 = arith.constant 0 : index
    %c0_16 = arith.constant 0 : index
    %20 = vector.load %arg7[%c0_15, %c0_16] : memref<1x256xf32, #tpu.memory_space<vmem>>, vector<1x256xf32>
    %21 = vector.broadcast %20 : vector<1x256xf32> to vector<16x256xf32>
    %22 = arith.addf %19, %21 : vector<16x256xf32>
    %23 = vector.extract_strided_slice %22 {offsets = [0, 0], sizes = [16, 128], strides = [1, 1]} : vector<16x256xf32> to vector<16x128xf32>
    %24 = vector.extract_strided_slice %22 {offsets = [0, 128], sizes = [16, 128], strides = [1, 1]} : vector<16x256xf32> to vector<16x128xf32>
    %25 = vector.extract_strided_slice %23 {offsets = [0, 0], sizes = [2, 128], strides = [1, 1]} : vector<16x128xf32> to vector<2x128xf32>
    %c0_17 = arith.constant 0 : index
    %c0_18 = arith.constant 0 : index
    %c0_19 = arith.constant 0 : index
    %26 = vector.load %arg13[%c0_17, %c0_18, %c0_19] : memref<8x2x128xf32, #tpu.memory_space<vmem>>, vector<1x2x128xf32>
    %27 = vector.shape_cast %26 : vector<1x2x128xf32> to vector<2x128xf32>
    %28 = vector.shape_cast %25 : vector<2x128xf32> to vector<1x2x128xf32>
    tpu.vector_store %arg13[%c0_17, %c0_18, %c0_19], %28 {strides = array<i32>} : memref<8x2x128xf32, #tpu.memory_space<vmem>>, vector<1x2x128xf32>,
    %29 = vector.extract_strided_slice %24 {offsets = [0, 0], sizes = [2, 128], strides = [1, 1]} : vector<16x128xf32> to vector<2x128xf32>
    %c0_20 = arith.constant 0 : index
    %c0_21 = arith.constant 0 : index
    %c0_22 = arith.constant 0 : index
    %30 = vector.load %arg14[%c0_20, %c0_21, %c0_22] : memref<8x2x128xf32, #tpu.memory_space<vmem>>, vector<1x2x128xf32>
    %31 = vector.shape_cast %30 : vector<1x2x128xf32> to vector<2x128xf32>
    %32 = vector.shape_cast %29 : vector<2x128xf32> to vector<1x2x128xf32>
    tpu.vector_store %arg14[%c0_20, %c0_21, %c0_22], %32 {strides = array<i32>} : memref<8x2x128xf32, #tpu.memory_space<vmem>>, vector<1x2x128xf32>,
    %33 = vector.extract_strided_slice %23 {offsets = [2, 0], sizes = [2, 128], strides = [1, 1]} : vector<16x128xf32> to vector<2x128xf32>
    %c1 = arith.constant 1 : index
    %c0_23 = arith.constant 0 : index
    %c0_24 = arith.constant 0 : index
    %34 = vector.load %arg13[%c1, %c0_23, %c0_24] : memref<8x2x128xf32, #tpu.memory_space<vmem>>, vector<1x2x128xf32>
    %35 = vector.shape_cast %34 : vector<1x2x128xf32> to vector<2x128xf32>
    %36 = vector.shape_cast %33 : vector<2x128xf32> to vector<1x2x128xf32>
    tpu.vector_store %arg13[%c1, %c0_23, %c0_24], %36 {strides = array<i32>} : memref<8x2x128xf32, #tpu.memory_space<vmem>>, vector<1x2x128xf32>,
    %37 = vector.extract_strided_slice %24 {offsets = [2, 0], sizes = [2, 128], strides = [1, 1]} : vector<16x128xf32> to vector<2x128xf32>
    %c1_25 = arith.constant 1 : index
    %c0_26 = arith.constant 0 : index
    %c0_27 = arith.constant 0 : index
    %38 = vector.load %arg14[%c1_25, %c0_26, %c0_27] : memref<8x2x128xf32, #tpu.memory_space<vmem>>, vector<1x2x128xf32>
    %39 = vector.shape_cast %38 : vector<1x2x128xf32> to vector<2x128xf32>
    %40 = vector.shape_cast %37 : vector<2x128xf32> to vector<1x2x128xf32>
    tpu.vector_store %arg14[%c1_25, %c0_26, %c0_27], %40 {strides = array<i32>} : memref<8x2x128xf32, #tpu.memory_space<vmem>>, vector<1x2x128xf32>,
    %41 = vector.extract_strided_slice %23 {offsets = [4, 0], sizes = [2, 128], strides = [1, 1]} : vector<16x128xf32> to vector<2x128xf32>
    %c2 = arith.constant 2 : index
    %c0_28 = arith.constant 0 : index
    %c0_29 = arith.constant 0 : index
    %42 = vector.load %arg13[%c2, %c0_28, %c0_29] : memref<8x2x128xf32, #tpu.memory_space<vmem>>, vector<1x2x128xf32>
    %43 = vector.shape_cast %42 : vector<1x2x128xf32> to vector<2x128xf32>
    %44 = vector.shape_cast %41 : vector<2x128xf32> to vector<1x2x128xf32>
    tpu.vector_store %arg13[%c2, %c0_28, %c0_29], %44 {strides = array<i32>} : memref<8x2x128xf32, #tpu.memory_space<vmem>>, vector<1x2x128xf32>,
    %45 = vector.extract_strided_slice %24 {offsets = [4, 0], sizes = [2, 128], strides = [1, 1]} : vector<16x128xf32> to vector<2x128xf32>
    %c2_30 = arith.constant 2 : index
    %c0_31 = arith.constant 0 : index
    %c0_32 = arith.constant 0 : index
    %46 = vector.load %arg14[%c2_30, %c0_31, %c0_32] : memref<8x2x128xf32, #tpu.memory_space<vmem>>, vector<1x2x128xf32>
    %47 = vector.shape_cast %46 : vector<1x2x128xf32> to vector<2x128xf32>
    %48 = vector.shape_cast %45 : vector<2x128xf32> to vector<1x2x128xf32>
    tpu.vector_store %arg14[%c2_30, %c0_31, %c0_32], %48 {strides = array<i32>} : memref<8x2x128xf32, #tpu.memory_space<vmem>>, vector<1x2x128xf32>,
    %49 = vector.extract_strided_slice %23 {offsets = [6, 0], sizes = [2, 128], strides = [1, 1]} : vector<16x128xf32> to vector<2x128xf32>
    %c3 = arith.constant 3 : index
    %c0_33 = arith.constant 0 : index
    %c0_34 = arith.constant 0 : index
    %50 = vector.load %arg13[%c3, %c0_33, %c0_34] : memref<8x2x128xf32, #tpu.memory_space<vmem>>, vector<1x2x128xf32>
    %51 = vector.shape_cast %50 : vector<1x2x128xf32> to vector<2x128xf32>
    %52 = vector.shape_cast %49 : vector<2x128xf32> to vector<1x2x128xf32>
    tpu.vector_store %arg13[%c3, %c0_33, %c0_34], %52 {strides = array<i32>} : memref<8x2x128xf32, #tpu.memory_space<vmem>>, vector<1x2x128xf32>,
    %53 = vector.extract_strided_slice %24 {offsets = [6, 0], sizes = [2, 128], strides = [1, 1]} : vector<16x128xf32> to vector<2x128xf32>
    %c3_35 = arith.constant 3 : index
    %c0_36 = arith.constant 0 : index
    %c0_37 = arith.constant 0 : index
    %54 = vector.load %arg14[%c3_35, %c0_36, %c0_37] : memref<8x2x128xf32, #tpu.memory_space<vmem>>, vector<1x2x128xf32>
    %55 = vector.shape_cast %54 : vector<1x2x128xf32> to vector<2x128xf32>
    %56 = vector.shape_cast %53 : vector<2x128xf32> to vector<1x2x128xf32>
    tpu.vector_store %arg14[%c3_35, %c0_36, %c0_37], %56 {strides = array<i32>} : memref<8x2x128xf32, #tpu.memory_space<vmem>>, vector<1x2x128xf32>,
    %57 = vector.extract_strided_slice %23 {offsets = [8, 0], sizes = [2, 128], strides = [1, 1]} : vector<16x128xf32> to vector<2x128xf32>
    %c4 = arith.constant 4 : index
    %c0_38 = arith.constant 0 : index
    %c0_39 = arith.constant 0 : index
    %58 = vector.load %arg13[%c4, %c0_38, %c0_39] : memref<8x2x128xf32, #tpu.memory_space<vmem>>, vector<1x2x128xf32>
    %59 = vector.shape_cast %58 : vector<1x2x128xf32> to vector<2x128xf32>
    %60 = vector.shape_cast %57 : vector<2x128xf32> to vector<1x2x128xf32>
    tpu.vector_store %arg13[%c4, %c0_38, %c0_39], %60 {strides = array<i32>} : memref<8x2x128xf32, #tpu.memory_space<vmem>>, vector<1x2x128xf32>,
    %61 = vector.extract_strided_slice %24 {offsets = [8, 0], sizes = [2, 128], strides = [1, 1]} : vector<16x128xf32> to vector<2x128xf32>
    %c4_40 = arith.constant 4 : index
    %c0_41 = arith.constant 0 : index
    %c0_42 = arith.constant 0 : index
    %62 = vector.load %arg14[%c4_40, %c0_41, %c0_42] : memref<8x2x128xf32, #tpu.memory_space<vmem>>, vector<1x2x128xf32>
    %63 = vector.shape_cast %62 : vector<1x2x128xf32> to vector<2x128xf32>
    %64 = vector.shape_cast %61 : vector<2x128xf32> to vector<1x2x128xf32>
    tpu.vector_store %arg14[%c4_40, %c0_41, %c0_42], %64 {strides = array<i32>} : memref<8x2x128xf32, #tpu.memory_space<vmem>>, vector<1x2x128xf32>,
    %65 = vector.extract_strided_slice %23 {offsets = [10, 0], sizes = [2, 128], strides = [1, 1]} : vector<16x128xf32> to vector<2x128xf32>
    %c5 = arith.constant 5 : index
    %c0_43 = arith.constant 0 : index
    %c0_44 = arith.constant 0 : index
    %66 = vector.load %arg13[%c5, %c0_43, %c0_44] : memref<8x2x128xf32, #tpu.memory_space<vmem>>, vector<1x2x128xf32>
    %67 = vector.shape_cast %66 : vector<1x2x128xf32> to vector<2x128xf32>
    %68 = vector.shape_cast %65 : vector<2x128xf32> to vector<1x2x128xf32>
    tpu.vector_store %arg13[%c5, %c0_43, %c0_44], %68 {strides = array<i32>} : memref<8x2x128xf32, #tpu.memory_space<vmem>>, vector<1x2x128xf32>,
    %69 = vector.extract_strided_slice %24 {offsets = [10, 0], sizes = [2, 128], strides = [1, 1]} : vector<16x128xf32> to vector<2x128xf32>
    %c5_45 = arith.constant 5 : index
    %c0_46 = arith.constant 0 : index
    %c0_47 = arith.constant 0 : index
    %70 = vector.load %arg14[%c5_45, %c0_46, %c0_47] : memref<8x2x128xf32, #tpu.memory_space<vmem>>, vector<1x2x128xf32>
    %71 = vector.shape_cast %70 : vector<1x2x128xf32> to vector<2x128xf32>
    %72 = vector.shape_cast %69 : vector<2x128xf32> to vector<1x2x128xf32>
    tpu.vector_store %arg14[%c5_45, %c0_46, %c0_47], %72 {strides = array<i32>} : memref<8x2x128xf32, #tpu.memory_space<vmem>>, vector<1x2x128xf32>,
    %73 = vector.extract_strided_slice %23 {offsets = [12, 0], sizes = [2, 128], strides = [1, 1]} : vector<16x128xf32> to vector<2x128xf32>
    %c6 = arith.constant 6 : index
    %c0_48 = arith.constant 0 : index
    %c0_49 = arith.constant 0 : index
    %74 = vector.load %arg13[%c6, %c0_48, %c0_49] : memref<8x2x128xf32, #tpu.memory_space<vmem>>, vector<1x2x128xf32>
    %75 = vector.shape_cast %74 : vector<1x2x128xf32> to vector<2x128xf32>
    %76 = vector.shape_cast %73 : vector<2x128xf32> to vector<1x2x128xf32>
    tpu.vector_store %arg13[%c6, %c0_48, %c0_49], %76 {strides = array<i32>} : memref<8x2x128xf32, #tpu.memory_space<vmem>>, vector<1x2x128xf32>,
    %77 = vector.extract_strided_slice %24 {offsets = [12, 0], sizes = [2, 128], strides = [1, 1]} : vector<16x128xf32> to vector<2x128xf32>
    %c6_50 = arith.constant 6 : index
    %c0_51 = arith.constant 0 : index
    %c0_52 = arith.constant 0 : index
    %78 = vector.load %arg14[%c6_50, %c0_51, %c0_52] : memref<8x2x128xf32, #tpu.memory_space<vmem>>, vector<1x2x128xf32>
    %79 = vector.shape_cast %78 : vector<1x2x128xf32> to vector<2x128xf32>
    %80 = vector.shape_cast %77 : vector<2x128xf32> to vector<1x2x128xf32>
    tpu.vector_store %arg14[%c6_50, %c0_51, %c0_52], %80 {strides = array<i32>} : memref<8x2x128xf32, #tpu.memory_space<vmem>>, vector<1x2x128xf32>,
    %81 = vector.extract_strided_slice %23 {offsets = [14, 0], sizes = [2, 128], strides = [1, 1]} : vector<16x128xf32> to vector<2x128xf32>
    %c7 = arith.constant 7 : index
    %c0_53 = arith.constant 0 : index
    %c0_54 = arith.constant 0 : index
    %82 = vector.load %arg13[%c7, %c0_53, %c0_54] : memref<8x2x128xf32, #tpu.memory_space<vmem>>, vector<1x2x128xf32>
    %83 = vector.shape_cast %82 : vector<1x2x128xf32> to vector<2x128xf32>
    %84 = vector.shape_cast %81 : vector<2x128xf32> to vector<1x2x128xf32>
    tpu.vector_store %arg13[%c7, %c0_53, %c0_54], %84 {strides = array<i32>} : memref<8x2x128xf32, #tpu.memory_space<vmem>>, vector<1x2x128xf32>,
    %85 = vector.extract_strided_slice %24 {offsets = [14, 0], sizes = [2, 128], strides = [1, 1]} : vector<16x128xf32> to vector<2x128xf32>
    %c7_55 = arith.constant 7 : index
    %c0_56 = arith.constant 0 : index
    %c0_57 = arith.constant 0 : index
    %86 = vector.load %arg14[%c7_55, %c0_56, %c0_57] : memref<8x2x128xf32, #tpu.memory_space<vmem>>, vector<1x2x128xf32>
    %87 = vector.shape_cast %86 : vector<1x2x128xf32> to vector<2x128xf32>
    %88 = vector.shape_cast %85 : vector<2x128xf32> to vector<1x2x128xf32>
    tpu.vector_store %arg14[%c7_55, %c0_56, %c0_57], %88 {strides = array<i32>} : memref<8x2x128xf32, #tpu.memory_space<vmem>>, vector<1x2x128xf32>,
    %c0_58 = arith.constant 0 : index
    %c0_59 = arith.constant 0 : index
    %89 = vector.load %arg1[%c0_58, %c0_59] : memref<2x1xi32, #tpu.memory_space<vmem>>, vector<2x1xi32>
    %c0_60 = arith.constant 0 : index
    %c0_61 = arith.constant 0 : index
    %90 = vector.load %arg8[%c0_60, %c0_61] : memref<32x128xbf16, #tpu.memory_space<vmem>>, vector<32x128xbf16>
    %c0_62 = arith.constant 0 : index
    %c0_63 = arith.constant 0 : index
    %91 = vector.load %arg9[%c0_62, %c0_63] : memref<32x128xbf16, #tpu.memory_space<vmem>>, vector<32x128xbf16>
    %cst_64 = arith.constant 0.000000e+00 : f32
    %92 = vector.broadcast %cst_64 : f32 to vector<2x32xf32>
    %c0_i32 = arith.constant 0 : i32
    %c7_i32 = arith.constant 7 : i32
    %93 = arith.subi %c7_i32, %c0_i32 : i32
    %94 = arith.truncf %92 : vector<2x32xf32> to vector<2x32xbf16>
    %cst_65 = arith.constant dense<0.000000e+00> : vector<2x128xf32>
    %95 = tpu.matmul %94, %90, %cst_65 {dimension_numbers = #tpu.dot_dimension_numbers<[1], [0], [0], [1], [0, 0, 1, 1], [], []>} : vector<2x32xbf16>, vector<32x128xbf16>, vector<2x128xf32> -> vector<2x128xf32>
    %96 = arith.truncf %92 : vector<2x32xf32> to vector<2x32xbf16>
    %cst_66 = arith.constant dense<0.000000e+00> : vector<2x128xf32>
    %97 = tpu.matmul %96, %91, %cst_66 {dimension_numbers = #tpu.dot_dimension_numbers<[1], [0], [0], [1], [0, 0, 1, 1], [], []>} : vector<2x32xbf16>, vector<32x128xbf16>, vector<2x128xf32> -> vector<2x128xf32>
    %98 = arith.index_cast %c0_i32 : i32 to index
    %c0_67 = arith.constant 0 : index
    %c0_68 = arith.constant 0 : index
    %99 = vector.load %arg13[%98, %c0_67, %c0_68] : memref<8x2x128xf32, #tpu.memory_space<vmem>>, vector<1x2x128xf32>
    %100 = vector.shape_cast %99 : vector<1x2x128xf32> to vector<2x128xf32>
    %101 = arith.addf %100, %95 : vector<2x128xf32>
    %102 = vector.extract_strided_slice %101 {offsets = [0, 0], sizes = [2, 32], strides = [1, 1]} : vector<2x128xf32> to vector<2x32xf32>
    %103 = arith.negf %102 : vector<2x32xf32>
    %104 = math.exp %103 : vector<2x32xf32>
    %cst_69 = arith.constant 1.000000e+00 : f32
    %105 = vector.broadcast %cst_69 : f32 to vector<2x32xf32>
    %106 = arith.addf %105, %104 : vector<2x32xf32>
    %107 = arith.divf %105, %106 : vector<2x32xf32>
    %108 = vector.extract_strided_slice %101 {offsets = [0, 32], sizes = [2, 32], strides = [1, 1]} : vector<2x128xf32> to vector<2x32xf32>
    %109 = arith.negf %108 : vector<2x32xf32>
    %110 = math.exp %109 : vector<2x32xf32>
    %cst_70 = arith.constant 1.000000e+00 : f32
    %111 = vector.broadcast %cst_70 : f32 to vector<2x32xf32>
    %112 = arith.addf %111, %110 : vector<2x32xf32>
    %113 = arith.divf %111, %112 : vector<2x32xf32>
    %114 = vector.extract_strided_slice %101 {offsets = [0, 64], sizes = [2, 32], strides = [1, 1]} : vector<2x128xf32> to vector<2x32xf32>
    %115 = math.tanh %114 : vector<2x32xf32>
    %116 = vector.extract_strided_slice %101 {offsets = [0, 96], sizes = [2, 32], strides = [1, 1]} : vector<2x128xf32> to vector<2x32xf32>
    %117 = arith.negf %116 : vector<2x32xf32>
    %118 = math.exp %117 : vector<2x32xf32>
    %cst_71 = arith.constant 1.000000e+00 : f32
    %119 = vector.broadcast %cst_71 : f32 to vector<2x32xf32>
    %120 = arith.addf %119, %118 : vector<2x32xf32>
    %121 = arith.divf %119, %120 : vector<2x32xf32>
    %122 = arith.mulf %113, %92 : vector<2x32xf32>
    %123 = arith.mulf %107, %115 : vector<2x32xf32>
    %124 = arith.addf %122, %123 : vector<2x32xf32>
    %125 = math.tanh %124 : vector<2x32xf32>
    %126 = arith.mulf %121, %125 : vector<2x32xf32>
    %127 = arith.index_cast %93 : i32 to index
    %c0_72 = arith.constant 0 : index
    %c0_73 = arith.constant 0 : index
    %128 = vector.load %arg14[%127, %c0_72, %c0_73] : memref<8x2x128xf32, #tpu.memory_space<vmem>>, vector<1x2x128xf32>
    %129 = vector.shape_cast %128 : vector<1x2x128xf32> to vector<2x128xf32>
    %130 = arith.addf %129, %97 : vector<2x128xf32>
    %131 = vector.extract_strided_slice %130 {offsets = [0, 0], sizes = [2, 32], strides = [1, 1]} : vector<2x128xf32> to vector<2x32xf32>
    %132 = arith.negf %131 : vector<2x32xf32>
    %133 = math.exp %132 : vector<2x32xf32>
    %cst_74 = arith.constant 1.000000e+00 : f32
    %134 = vector.broadcast %cst_74 : f32 to vector<2x32xf32>
    %135 = arith.addf %134, %133 : vector<2x32xf32>
    %136 = arith.divf %134, %135 : vector<2x32xf32>
    %137 = vector.extract_strided_slice %130 {offsets = [0, 32], sizes = [2, 32], strides = [1, 1]} : vector<2x128xf32> to vector<2x32xf32>
    %138 = arith.negf %137 : vector<2x32xf32>
    %139 = math.exp %138 : vector<2x32xf32>
    %cst_75 = arith.constant 1.000000e+00 : f32
    %140 = vector.broadcast %cst_75 : f32 to vector<2x32xf32>
    %141 = arith.addf %140, %139 : vector<2x32xf32>
    %142 = arith.divf %140, %141 : vector<2x32xf32>
    %143 = vector.extract_strided_slice %130 {offsets = [0, 64], sizes = [2, 32], strides = [1, 1]} : vector<2x128xf32> to vector<2x32xf32>
    %144 = math.tanh %143 : vector<2x32xf32>
    %145 = vector.extract_strided_slice %130 {offsets = [0, 96], sizes = [2, 32], strides = [1, 1]} : vector<2x128xf32> to vector<2x32xf32>
    %146 = arith.negf %145 : vector<2x32xf32>
    %147 = math.exp %146 : vector<2x32xf32>
    %cst_76 = arith.constant 1.000000e+00 : f32
    %148 = vector.broadcast %cst_76 : f32 to vector<2x32xf32>
    %149 = arith.addf %148, %147 : vector<2x32xf32>
    %150 = arith.divf %148, %149 : vector<2x32xf32>
    %151 = arith.mulf %142, %92 : vector<2x32xf32>
    %152 = arith.mulf %136, %144 : vector<2x32xf32>
    %153 = arith.addf %151, %152 : vector<2x32xf32>
    %154 = math.tanh %153 : vector<2x32xf32>
    %155 = arith.mulf %150, %154 : vector<2x32xf32>
    %156 = vector.broadcast %c0_i32 : i32 to vector<2x1xi32>
    %157 = arith.cmpi slt, %156, %89 : vector<2x1xi32>
    %158 = vector.broadcast %93 : i32 to vector<2x1xi32>
    %159 = arith.cmpi slt, %158, %89 : vector<2x1xi32>
    %cst_77 = arith.constant 0.000000e+00 : f32
    %160 = vector.shape_cast %157 : vector<2x1xi1> to vector<2x1xi1>
    %161 = vector.broadcast %160 : vector<2x1xi1> to vector<2x32xi1>
    %162 = vector.broadcast %cst_77 : f32 to vector<2x32xf32>
    %163 = arith.select %161, %126, %162 : vector<2x32xi1>, vector<2x32xf32>
    %164 = arith.index_cast %c0_i32 : i32 to index
    %c0_78 = arith.constant 0 : index
    %c0_79 = arith.constant 0 : index
    %165 = vector.load %arg15[%164, %c0_78, %c0_79] : memref<8x2x32xf32, #tpu.memory_space<vmem>>, vector<1x2x32xf32>
    %166 = vector.shape_cast %165 : vector<1x2x32xf32> to vector<2x32xf32>
    %167 = vector.shape_cast %163 : vector<2x32xf32> to vector<1x2x32xf32>
    tpu.vector_store %arg15[%164, %c0_78, %c0_79], %167 {strides = array<i32>} : memref<8x2x32xf32, #tpu.memory_space<vmem>>, vector<1x2x32xf32>,
    %cst_80 = arith.constant 0.000000e+00 : f32
    %168 = vector.shape_cast %159 : vector<2x1xi1> to vector<2x1xi1>
    %169 = vector.broadcast %168 : vector<2x1xi1> to vector<2x32xi1>
    %170 = vector.broadcast %cst_80 : f32 to vector<2x32xf32>
    %171 = arith.select %169, %155, %170 : vector<2x32xi1>, vector<2x32xf32>
    %172 = arith.index_cast %93 : i32 to index
    %c0_81 = arith.constant 0 : index
    %c0_82 = arith.constant 0 : index
    %173 = vector.load %arg16[%172, %c0_81, %c0_82] : memref<8x2x32xf32, #tpu.memory_space<vmem>>, vector<1x2x32xf32>
    %174 = vector.shape_cast %173 : vector<1x2x32xf32> to vector<2x32xf32>
    %175 = vector.shape_cast %171 : vector<2x32xf32> to vector<1x2x32xf32>
    tpu.vector_store %arg16[%172, %c0_81, %c0_82], %175 {strides = array<i32>} : memref<8x2x32xf32, #tpu.memory_space<vmem>>, vector<1x2x32xf32>,
    %176 = vector.shape_cast %157 : vector<2x1xi1> to vector<2x1xi1>
    %177 = vector.broadcast %176 : vector<2x1xi1> to vector<2x32xi1>
    %178 = arith.select %177, %126, %92 : vector<2x32xi1>, vector<2x32xf32>
    %179 = vector.shape_cast %157 : vector<2x1xi1> to vector<2x1xi1>
    %180 = vector.broadcast %179 : vector<2x1xi1> to vector<2x32xi1>
    %181 = arith.select %180, %124, %92 : vector<2x32xi1>, vector<2x32xf32>
    %182 = vector.shape_cast %159 : vector<2x1xi1> to vector<2x1xi1>
    %183 = vector.broadcast %182 : vector<2x1xi1> to vector<2x32xi1>
    %184 = arith.select %183, %155, %92 : vector<2x32xi1>, vector<2x32xf32>
    %185 = vector.shape_cast %159 : vector<2x1xi1> to vector<2x1xi1>
    %186 = vector.broadcast %185 : vector<2x1xi1> to vector<2x32xi1>
    %187 = arith.select %186, %153, %92 : vector<2x32xi1>, vector<2x32xf32>
    %c1_i32 = arith.constant 1 : i32
    %c7_i32_83 = arith.constant 7 : i32
    %188 = arith.subi %c7_i32_83, %c1_i32 : i32
    %189 = arith.truncf %178 : vector<2x32xf32> to vector<2x32xbf16>
    %cst_84 = arith.constant dense<0.000000e+00> : vector<2x128xf32>
    %190 = tpu.matmul %189, %90, %cst_84 {dimension_numbers = #tpu.dot_dimension_numbers<[1], [0], [0], [1], [0, 0, 1, 1], [], []>} : vector<2x32xbf16>, vector<32x128xbf16>, vector<2x128xf32> -> vector<2x128xf32>
    %191 = arith.truncf %184 : vector<2x32xf32> to vector<2x32xbf16>
    %cst_85 = arith.constant dense<0.000000e+00> : vector<2x128xf32>
    %192 = tpu.matmul %191, %91, %cst_85 {dimension_numbers = #tpu.dot_dimension_numbers<[1], [0], [0], [1], [0, 0, 1, 1], [], []>} : vector<2x32xbf16>, vector<32x128xbf16>, vector<2x128xf32> -> vector<2x128xf32>
    %193 = arith.index_cast %c1_i32 : i32 to index
    %c0_86 = arith.constant 0 : index
    %c0_87 = arith.constant 0 : index
    %194 = vector.load %arg13[%193, %c0_86, %c0_87] : memref<8x2x128xf32, #tpu.memory_space<vmem>>, vector<1x2x128xf32>
    %195 = vector.shape_cast %194 : vector<1x2x128xf32> to vector<2x128xf32>
    %196 = arith.addf %195, %190 : vector<2x128xf32>
    %197 = vector.extract_strided_slice %196 {offsets = [0, 0], sizes = [2, 32], strides = [1, 1]} : vector<2x128xf32> to vector<2x32xf32>
    %198 = arith.negf %197 : vector<2x32xf32>
    %199 = math.exp %198 : vector<2x32xf32>
    %cst_88 = arith.constant 1.000000e+00 : f32
    %200 = vector.broadcast %cst_88 : f32 to vector<2x32xf32>
    %201 = arith.addf %200, %199 : vector<2x32xf32>
    %202 = arith.divf %200, %201 : vector<2x32xf32>
    %203 = vector.extract_strided_slice %196 {offsets = [0, 32], sizes = [2, 32], strides = [1, 1]} : vector<2x128xf32> to vector<2x32xf32>
    %204 = arith.negf %203 : vector<2x32xf32>
    %205 = math.exp %204 : vector<2x32xf32>
    %cst_89 = arith.constant 1.000000e+00 : f32
    %206 = vector.broadcast %cst_89 : f32 to vector<2x32xf32>
    %207 = arith.addf %206, %205 : vector<2x32xf32>
    %208 = arith.divf %206, %207 : vector<2x32xf32>
    %209 = vector.extract_strided_slice %196 {offsets = [0, 64], sizes = [2, 32], strides = [1, 1]} : vector<2x128xf32> to vector<2x32xf32>
    %210 = math.tanh %209 : vector<2x32xf32>
    %211 = vector.extract_strided_slice %196 {offsets = [0, 96], sizes = [2, 32], strides = [1, 1]} : vector<2x128xf32> to vector<2x32xf32>
    %212 = arith.negf %211 : vector<2x32xf32>
    %213 = math.exp %212 : vector<2x32xf32>
    %cst_90 = arith.constant 1.000000e+00 : f32
    %214 = vector.broadcast %cst_90 : f32 to vector<2x32xf32>
    %215 = arith.addf %214, %213 : vector<2x32xf32>
    %216 = arith.divf %214, %215 : vector<2x32xf32>
    %217 = arith.mulf %208, %181 : vector<2x32xf32>
    %218 = arith.mulf %202, %210 : vector<2x32xf32>
    %219 = arith.addf %217, %218 : vector<2x32xf32>
    %220 = math.tanh %219 : vector<2x32xf32>
    %221 = arith.mulf %216, %220 : vector<2x32xf32>
    %222 = arith.index_cast %188 : i32 to index
    %c0_91 = arith.constant 0 : index
    %c0_92 = arith.constant 0 : index
    %223 = vector.load %arg14[%222, %c0_91, %c0_92] : memref<8x2x128xf32, #tpu.memory_space<vmem>>, vector<1x2x128xf32>
    %224 = vector.shape_cast %223 : vector<1x2x128xf32> to vector<2x128xf32>
    %225 = arith.addf %224, %192 : vector<2x128xf32>
    %226 = vector.extract_strided_slice %225 {offsets = [0, 0], sizes = [2, 32], strides = [1, 1]} : vector<2x128xf32> to vector<2x32xf32>
    %227 = arith.negf %226 : vector<2x32xf32>
    %228 = math.exp %227 : vector<2x32xf32>
    %cst_93 = arith.constant 1.000000e+00 : f32
    %229 = vector.broadcast %cst_93 : f32 to vector<2x32xf32>
    %230 = arith.addf %229, %228 : vector<2x32xf32>
    %231 = arith.divf %229, %230 : vector<2x32xf32>
    %232 = vector.extract_strided_slice %225 {offsets = [0, 32], sizes = [2, 32], strides = [1, 1]} : vector<2x128xf32> to vector<2x32xf32>
    %233 = arith.negf %232 : vector<2x32xf32>
    %234 = math.exp %233 : vector<2x32xf32>
    %cst_94 = arith.constant 1.000000e+00 : f32
    %235 = vector.broadcast %cst_94 : f32 to vector<2x32xf32>
    %236 = arith.addf %235, %234 : vector<2x32xf32>
    %237 = arith.divf %235, %236 : vector<2x32xf32>
    %238 = vector.extract_strided_slice %225 {offsets = [0, 64], sizes = [2, 32], strides = [1, 1]} : vector<2x128xf32> to vector<2x32xf32>
    %239 = math.tanh %238 : vector<2x32xf32>
    %240 = vector.extract_strided_slice %225 {offsets = [0, 96], sizes = [2, 32], strides = [1, 1]} : vector<2x128xf32> to vector<2x32xf32>
    %241 = arith.negf %240 : vector<2x32xf32>
    %242 = math.exp %241 : vector<2x32xf32>
    %cst_95 = arith.constant 1.000000e+00 : f32
    %243 = vector.broadcast %cst_95 : f32 to vector<2x32xf32>
    %244 = arith.addf %243, %242 : vector<2x32xf32>
    %245 = arith.divf %243, %244 : vector<2x32xf32>
    %246 = arith.mulf %237, %187 : vector<2x32xf32>
    %247 = arith.mulf %231, %239 : vector<2x32xf32>
    %248 = arith.addf %246, %247 : vector<2x32xf32>
    %249 = math.tanh %248 : vector<2x32xf32>
    %250 = arith.mulf %245, %249 : vector<2x32xf32>
    %251 = vector.broadcast %c1_i32 : i32 to vector<2x1xi32>
    %252 = arith.cmpi slt, %251, %89 : vector<2x1xi32>
    %253 = vector.broadcast %188 : i32 to vector<2x1xi32>
    %254 = arith.cmpi slt, %253, %89 : vector<2x1xi32>
    %cst_96 = arith.constant 0.000000e+00 : f32
    %255 = vector.shape_cast %252 : vector<2x1xi1> to vector<2x1xi1>
    %256 = vector.broadcast %255 : vector<2x1xi1> to vector<2x32xi1>
    %257 = vector.broadcast %cst_96 : f32 to vector<2x32xf32>
    %258 = arith.select %256, %221, %257 : vector<2x32xi1>, vector<2x32xf32>
    %259 = arith.index_cast %c1_i32 : i32 to index
    %c0_97 = arith.constant 0 : index
    %c0_98 = arith.constant 0 : index
    %260 = vector.load %arg15[%259, %c0_97, %c0_98] : memref<8x2x32xf32, #tpu.memory_space<vmem>>, vector<1x2x32xf32>
    %261 = vector.shape_cast %260 : vector<1x2x32xf32> to vector<2x32xf32>
    %262 = vector.shape_cast %258 : vector<2x32xf32> to vector<1x2x32xf32>
    tpu.vector_store %arg15[%259, %c0_97, %c0_98], %262 {strides = array<i32>} : memref<8x2x32xf32, #tpu.memory_space<vmem>>, vector<1x2x32xf32>,
    %cst_99 = arith.constant 0.000000e+00 : f32
    %263 = vector.shape_cast %254 : vector<2x1xi1> to vector<2x1xi1>
    %264 = vector.broadcast %263 : vector<2x1xi1> to vector<2x32xi1>
    %265 = vector.broadcast %cst_99 : f32 to vector<2x32xf32>
    %266 = arith.select %264, %250, %265 : vector<2x32xi1>, vector<2x32xf32>
    %267 = arith.index_cast %188 : i32 to index
    %c0_100 = arith.constant 0 : index
    %c0_101 = arith.constant 0 : index
    %268 = vector.load %arg16[%267, %c0_100, %c0_101] : memref<8x2x32xf32, #tpu.memory_space<vmem>>, vector<1x2x32xf32>
    %269 = vector.shape_cast %268 : vector<1x2x32xf32> to vector<2x32xf32>
    %270 = vector.shape_cast %266 : vector<2x32xf32> to vector<1x2x32xf32>
    tpu.vector_store %arg16[%267, %c0_100, %c0_101], %270 {strides = array<i32>} : memref<8x2x32xf32, #tpu.memory_space<vmem>>, vector<1x2x32xf32>,
    %271 = vector.shape_cast %252 : vector<2x1xi1> to vector<2x1xi1>
    %272 = vector.broadcast %271 : vector<2x1xi1> to vector<2x32xi1>
    %273 = arith.select %272, %221, %178 : vector<2x32xi1>, vector<2x32xf32>
    %274 = vector.shape_cast %252 : vector<2x1xi1> to vector<2x1xi1>
    %275 = vector.broadcast %274 : vector<2x1xi1> to vector<2x32xi1>
    %276 = arith.select %275, %219, %181 : vector<2x32xi1>, vector<2x32xf32>
    %277 = vector.shape_cast %254 : vector<2x1xi1> to vector<2x1xi1>
    %278 = vector.broadcast %277 : vector<2x1xi1> to vector<2x32xi1>
    %279 = arith.select %278, %250, %184 : vector<2x32xi1>, vector<2x32xf32>
    %280 = vector.shape_cast %254 : vector<2x1xi1> to vector<2x1xi1>
    %281 = vector.broadcast %280 : vector<2x1xi1> to vector<2x32xi1>
    %282 = arith.select %281, %248, %187 : vector<2x32xi1>, vector<2x32xf32>
    %c2_i32 = arith.constant 2 : i32
    %c7_i32_102 = arith.constant 7 : i32
    %283 = arith.subi %c7_i32_102, %c2_i32 : i32
    %284 = arith.truncf %273 : vector<2x32xf32> to vector<2x32xbf16>
    %cst_103 = arith.constant dense<0.000000e+00> : vector<2x128xf32>
    %285 = tpu.matmul %284, %90, %cst_103 {dimension_numbers = #tpu.dot_dimension_numbers<[1], [0], [0], [1], [0, 0, 1, 1], [], []>} : vector<2x32xbf16>, vector<32x128xbf16>, vector<2x128xf32> -> vector<2x128xf32>
    %286 = arith.truncf %279 : vector<2x32xf32> to vector<2x32xbf16>
    %cst_104 = arith.constant dense<0.000000e+00> : vector<2x128xf32>
    %287 = tpu.matmul %286, %91, %cst_104 {dimension_numbers = #tpu.dot_dimension_numbers<[1], [0], [0], [1], [0, 0, 1, 1], [], []>} : vector<2x32xbf16>, vector<32x128xbf16>, vector<2x128xf32> -> vector<2x128xf32>
    %288 = arith.index_cast %c2_i32 : i32 to index
    %c0_105 = arith.constant 0 : index
    %c0_106 = arith.constant 0 : index
    %289 = vector.load %arg13[%288, %c0_105, %c0_106] : memref<8x2x128xf32, #tpu.memory_space<vmem>>, vector<1x2x128xf32>
    %290 = vector.shape_cast %289 : vector<1x2x128xf32> to vector<2x128xf32>
    %291 = arith.addf %290, %285 : vector<2x128xf32>
    %292 = vector.extract_strided_slice %291 {offsets = [0, 0], sizes = [2, 32], strides = [1, 1]} : vector<2x128xf32> to vector<2x32xf32>
    %293 = arith.negf %292 : vector<2x32xf32>
    %294 = math.exp %293 : vector<2x32xf32>
    %cst_107 = arith.constant 1.000000e+00 : f32
    %295 = vector.broadcast %cst_107 : f32 to vector<2x32xf32>
    %296 = arith.addf %295, %294 : vector<2x32xf32>
    %297 = arith.divf %295, %296 : vector<2x32xf32>
    %298 = vector.extract_strided_slice %291 {offsets = [0, 32], sizes = [2, 32], strides = [1, 1]} : vector<2x128xf32> to vector<2x32xf32>
    %299 = arith.negf %298 : vector<2x32xf32>
    %300 = math.exp %299 : vector<2x32xf32>
    %cst_108 = arith.constant 1.000000e+00 : f32
    %301 = vector.broadcast %cst_108 : f32 to vector<2x32xf32>
    %302 = arith.addf %301, %300 : vector<2x32xf32>
    %303 = arith.divf %301, %302 : vector<2x32xf32>
    %304 = vector.extract_strided_slice %291 {offsets = [0, 64], sizes = [2, 32], strides = [1, 1]} : vector<2x128xf32> to vector<2x32xf32>
    %305 = math.tanh %304 : vector<2x32xf32>
    %306 = vector.extract_strided_slice %291 {offsets = [0, 96], sizes = [2, 32], strides = [1, 1]} : vector<2x128xf32> to vector<2x32xf32>
    %307 = arith.negf %306 : vector<2x32xf32>
    %308 = math.exp %307 : vector<2x32xf32>
    %cst_109 = arith.constant 1.000000e+00 : f32
    %309 = vector.broadcast %cst_109 : f32 to vector<2x32xf32>
    %310 = arith.addf %309, %308 : vector<2x32xf32>
    %311 = arith.divf %309, %310 : vector<2x32xf32>
    %312 = arith.mulf %303, %276 : vector<2x32xf32>
    %313 = arith.mulf %297, %305 : vector<2x32xf32>
    %314 = arith.addf %312, %313 : vector<2x32xf32>
    %315 = math.tanh %314 : vector<2x32xf32>
    %316 = arith.mulf %311, %315 : vector<2x32xf32>
    %317 = arith.index_cast %283 : i32 to index
    %c0_110 = arith.constant 0 : index
    %c0_111 = arith.constant 0 : index
    %318 = vector.load %arg14[%317, %c0_110, %c0_111] : memref<8x2x128xf32, #tpu.memory_space<vmem>>, vector<1x2x128xf32>
    %319 = vector.shape_cast %318 : vector<1x2x128xf32> to vector<2x128xf32>
    %320 = arith.addf %319, %287 : vector<2x128xf32>
    %321 = vector.extract_strided_slice %320 {offsets = [0, 0], sizes = [2, 32], strides = [1, 1]} : vector<2x128xf32> to vector<2x32xf32>
    %322 = arith.negf %321 : vector<2x32xf32>
    %323 = math.exp %322 : vector<2x32xf32>
    %cst_112 = arith.constant 1.000000e+00 : f32
    %324 = vector.broadcast %cst_112 : f32 to vector<2x32xf32>
    %325 = arith.addf %324, %323 : vector<2x32xf32>
    %326 = arith.divf %324, %325 : vector<2x32xf32>
    %327 = vector.extract_strided_slice %320 {offsets = [0, 32], sizes = [2, 32], strides = [1, 1]} : vector<2x128xf32> to vector<2x32xf32>
    %328 = arith.negf %327 : vector<2x32xf32>
    %329 = math.exp %328 : vector<2x32xf32>
    %cst_113 = arith.constant 1.000000e+00 : f32
    %330 = vector.broadcast %cst_113 : f32 to vector<2x32xf32>
    %331 = arith.addf %330, %329 : vector<2x32xf32>
    %332 = arith.divf %330, %331 : vector<2x32xf32>
    %333 = vector.extract_strided_slice %320 {offsets = [0, 64], sizes = [2, 32], strides = [1, 1]} : vector<2x128xf32> to vector<2x32xf32>
    %334 = math.tanh %333 : vector<2x32xf32>
    %335 = vector.extract_strided_slice %320 {offsets = [0, 96], sizes = [2, 32], strides = [1, 1]} : vector<2x128xf32> to vector<2x32xf32>
    %336 = arith.negf %335 : vector<2x32xf32>
    %337 = math.exp %336 : vector<2x32xf32>
    %cst_114 = arith.constant 1.000000e+00 : f32
    %338 = vector.broadcast %cst_114 : f32 to vector<2x32xf32>
    %339 = arith.addf %338, %337 : vector<2x32xf32>
    %340 = arith.divf %338, %339 : vector<2x32xf32>
    %341 = arith.mulf %332, %282 : vector<2x32xf32>
    %342 = arith.mulf %326, %334 : vector<2x32xf32>
    %343 = arith.addf %341, %342 : vector<2x32xf32>
    %344 = math.tanh %343 : vector<2x32xf32>
    %345 = arith.mulf %340, %344 : vector<2x32xf32>
    %346 = vector.broadcast %c2_i32 : i32 to vector<2x1xi32>
    %347 = arith.cmpi slt, %346, %89 : vector<2x1xi32>
    %348 = vector.broadcast %283 : i32 to vector<2x1xi32>
    %349 = arith.cmpi slt, %348, %89 : vector<2x1xi32>
    %cst_115 = arith.constant 0.000000e+00 : f32
    %350 = vector.shape_cast %347 : vector<2x1xi1> to vector<2x1xi1>
    %351 = vector.broadcast %350 : vector<2x1xi1> to vector<2x32xi1>
    %352 = vector.broadcast %cst_115 : f32 to vector<2x32xf32>
    %353 = arith.select %351, %316, %352 : vector<2x32xi1>, vector<2x32xf32>
    %354 = arith.index_cast %c2_i32 : i32 to index
    %c0_116 = arith.constant 0 : index
    %c0_117 = arith.constant 0 : index
    %355 = vector.load %arg15[%354, %c0_116, %c0_117] : memref<8x2x32xf32, #tpu.memory_space<vmem>>, vector<1x2x32xf32>
    %356 = vector.shape_cast %355 : vector<1x2x32xf32> to vector<2x32xf32>
    %357 = vector.shape_cast %353 : vector<2x32xf32> to vector<1x2x32xf32>
    tpu.vector_store %arg15[%354, %c0_116, %c0_117], %357 {strides = array<i32>} : memref<8x2x32xf32, #tpu.memory_space<vmem>>, vector<1x2x32xf32>,
    %cst_118 = arith.constant 0.000000e+00 : f32
    %358 = vector.shape_cast %349 : vector<2x1xi1> to vector<2x1xi1>
    %359 = vector.broadcast %358 : vector<2x1xi1> to vector<2x32xi1>
    %360 = vector.broadcast %cst_118 : f32 to vector<2x32xf32>
    %361 = arith.select %359, %345, %360 : vector<2x32xi1>, vector<2x32xf32>
    %362 = arith.index_cast %283 : i32 to index
    %c0_119 = arith.constant 0 : index
    %c0_120 = arith.constant 0 : index
    %363 = vector.load %arg16[%362, %c0_119, %c0_120] : memref<8x2x32xf32, #tpu.memory_space<vmem>>, vector<1x2x32xf32>
    %364 = vector.shape_cast %363 : vector<1x2x32xf32> to vector<2x32xf32>
    %365 = vector.shape_cast %361 : vector<2x32xf32> to vector<1x2x32xf32>
    tpu.vector_store %arg16[%362, %c0_119, %c0_120], %365 {strides = array<i32>} : memref<8x2x32xf32, #tpu.memory_space<vmem>>, vector<1x2x32xf32>,
    %366 = vector.shape_cast %347 : vector<2x1xi1> to vector<2x1xi1>
    %367 = vector.broadcast %366 : vector<2x1xi1> to vector<2x32xi1>
    %368 = arith.select %367, %316, %273 : vector<2x32xi1>, vector<2x32xf32>
    %369 = vector.shape_cast %347 : vector<2x1xi1> to vector<2x1xi1>
    %370 = vector.broadcast %369 : vector<2x1xi1> to vector<2x32xi1>
    %371 = arith.select %370, %314, %276 : vector<2x32xi1>, vector<2x32xf32>
    %372 = vector.shape_cast %349 : vector<2x1xi1> to vector<2x1xi1>
    %373 = vector.broadcast %372 : vector<2x1xi1> to vector<2x32xi1>
    %374 = arith.select %373, %345, %279 : vector<2x32xi1>, vector<2x32xf32>
    %375 = vector.shape_cast %349 : vector<2x1xi1> to vector<2x1xi1>
    %376 = vector.broadcast %375 : vector<2x1xi1> to vector<2x32xi1>
    %377 = arith.select %376, %343, %282 : vector<2x32xi1>, vector<2x32xf32>
    %c3_i32 = arith.constant 3 : i32
    %c7_i32_121 = arith.constant 7 : i32
    %378 = arith.subi %c7_i32_121, %c3_i32 : i32
    %379 = arith.truncf %368 : vector<2x32xf32> to vector<2x32xbf16>
    %cst_122 = arith.constant dense<0.000000e+00> : vector<2x128xf32>
    %380 = tpu.matmul %379, %90, %cst_122 {dimension_numbers = #tpu.dot_dimension_numbers<[1], [0], [0], [1], [0, 0, 1, 1], [], []>} : vector<2x32xbf16>, vector<32x128xbf16>, vector<2x128xf32> -> vector<2x128xf32>
    %381 = arith.truncf %374 : vector<2x32xf32> to vector<2x32xbf16>
    %cst_123 = arith.constant dense<0.000000e+00> : vector<2x128xf32>
    %382 = tpu.matmul %381, %91, %cst_123 {dimension_numbers = #tpu.dot_dimension_numbers<[1], [0], [0], [1], [0, 0, 1, 1], [], []>} : vector<2x32xbf16>, vector<32x128xbf16>, vector<2x128xf32> -> vector<2x128xf32>
    %383 = arith.index_cast %c3_i32 : i32 to index
    %c0_124 = arith.constant 0 : index
    %c0_125 = arith.constant 0 : index
    %384 = vector.load %arg13[%383, %c0_124, %c0_125] : memref<8x2x128xf32, #tpu.memory_space<vmem>>, vector<1x2x128xf32>
    %385 = vector.shape_cast %384 : vector<1x2x128xf32> to vector<2x128xf32>
    %386 = arith.addf %385, %380 : vector<2x128xf32>
    %387 = vector.extract_strided_slice %386 {offsets = [0, 0], sizes = [2, 32], strides = [1, 1]} : vector<2x128xf32> to vector<2x32xf32>
    %388 = arith.negf %387 : vector<2x32xf32>
    %389 = math.exp %388 : vector<2x32xf32>
    %cst_126 = arith.constant 1.000000e+00 : f32
    %390 = vector.broadcast %cst_126 : f32 to vector<2x32xf32>
    %391 = arith.addf %390, %389 : vector<2x32xf32>
    %392 = arith.divf %390, %391 : vector<2x32xf32>
    %393 = vector.extract_strided_slice %386 {offsets = [0, 32], sizes = [2, 32], strides = [1, 1]} : vector<2x128xf32> to vector<2x32xf32>
    %394 = arith.negf %393 : vector<2x32xf32>
    %395 = math.exp %394 : vector<2x32xf32>
    %cst_127 = arith.constant 1.000000e+00 : f32
    %396 = vector.broadcast %cst_127 : f32 to vector<2x32xf32>
    %397 = arith.addf %396, %395 : vector<2x32xf32>
    %398 = arith.divf %396, %397 : vector<2x32xf32>
    %399 = vector.extract_strided_slice %386 {offsets = [0, 64], sizes = [2, 32], strides = [1, 1]} : vector<2x128xf32> to vector<2x32xf32>
    %400 = math.tanh %399 : vector<2x32xf32>
    %401 = vector.extract_strided_slice %386 {offsets = [0, 96], sizes = [2, 32], strides = [1, 1]} : vector<2x128xf32> to vector<2x32xf32>
    %402 = arith.negf %401 : vector<2x32xf32>
    %403 = math.exp %402 : vector<2x32xf32>
    %cst_128 = arith.constant 1.000000e+00 : f32
    %404 = vector.broadcast %cst_128 : f32 to vector<2x32xf32>
    %405 = arith.addf %404, %403 : vector<2x32xf32>
    %406 = arith.divf %404, %405 : vector<2x32xf32>
    %407 = arith.mulf %398, %371 : vector<2x32xf32>
    %408 = arith.mulf %392, %400 : vector<2x32xf32>
    %409 = arith.addf %407, %408 : vector<2x32xf32>
    %410 = math.tanh %409 : vector<2x32xf32>
    %411 = arith.mulf %406, %410 : vector<2x32xf32>
    %412 = arith.index_cast %378 : i32 to index
    %c0_129 = arith.constant 0 : index
    %c0_130 = arith.constant 0 : index
    %413 = vector.load %arg14[%412, %c0_129, %c0_130] : memref<8x2x128xf32, #tpu.memory_space<vmem>>, vector<1x2x128xf32>
    %414 = vector.shape_cast %413 : vector<1x2x128xf32> to vector<2x128xf32>
    %415 = arith.addf %414, %382 : vector<2x128xf32>
    %416 = vector.extract_strided_slice %415 {offsets = [0, 0], sizes = [2, 32], strides = [1, 1]} : vector<2x128xf32> to vector<2x32xf32>
    %417 = arith.negf %416 : vector<2x32xf32>
    %418 = math.exp %417 : vector<2x32xf32>
    %cst_131 = arith.constant 1.000000e+00 : f32
    %419 = vector.broadcast %cst_131 : f32 to vector<2x32xf32>
    %420 = arith.addf %419, %418 : vector<2x32xf32>
    %421 = arith.divf %419, %420 : vector<2x32xf32>
    %422 = vector.extract_strided_slice %415 {offsets = [0, 32], sizes = [2, 32], strides = [1, 1]} : vector<2x128xf32> to vector<2x32xf32>
    %423 = arith.negf %422 : vector<2x32xf32>
    %424 = math.exp %423 : vector<2x32xf32>
    %cst_132 = arith.constant 1.000000e+00 : f32
    %425 = vector.broadcast %cst_132 : f32 to vector<2x32xf32>
    %426 = arith.addf %425, %424 : vector<2x32xf32>
    %427 = arith.divf %425, %426 : vector<2x32xf32>
    %428 = vector.extract_strided_slice %415 {offsets = [0, 64], sizes = [2, 32], strides = [1, 1]} : vector<2x128xf32> to vector<2x32xf32>
    %429 = math.tanh %428 : vector<2x32xf32>
    %430 = vector.extract_strided_slice %415 {offsets = [0, 96], sizes = [2, 32], strides = [1, 1]} : vector<2x128xf32> to vector<2x32xf32>
    %431 = arith.negf %430 : vector<2x32xf32>
    %432 = math.exp %431 : vector<2x32xf32>
    %cst_133 = arith.constant 1.000000e+00 : f32
    %433 = vector.broadcast %cst_133 : f32 to vector<2x32xf32>
    %434 = arith.addf %433, %432 : vector<2x32xf32>
    %435 = arith.divf %433, %434 : vector<2x32xf32>
    %436 = arith.mulf %427, %377 : vector<2x32xf32>
    %437 = arith.mulf %421, %429 : vector<2x32xf32>
    %438 = arith.addf %436, %437 : vector<2x32xf32>
    %439 = math.tanh %438 : vector<2x32xf32>
    %440 = arith.mulf %435, %439 : vector<2x32xf32>
    %441 = vector.broadcast %c3_i32 : i32 to vector<2x1xi32>
    %442 = arith.cmpi slt, %441, %89 : vector<2x1xi32>
    %443 = vector.broadcast %378 : i32 to vector<2x1xi32>
    %444 = arith.cmpi slt, %443, %89 : vector<2x1xi32>
    %cst_134 = arith.constant 0.000000e+00 : f32
    %445 = vector.shape_cast %442 : vector<2x1xi1> to vector<2x1xi1>
    %446 = vector.broadcast %445 : vector<2x1xi1> to vector<2x32xi1>
    %447 = vector.broadcast %cst_134 : f32 to vector<2x32xf32>
    %448 = arith.select %446, %411, %447 : vector<2x32xi1>, vector<2x32xf32>
    %449 = arith.index_cast %c3_i32 : i32 to index
    %c0_135 = arith.constant 0 : index
    %c0_136 = arith.constant 0 : index
    %450 = vector.load %arg15[%449, %c0_135, %c0_136] : memref<8x2x32xf32, #tpu.memory_space<vmem>>, vector<1x2x32xf32>
    %451 = vector.shape_cast %450 : vector<1x2x32xf32> to vector<2x32xf32>
    %452 = vector.shape_cast %448 : vector<2x32xf32> to vector<1x2x32xf32>
    tpu.vector_store %arg15[%449, %c0_135, %c0_136], %452 {strides = array<i32>} : memref<8x2x32xf32, #tpu.memory_space<vmem>>, vector<1x2x32xf32>,
    %cst_137 = arith.constant 0.000000e+00 : f32
    %453 = vector.shape_cast %444 : vector<2x1xi1> to vector<2x1xi1>
    %454 = vector.broadcast %453 : vector<2x1xi1> to vector<2x32xi1>
    %455 = vector.broadcast %cst_137 : f32 to vector<2x32xf32>
    %456 = arith.select %454, %440, %455 : vector<2x32xi1>, vector<2x32xf32>
    %457 = arith.index_cast %378 : i32 to index
    %c0_138 = arith.constant 0 : index
    %c0_139 = arith.constant 0 : index
    %458 = vector.load %arg16[%457, %c0_138, %c0_139] : memref<8x2x32xf32, #tpu.memory_space<vmem>>, vector<1x2x32xf32>
    %459 = vector.shape_cast %458 : vector<1x2x32xf32> to vector<2x32xf32>
    %460 = vector.shape_cast %456 : vector<2x32xf32> to vector<1x2x32xf32>
    tpu.vector_store %arg16[%457, %c0_138, %c0_139], %460 {strides = array<i32>} : memref<8x2x32xf32, #tpu.memory_space<vmem>>, vector<1x2x32xf32>,
    %461 = vector.shape_cast %442 : vector<2x1xi1> to vector<2x1xi1>
    %462 = vector.broadcast %461 : vector<2x1xi1> to vector<2x32xi1>
    %463 = arith.select %462, %411, %368 : vector<2x32xi1>, vector<2x32xf32>
    %464 = vector.shape_cast %442 : vector<2x1xi1> to vector<2x1xi1>
    %465 = vector.broadcast %464 : vector<2x1xi1> to vector<2x32xi1>
    %466 = arith.select %465, %409, %371 : vector<2x32xi1>, vector<2x32xf32>
    %467 = vector.shape_cast %444 : vector<2x1xi1> to vector<2x1xi1>
    %468 = vector.broadcast %467 : vector<2x1xi1> to vector<2x32xi1>
    %469 = arith.select %468, %440, %374 : vector<2x32xi1>, vector<2x32xf32>
    %470 = vector.shape_cast %444 : vector<2x1xi1> to vector<2x1xi1>
    %471 = vector.broadcast %470 : vector<2x1xi1> to vector<2x32xi1>
    %472 = arith.select %471, %438, %377 : vector<2x32xi1>, vector<2x32xf32>
    %c4_i32 = arith.constant 4 : i32
    %c7_i32_140 = arith.constant 7 : i32
    %473 = arith.subi %c7_i32_140, %c4_i32 : i32
    %474 = arith.truncf %463 : vector<2x32xf32> to vector<2x32xbf16>
    %cst_141 = arith.constant dense<0.000000e+00> : vector<2x128xf32>
    %475 = tpu.matmul %474, %90, %cst_141 {dimension_numbers = #tpu.dot_dimension_numbers<[1], [0], [0], [1], [0, 0, 1, 1], [], []>} : vector<2x32xbf16>, vector<32x128xbf16>, vector<2x128xf32> -> vector<2x128xf32>
    %476 = arith.truncf %469 : vector<2x32xf32> to vector<2x32xbf16>
    %cst_142 = arith.constant dense<0.000000e+00> : vector<2x128xf32>
    %477 = tpu.matmul %476, %91, %cst_142 {dimension_numbers = #tpu.dot_dimension_numbers<[1], [0], [0], [1], [0, 0, 1, 1], [], []>} : vector<2x32xbf16>, vector<32x128xbf16>, vector<2x128xf32> -> vector<2x128xf32>
    %478 = arith.index_cast %c4_i32 : i32 to index
    %c0_143 = arith.constant 0 : index
    %c0_144 = arith.constant 0 : index
    %479 = vector.load %arg13[%478, %c0_143, %c0_144] : memref<8x2x128xf32, #tpu.memory_space<vmem>>, vector<1x2x128xf32>
    %480 = vector.shape_cast %479 : vector<1x2x128xf32> to vector<2x128xf32>
    %481 = arith.addf %480, %475 : vector<2x128xf32>
    %482 = vector.extract_strided_slice %481 {offsets = [0, 0], sizes = [2, 32], strides = [1, 1]} : vector<2x128xf32> to vector<2x32xf32>
    %483 = arith.negf %482 : vector<2x32xf32>
    %484 = math.exp %483 : vector<2x32xf32>
    %cst_145 = arith.constant 1.000000e+00 : f32
    %485 = vector.broadcast %cst_145 : f32 to vector<2x32xf32>
    %486 = arith.addf %485, %484 : vector<2x32xf32>
    %487 = arith.divf %485, %486 : vector<2x32xf32>
    %488 = vector.extract_strided_slice %481 {offsets = [0, 32], sizes = [2, 32], strides = [1, 1]} : vector<2x128xf32> to vector<2x32xf32>
    %489 = arith.negf %488 : vector<2x32xf32>
    %490 = math.exp %489 : vector<2x32xf32>
    %cst_146 = arith.constant 1.000000e+00 : f32
    %491 = vector.broadcast %cst_146 : f32 to vector<2x32xf32>
    %492 = arith.addf %491, %490 : vector<2x32xf32>
    %493 = arith.divf %491, %492 : vector<2x32xf32>
    %494 = vector.extract_strided_slice %481 {offsets = [0, 64], sizes = [2, 32], strides = [1, 1]} : vector<2x128xf32> to vector<2x32xf32>
    %495 = math.tanh %494 : vector<2x32xf32>
    %496 = vector.extract_strided_slice %481 {offsets = [0, 96], sizes = [2, 32], strides = [1, 1]} : vector<2x128xf32> to vector<2x32xf32>
    %497 = arith.negf %496 : vector<2x32xf32>
    %498 = math.exp %497 : vector<2x32xf32>
    %cst_147 = arith.constant 1.000000e+00 : f32
    %499 = vector.broadcast %cst_147 : f32 to vector<2x32xf32>
    %500 = arith.addf %499, %498 : vector<2x32xf32>
    %501 = arith.divf %499, %500 : vector<2x32xf32>
    %502 = arith.mulf %493, %466 : vector<2x32xf32>
    %503 = arith.mulf %487, %495 : vector<2x32xf32>
    %504 = arith.addf %502, %503 : vector<2x32xf32>
    %505 = math.tanh %504 : vector<2x32xf32>
    %506 = arith.mulf %501, %505 : vector<2x32xf32>
    %507 = arith.index_cast %473 : i32 to index
    %c0_148 = arith.constant 0 : index
    %c0_149 = arith.constant 0 : index
    %508 = vector.load %arg14[%507, %c0_148, %c0_149] : memref<8x2x128xf32, #tpu.memory_space<vmem>>, vector<1x2x128xf32>
    %509 = vector.shape_cast %508 : vector<1x2x128xf32> to vector<2x128xf32>
    %510 = arith.addf %509, %477 : vector<2x128xf32>
    %511 = vector.extract_strided_slice %510 {offsets = [0, 0], sizes = [2, 32], strides = [1, 1]} : vector<2x128xf32> to vector<2x32xf32>
    %512 = arith.negf %511 : vector<2x32xf32>
    %513 = math.exp %512 : vector<2x32xf32>
    %cst_150 = arith.constant 1.000000e+00 : f32
    %514 = vector.broadcast %cst_150 : f32 to vector<2x32xf32>
    %515 = arith.addf %514, %513 : vector<2x32xf32>
    %516 = arith.divf %514, %515 : vector<2x32xf32>
    %517 = vector.extract_strided_slice %510 {offsets = [0, 32], sizes = [2, 32], strides = [1, 1]} : vector<2x128xf32> to vector<2x32xf32>
    %518 = arith.negf %517 : vector<2x32xf32>
    %519 = math.exp %518 : vector<2x32xf32>
    %cst_151 = arith.constant 1.000000e+00 : f32
    %520 = vector.broadcast %cst_151 : f32 to vector<2x32xf32>
    %521 = arith.addf %520, %519 : vector<2x32xf32>
    %522 = arith.divf %520, %521 : vector<2x32xf32>
    %523 = vector.extract_strided_slice %510 {offsets = [0, 64], sizes = [2, 32], strides = [1, 1]} : vector<2x128xf32> to vector<2x32xf32>
    %524 = math.tanh %523 : vector<2x32xf32>
    %525 = vector.extract_strided_slice %510 {offsets = [0, 96], sizes = [2, 32], strides = [1, 1]} : vector<2x128xf32> to vector<2x32xf32>
    %526 = arith.negf %525 : vector<2x32xf32>
    %527 = math.exp %526 : vector<2x32xf32>
    %cst_152 = arith.constant 1.000000e+00 : f32
    %528 = vector.broadcast %cst_152 : f32 to vector<2x32xf32>
    %529 = arith.addf %528, %527 : vector<2x32xf32>
    %530 = arith.divf %528, %529 : vector<2x32xf32>
    %531 = arith.mulf %522, %472 : vector<2x32xf32>
    %532 = arith.mulf %516, %524 : vector<2x32xf32>
    %533 = arith.addf %531, %532 : vector<2x32xf32>
    %534 = math.tanh %533 : vector<2x32xf32>
    %535 = arith.mulf %530, %534 : vector<2x32xf32>
    %536 = vector.broadcast %c4_i32 : i32 to vector<2x1xi32>
    %537 = arith.cmpi slt, %536, %89 : vector<2x1xi32>
    %538 = vector.broadcast %473 : i32 to vector<2x1xi32>
    %539 = arith.cmpi slt, %538, %89 : vector<2x1xi32>
    %cst_153 = arith.constant 0.000000e+00 : f32
    %540 = vector.shape_cast %537 : vector<2x1xi1> to vector<2x1xi1>
    %541 = vector.broadcast %540 : vector<2x1xi1> to vector<2x32xi1>
    %542 = vector.broadcast %cst_153 : f32 to vector<2x32xf32>
    %543 = arith.select %541, %506, %542 : vector<2x32xi1>, vector<2x32xf32>
    %544 = arith.index_cast %c4_i32 : i32 to index
    %c0_154 = arith.constant 0 : index
    %c0_155 = arith.constant 0 : index
    %545 = vector.load %arg15[%544, %c0_154, %c0_155] : memref<8x2x32xf32, #tpu.memory_space<vmem>>, vector<1x2x32xf32>
    %546 = vector.shape_cast %545 : vector<1x2x32xf32> to vector<2x32xf32>
    %547 = vector.shape_cast %543 : vector<2x32xf32> to vector<1x2x32xf32>
    tpu.vector_store %arg15[%544, %c0_154, %c0_155], %547 {strides = array<i32>} : memref<8x2x32xf32, #tpu.memory_space<vmem>>, vector<1x2x32xf32>,
    %cst_156 = arith.constant 0.000000e+00 : f32
    %548 = vector.shape_cast %539 : vector<2x1xi1> to vector<2x1xi1>
    %549 = vector.broadcast %548 : vector<2x1xi1> to vector<2x32xi1>
    %550 = vector.broadcast %cst_156 : f32 to vector<2x32xf32>
    %551 = arith.select %549, %535, %550 : vector<2x32xi1>, vector<2x32xf32>
    %552 = arith.index_cast %473 : i32 to index
    %c0_157 = arith.constant 0 : index
    %c0_158 = arith.constant 0 : index
    %553 = vector.load %arg16[%552, %c0_157, %c0_158] : memref<8x2x32xf32, #tpu.memory_space<vmem>>, vector<1x2x32xf32>
    %554 = vector.shape_cast %553 : vector<1x2x32xf32> to vector<2x32xf32>
    %555 = vector.shape_cast %551 : vector<2x32xf32> to vector<1x2x32xf32>
    tpu.vector_store %arg16[%552, %c0_157, %c0_158], %555 {strides = array<i32>} : memref<8x2x32xf32, #tpu.memory_space<vmem>>, vector<1x2x32xf32>,
    %556 = vector.shape_cast %537 : vector<2x1xi1> to vector<2x1xi1>
    %557 = vector.broadcast %556 : vector<2x1xi1> to vector<2x32xi1>
    %558 = arith.select %557, %506, %463 : vector<2x32xi1>, vector<2x32xf32>
    %559 = vector.shape_cast %537 : vector<2x1xi1> to vector<2x1xi1>
    %560 = vector.broadcast %559 : vector<2x1xi1> to vector<2x32xi1>
    %561 = arith.select %560, %504, %466 : vector<2x32xi1>, vector<2x32xf32>
    %562 = vector.shape_cast %539 : vector<2x1xi1> to vector<2x1xi1>
    %563 = vector.broadcast %562 : vector<2x1xi1> to vector<2x32xi1>
    %564 = arith.select %563, %535, %469 : vector<2x32xi1>, vector<2x32xf32>
    %565 = vector.shape_cast %539 : vector<2x1xi1> to vector<2x1xi1>
    %566 = vector.broadcast %565 : vector<2x1xi1> to vector<2x32xi1>
    %567 = arith.select %566, %533, %472 : vector<2x32xi1>, vector<2x32xf32>
    %c5_i32 = arith.constant 5 : i32
    %c7_i32_159 = arith.constant 7 : i32
    %568 = arith.subi %c7_i32_159, %c5_i32 : i32
    %569 = arith.truncf %558 : vector<2x32xf32> to vector<2x32xbf16>
    %cst_160 = arith.constant dense<0.000000e+00> : vector<2x128xf32>
    %570 = tpu.matmul %569, %90, %cst_160 {dimension_numbers = #tpu.dot_dimension_numbers<[1], [0], [0], [1], [0, 0, 1, 1], [], []>} : vector<2x32xbf16>, vector<32x128xbf16>, vector<2x128xf32> -> vector<2x128xf32>
    %571 = arith.truncf %564 : vector<2x32xf32> to vector<2x32xbf16>
    %cst_161 = arith.constant dense<0.000000e+00> : vector<2x128xf32>
    %572 = tpu.matmul %571, %91, %cst_161 {dimension_numbers = #tpu.dot_dimension_numbers<[1], [0], [0], [1], [0, 0, 1, 1], [], []>} : vector<2x32xbf16>, vector<32x128xbf16>, vector<2x128xf32> -> vector<2x128xf32>
    %573 = arith.index_cast %c5_i32 : i32 to index
    %c0_162 = arith.constant 0 : index
    %c0_163 = arith.constant 0 : index
    %574 = vector.load %arg13[%573, %c0_162, %c0_163] : memref<8x2x128xf32, #tpu.memory_space<vmem>>, vector<1x2x128xf32>
    %575 = vector.shape_cast %574 : vector<1x2x128xf32> to vector<2x128xf32>
    %576 = arith.addf %575, %570 : vector<2x128xf32>
    %577 = vector.extract_strided_slice %576 {offsets = [0, 0], sizes = [2, 32], strides = [1, 1]} : vector<2x128xf32> to vector<2x32xf32>
    %578 = arith.negf %577 : vector<2x32xf32>
    %579 = math.exp %578 : vector<2x32xf32>
    %cst_164 = arith.constant 1.000000e+00 : f32
    %580 = vector.broadcast %cst_164 : f32 to vector<2x32xf32>
    %581 = arith.addf %580, %579 : vector<2x32xf32>
    %582 = arith.divf %580, %581 : vector<2x32xf32>
    %583 = vector.extract_strided_slice %576 {offsets = [0, 32], sizes = [2, 32], strides = [1, 1]} : vector<2x128xf32> to vector<2x32xf32>
    %584 = arith.negf %583 : vector<2x32xf32>
    %585 = math.exp %584 : vector<2x32xf32>
    %cst_165 = arith.constant 1.000000e+00 : f32
    %586 = vector.broadcast %cst_165 : f32 to vector<2x32xf32>
    %587 = arith.addf %586, %585 : vector<2x32xf32>
    %588 = arith.divf %586, %587 : vector<2x32xf32>
    %589 = vector.extract_strided_slice %576 {offsets = [0, 64], sizes = [2, 32], strides = [1, 1]} : vector<2x128xf32> to vector<2x32xf32>
    %590 = math.tanh %589 : vector<2x32xf32>
    %591 = vector.extract_strided_slice %576 {offsets = [0, 96], sizes = [2, 32], strides = [1, 1]} : vector<2x128xf32> to vector<2x32xf32>
    %592 = arith.negf %591 : vector<2x32xf32>
    %593 = math.exp %592 : vector<2x32xf32>
    %cst_166 = arith.constant 1.000000e+00 : f32
    %594 = vector.broadcast %cst_166 : f32 to vector<2x32xf32>
    %595 = arith.addf %594, %593 : vector<2x32xf32>
    %596 = arith.divf %594, %595 : vector<2x32xf32>
    %597 = arith.mulf %588, %561 : vector<2x32xf32>
    %598 = arith.mulf %582, %590 : vector<2x32xf32>
    %599 = arith.addf %597, %598 : vector<2x32xf32>
    %600 = math.tanh %599 : vector<2x32xf32>
    %601 = arith.mulf %596, %600 : vector<2x32xf32>
    %602 = arith.index_cast %568 : i32 to index
    %c0_167 = arith.constant 0 : index
    %c0_168 = arith.constant 0 : index
    %603 = vector.load %arg14[%602, %c0_167, %c0_168] : memref<8x2x128xf32, #tpu.memory_space<vmem>>, vector<1x2x128xf32>
    %604 = vector.shape_cast %603 : vector<1x2x128xf32> to vector<2x128xf32>
    %605 = arith.addf %604, %572 : vector<2x128xf32>
    %606 = vector.extract_strided_slice %605 {offsets = [0, 0], sizes = [2, 32], strides = [1, 1]} : vector<2x128xf32> to vector<2x32xf32>
    %607 = arith.negf %606 : vector<2x32xf32>
    %608 = math.exp %607 : vector<2x32xf32>
    %cst_169 = arith.constant 1.000000e+00 : f32
    %609 = vector.broadcast %cst_169 : f32 to vector<2x32xf32>
    %610 = arith.addf %609, %608 : vector<2x32xf32>
    %611 = arith.divf %609, %610 : vector<2x32xf32>
    %612 = vector.extract_strided_slice %605 {offsets = [0, 32], sizes = [2, 32], strides = [1, 1]} : vector<2x128xf32> to vector<2x32xf32>
    %613 = arith.negf %612 : vector<2x32xf32>
    %614 = math.exp %613 : vector<2x32xf32>
    %cst_170 = arith.constant 1.000000e+00 : f32
    %615 = vector.broadcast %cst_170 : f32 to vector<2x32xf32>
    %616 = arith.addf %615, %614 : vector<2x32xf32>
    %617 = arith.divf %615, %616 : vector<2x32xf32>
    %618 = vector.extract_strided_slice %605 {offsets = [0, 64], sizes = [2, 32], strides = [1, 1]} : vector<2x128xf32> to vector<2x32xf32>
    %619 = math.tanh %618 : vector<2x32xf32>
    %620 = vector.extract_strided_slice %605 {offsets = [0, 96], sizes = [2, 32], strides = [1, 1]} : vector<2x128xf32> to vector<2x32xf32>
    %621 = arith.negf %620 : vector<2x32xf32>
    %622 = math.exp %621 : vector<2x32xf32>
    %cst_171 = arith.constant 1.000000e+00 : f32
    %623 = vector.broadcast %cst_171 : f32 to vector<2x32xf32>
    %624 = arith.addf %623, %622 : vector<2x32xf32>
    %625 = arith.divf %623, %624 : vector<2x32xf32>
    %626 = arith.mulf %617, %567 : vector<2x32xf32>
    %627 = arith.mulf %611, %619 : vector<2x32xf32>
    %628 = arith.addf %626, %627 : vector<2x32xf32>
    %629 = math.tanh %628 : vector<2x32xf32>
    %630 = arith.mulf %625, %629 : vector<2x32xf32>
    %631 = vector.broadcast %c5_i32 : i32 to vector<2x1xi32>
    %632 = arith.cmpi slt, %631, %89 : vector<2x1xi32>
    %633 = vector.broadcast %568 : i32 to vector<2x1xi32>
    %634 = arith.cmpi slt, %633, %89 : vector<2x1xi32>
    %cst_172 = arith.constant 0.000000e+00 : f32
    %635 = vector.shape_cast %632 : vector<2x1xi1> to vector<2x1xi1>
    %636 = vector.broadcast %635 : vector<2x1xi1> to vector<2x32xi1>
    %637 = vector.broadcast %cst_172 : f32 to vector<2x32xf32>
    %638 = arith.select %636, %601, %637 : vector<2x32xi1>, vector<2x32xf32>
    %639 = arith.index_cast %c5_i32 : i32 to index
    %c0_173 = arith.constant 0 : index
    %c0_174 = arith.constant 0 : index
    %640 = vector.load %arg15[%639, %c0_173, %c0_174] : memref<8x2x32xf32, #tpu.memory_space<vmem>>, vector<1x2x32xf32>
    %641 = vector.shape_cast %640 : vector<1x2x32xf32> to vector<2x32xf32>
    %642 = vector.shape_cast %638 : vector<2x32xf32> to vector<1x2x32xf32>
    tpu.vector_store %arg15[%639, %c0_173, %c0_174], %642 {strides = array<i32>} : memref<8x2x32xf32, #tpu.memory_space<vmem>>, vector<1x2x32xf32>,
    %cst_175 = arith.constant 0.000000e+00 : f32
    %643 = vector.shape_cast %634 : vector<2x1xi1> to vector<2x1xi1>
    %644 = vector.broadcast %643 : vector<2x1xi1> to vector<2x32xi1>
    %645 = vector.broadcast %cst_175 : f32 to vector<2x32xf32>
    %646 = arith.select %644, %630, %645 : vector<2x32xi1>, vector<2x32xf32>
    %647 = arith.index_cast %568 : i32 to index
    %c0_176 = arith.constant 0 : index
    %c0_177 = arith.constant 0 : index
    %648 = vector.load %arg16[%647, %c0_176, %c0_177] : memref<8x2x32xf32, #tpu.memory_space<vmem>>, vector<1x2x32xf32>
    %649 = vector.shape_cast %648 : vector<1x2x32xf32> to vector<2x32xf32>
    %650 = vector.shape_cast %646 : vector<2x32xf32> to vector<1x2x32xf32>
    tpu.vector_store %arg16[%647, %c0_176, %c0_177], %650 {strides = array<i32>} : memref<8x2x32xf32, #tpu.memory_space<vmem>>, vector<1x2x32xf32>,
    %651 = vector.shape_cast %632 : vector<2x1xi1> to vector<2x1xi1>
    %652 = vector.broadcast %651 : vector<2x1xi1> to vector<2x32xi1>
    %653 = arith.select %652, %601, %558 : vector<2x32xi1>, vector<2x32xf32>
    %654 = vector.shape_cast %632 : vector<2x1xi1> to vector<2x1xi1>
    %655 = vector.broadcast %654 : vector<2x1xi1> to vector<2x32xi1>
    %656 = arith.select %655, %599, %561 : vector<2x32xi1>, vector<2x32xf32>
    %657 = vector.shape_cast %634 : vector<2x1xi1> to vector<2x1xi1>
    %658 = vector.broadcast %657 : vector<2x1xi1> to vector<2x32xi1>
    %659 = arith.select %658, %630, %564 : vector<2x32xi1>, vector<2x32xf32>
    %660 = vector.shape_cast %634 : vector<2x1xi1> to vector<2x1xi1>
    %661 = vector.broadcast %660 : vector<2x1xi1> to vector<2x32xi1>
    %662 = arith.select %661, %628, %567 : vector<2x32xi1>, vector<2x32xf32>
    %c6_i32 = arith.constant 6 : i32
    %c7_i32_178 = arith.constant 7 : i32
    %663 = arith.subi %c7_i32_178, %c6_i32 : i32
    %664 = arith.truncf %653 : vector<2x32xf32> to vector<2x32xbf16>
    %cst_179 = arith.constant dense<0.000000e+00> : vector<2x128xf32>
    %665 = tpu.matmul %664, %90, %cst_179 {dimension_numbers = #tpu.dot_dimension_numbers<[1], [0], [0], [1], [0, 0, 1, 1], [], []>} : vector<2x32xbf16>, vector<32x128xbf16>, vector<2x128xf32> -> vector<2x128xf32>
    %666 = arith.truncf %659 : vector<2x32xf32> to vector<2x32xbf16>
    %cst_180 = arith.constant dense<0.000000e+00> : vector<2x128xf32>
    %667 = tpu.matmul %666, %91, %cst_180 {dimension_numbers = #tpu.dot_dimension_numbers<[1], [0], [0], [1], [0, 0, 1, 1], [], []>} : vector<2x32xbf16>, vector<32x128xbf16>, vector<2x128xf32> -> vector<2x128xf32>
    %668 = arith.index_cast %c6_i32 : i32 to index
    %c0_181 = arith.constant 0 : index
    %c0_182 = arith.constant 0 : index
    %669 = vector.load %arg13[%668, %c0_181, %c0_182] : memref<8x2x128xf32, #tpu.memory_space<vmem>>, vector<1x2x128xf32>
    %670 = vector.shape_cast %669 : vector<1x2x128xf32> to vector<2x128xf32>
    %671 = arith.addf %670, %665 : vector<2x128xf32>
    %672 = vector.extract_strided_slice %671 {offsets = [0, 0], sizes = [2, 32], strides = [1, 1]} : vector<2x128xf32> to vector<2x32xf32>
    %673 = arith.negf %672 : vector<2x32xf32>
    %674 = math.exp %673 : vector<2x32xf32>
    %cst_183 = arith.constant 1.000000e+00 : f32
    %675 = vector.broadcast %cst_183 : f32 to vector<2x32xf32>
    %676 = arith.addf %675, %674 : vector<2x32xf32>
    %677 = arith.divf %675, %676 : vector<2x32xf32>
    %678 = vector.extract_strided_slice %671 {offsets = [0, 32], sizes = [2, 32], strides = [1, 1]} : vector<2x128xf32> to vector<2x32xf32>
    %679 = arith.negf %678 : vector<2x32xf32>
    %680 = math.exp %679 : vector<2x32xf32>
    %cst_184 = arith.constant 1.000000e+00 : f32
    %681 = vector.broadcast %cst_184 : f32 to vector<2x32xf32>
    %682 = arith.addf %681, %680 : vector<2x32xf32>
    %683 = arith.divf %681, %682 : vector<2x32xf32>
    %684 = vector.extract_strided_slice %671 {offsets = [0, 64], sizes = [2, 32], strides = [1, 1]} : vector<2x128xf32> to vector<2x32xf32>
    %685 = math.tanh %684 : vector<2x32xf32>
    %686 = vector.extract_strided_slice %671 {offsets = [0, 96], sizes = [2, 32], strides = [1, 1]} : vector<2x128xf32> to vector<2x32xf32>
    %687 = arith.negf %686 : vector<2x32xf32>
    %688 = math.exp %687 : vector<2x32xf32>
    %cst_185 = arith.constant 1.000000e+00 : f32
    %689 = vector.broadcast %cst_185 : f32 to vector<2x32xf32>
    %690 = arith.addf %689, %688 : vector<2x32xf32>
    %691 = arith.divf %689, %690 : vector<2x32xf32>
    %692 = arith.mulf %683, %656 : vector<2x32xf32>
    %693 = arith.mulf %677, %685 : vector<2x32xf32>
    %694 = arith.addf %692, %693 : vector<2x32xf32>
    %695 = math.tanh %694 : vector<2x32xf32>
    %696 = arith.mulf %691, %695 : vector<2x32xf32>
    %697 = arith.index_cast %663 : i32 to index
    %c0_186 = arith.constant 0 : index
    %c0_187 = arith.constant 0 : index
    %698 = vector.load %arg14[%697, %c0_186, %c0_187] : memref<8x2x128xf32, #tpu.memory_space<vmem>>, vector<1x2x128xf32>
    %699 = vector.shape_cast %698 : vector<1x2x128xf32> to vector<2x128xf32>
    %700 = arith.addf %699, %667 : vector<2x128xf32>
    %701 = vector.extract_strided_slice %700 {offsets = [0, 0], sizes = [2, 32], strides = [1, 1]} : vector<2x128xf32> to vector<2x32xf32>
    %702 = arith.negf %701 : vector<2x32xf32>
    %703 = math.exp %702 : vector<2x32xf32>
    %cst_188 = arith.constant 1.000000e+00 : f32
    %704 = vector.broadcast %cst_188 : f32 to vector<2x32xf32>
    %705 = arith.addf %704, %703 : vector<2x32xf32>
    %706 = arith.divf %704, %705 : vector<2x32xf32>
    %707 = vector.extract_strided_slice %700 {offsets = [0, 32], sizes = [2, 32], strides = [1, 1]} : vector<2x128xf32> to vector<2x32xf32>
    %708 = arith.negf %707 : vector<2x32xf32>
    %709 = math.exp %708 : vector<2x32xf32>
    %cst_189 = arith.constant 1.000000e+00 : f32
    %710 = vector.broadcast %cst_189 : f32 to vector<2x32xf32>
    %711 = arith.addf %710, %709 : vector<2x32xf32>
    %712 = arith.divf %710, %711 : vector<2x32xf32>
    %713 = vector.extract_strided_slice %700 {offsets = [0, 64], sizes = [2, 32], strides = [1, 1]} : vector<2x128xf32> to vector<2x32xf32>
    %714 = math.tanh %713 : vector<2x32xf32>
    %715 = vector.extract_strided_slice %700 {offsets = [0, 96], sizes = [2, 32], strides = [1, 1]} : vector<2x128xf32> to vector<2x32xf32>
    %716 = arith.negf %715 : vector<2x32xf32>
    %717 = math.exp %716 : vector<2x32xf32>
    %cst_190 = arith.constant 1.000000e+00 : f32
    %718 = vector.broadcast %cst_190 : f32 to vector<2x32xf32>
    %719 = arith.addf %718, %717 : vector<2x32xf32>
    %720 = arith.divf %718, %719 : vector<2x32xf32>
    %721 = arith.mulf %712, %662 : vector<2x32xf32>
    %722 = arith.mulf %706, %714 : vector<2x32xf32>
    %723 = arith.addf %721, %722 : vector<2x32xf32>
    %724 = math.tanh %723 : vector<2x32xf32>
    %725 = arith.mulf %720, %724 : vector<2x32xf32>
    %726 = vector.broadcast %c6_i32 : i32 to vector<2x1xi32>
    %727 = arith.cmpi slt, %726, %89 : vector<2x1xi32>
    %728 = vector.broadcast %663 : i32 to vector<2x1xi32>
    %729 = arith.cmpi slt, %728, %89 : vector<2x1xi32>
    %cst_191 = arith.constant 0.000000e+00 : f32
    %730 = vector.shape_cast %727 : vector<2x1xi1> to vector<2x1xi1>
    %731 = vector.broadcast %730 : vector<2x1xi1> to vector<2x32xi1>
    %732 = vector.broadcast %cst_191 : f32 to vector<2x32xf32>
    %733 = arith.select %731, %696, %732 : vector<2x32xi1>, vector<2x32xf32>
    %734 = arith.index_cast %c6_i32 : i32 to index
    %c0_192 = arith.constant 0 : index
    %c0_193 = arith.constant 0 : index
    %735 = vector.load %arg15[%734, %c0_192, %c0_193] : memref<8x2x32xf32, #tpu.memory_space<vmem>>, vector<1x2x32xf32>
    %736 = vector.shape_cast %735 : vector<1x2x32xf32> to vector<2x32xf32>
    %737 = vector.shape_cast %733 : vector<2x32xf32> to vector<1x2x32xf32>
    tpu.vector_store %arg15[%734, %c0_192, %c0_193], %737 {strides = array<i32>} : memref<8x2x32xf32, #tpu.memory_space<vmem>>, vector<1x2x32xf32>,
    %cst_194 = arith.constant 0.000000e+00 : f32
    %738 = vector.shape_cast %729 : vector<2x1xi1> to vector<2x1xi1>
    %739 = vector.broadcast %738 : vector<2x1xi1> to vector<2x32xi1>
    %740 = vector.broadcast %cst_194 : f32 to vector<2x32xf32>
    %741 = arith.select %739, %725, %740 : vector<2x32xi1>, vector<2x32xf32>
    %742 = arith.index_cast %663 : i32 to index
    %c0_195 = arith.constant 0 : index
    %c0_196 = arith.constant 0 : index
    %743 = vector.load %arg16[%742, %c0_195, %c0_196] : memref<8x2x32xf32, #tpu.memory_space<vmem>>, vector<1x2x32xf32>
    %744 = vector.shape_cast %743 : vector<1x2x32xf32> to vector<2x32xf32>
    %745 = vector.shape_cast %741 : vector<2x32xf32> to vector<1x2x32xf32>
    tpu.vector_store %arg16[%742, %c0_195, %c0_196], %745 {strides = array<i32>} : memref<8x2x32xf32, #tpu.memory_space<vmem>>, vector<1x2x32xf32>,
    %746 = vector.shape_cast %727 : vector<2x1xi1> to vector<2x1xi1>
    %747 = vector.broadcast %746 : vector<2x1xi1> to vector<2x32xi1>
    %748 = arith.select %747, %696, %653 : vector<2x32xi1>, vector<2x32xf32>
    %749 = vector.shape_cast %727 : vector<2x1xi1> to vector<2x1xi1>
    %750 = vector.broadcast %749 : vector<2x1xi1> to vector<2x32xi1>
    %751 = arith.select %750, %694, %656 : vector<2x32xi1>, vector<2x32xf32>
    %752 = vector.shape_cast %729 : vector<2x1xi1> to vector<2x1xi1>
    %753 = vector.broadcast %752 : vector<2x1xi1> to vector<2x32xi1>
    %754 = arith.select %753, %725, %659 : vector<2x32xi1>, vector<2x32xf32>
    %755 = vector.shape_cast %729 : vector<2x1xi1> to vector<2x1xi1>
    %756 = vector.broadcast %755 : vector<2x1xi1> to vector<2x32xi1>
    %757 = arith.select %756, %723, %662 : vector<2x32xi1>, vector<2x32xf32>
    %c7_i32_197 = arith.constant 7 : i32
    %c7_i32_198 = arith.constant 7 : i32
    %758 = arith.subi %c7_i32_198, %c7_i32_197 : i32
    %759 = arith.truncf %748 : vector<2x32xf32> to vector<2x32xbf16>
    %cst_199 = arith.constant dense<0.000000e+00> : vector<2x128xf32>
    %760 = tpu.matmul %759, %90, %cst_199 {dimension_numbers = #tpu.dot_dimension_numbers<[1], [0], [0], [1], [0, 0, 1, 1], [], []>} : vector<2x32xbf16>, vector<32x128xbf16>, vector<2x128xf32> -> vector<2x128xf32>
    %761 = arith.truncf %754 : vector<2x32xf32> to vector<2x32xbf16>
    %cst_200 = arith.constant dense<0.000000e+00> : vector<2x128xf32>
    %762 = tpu.matmul %761, %91, %cst_200 {dimension_numbers = #tpu.dot_dimension_numbers<[1], [0], [0], [1], [0, 0, 1, 1], [], []>} : vector<2x32xbf16>, vector<32x128xbf16>, vector<2x128xf32> -> vector<2x128xf32>
    %763 = arith.index_cast %c7_i32_197 : i32 to index
    %c0_201 = arith.constant 0 : index
    %c0_202 = arith.constant 0 : index
    %764 = vector.load %arg13[%763, %c0_201, %c0_202] : memref<8x2x128xf32, #tpu.memory_space<vmem>>, vector<1x2x128xf32>
    %765 = vector.shape_cast %764 : vector<1x2x128xf32> to vector<2x128xf32>
    %766 = arith.addf %765, %760 : vector<2x128xf32>
    %767 = vector.extract_strided_slice %766 {offsets = [0, 0], sizes = [2, 32], strides = [1, 1]} : vector<2x128xf32> to vector<2x32xf32>
    %768 = arith.negf %767 : vector<2x32xf32>
    %769 = math.exp %768 : vector<2x32xf32>
    %cst_203 = arith.constant 1.000000e+00 : f32
    %770 = vector.broadcast %cst_203 : f32 to vector<2x32xf32>
    %771 = arith.addf %770, %769 : vector<2x32xf32>
    %772 = arith.divf %770, %771 : vector<2x32xf32>
    %773 = vector.extract_strided_slice %766 {offsets = [0, 32], sizes = [2, 32], strides = [1, 1]} : vector<2x128xf32> to vector<2x32xf32>
    %774 = arith.negf %773 : vector<2x32xf32>
    %775 = math.exp %774 : vector<2x32xf32>
    %cst_204 = arith.constant 1.000000e+00 : f32
    %776 = vector.broadcast %cst_204 : f32 to vector<2x32xf32>
    %777 = arith.addf %776, %775 : vector<2x32xf32>
    %778 = arith.divf %776, %777 : vector<2x32xf32>
    %779 = vector.extract_strided_slice %766 {offsets = [0, 64], sizes = [2, 32], strides = [1, 1]} : vector<2x128xf32> to vector<2x32xf32>
    %780 = math.tanh %779 : vector<2x32xf32>
    %781 = vector.extract_strided_slice %766 {offsets = [0, 96], sizes = [2, 32], strides = [1, 1]} : vector<2x128xf32> to vector<2x32xf32>
    %782 = arith.negf %781 : vector<2x32xf32>
    %783 = math.exp %782 : vector<2x32xf32>
    %cst_205 = arith.constant 1.000000e+00 : f32
    %784 = vector.broadcast %cst_205 : f32 to vector<2x32xf32>
    %785 = arith.addf %784, %783 : vector<2x32xf32>
    %786 = arith.divf %784, %785 : vector<2x32xf32>
    %787 = arith.mulf %778, %751 : vector<2x32xf32>
    %788 = arith.mulf %772, %780 : vector<2x32xf32>
    %789 = arith.addf %787, %788 : vector<2x32xf32>
    %790 = math.tanh %789 : vector<2x32xf32>
    %791 = arith.mulf %786, %790 : vector<2x32xf32>
    %792 = arith.index_cast %758 : i32 to index
    %c0_206 = arith.constant 0 : index
    %c0_207 = arith.constant 0 : index
    %793 = vector.load %arg14[%792, %c0_206, %c0_207] : memref<8x2x128xf32, #tpu.memory_space<vmem>>, vector<1x2x128xf32>
    %794 = vector.shape_cast %793 : vector<1x2x128xf32> to vector<2x128xf32>
    %795 = arith.addf %794, %762 : vector<2x128xf32>
    %796 = vector.extract_strided_slice %795 {offsets = [0, 0], sizes = [2, 32], strides = [1, 1]} : vector<2x128xf32> to vector<2x32xf32>
    %797 = arith.negf %796 : vector<2x32xf32>
    %798 = math.exp %797 : vector<2x32xf32>
    %cst_208 = arith.constant 1.000000e+00 : f32
    %799 = vector.broadcast %cst_208 : f32 to vector<2x32xf32>
    %800 = arith.addf %799, %798 : vector<2x32xf32>
    %801 = arith.divf %799, %800 : vector<2x32xf32>
    %802 = vector.extract_strided_slice %795 {offsets = [0, 32], sizes = [2, 32], strides = [1, 1]} : vector<2x128xf32> to vector<2x32xf32>
    %803 = arith.negf %802 : vector<2x32xf32>
    %804 = math.exp %803 : vector<2x32xf32>
    %cst_209 = arith.constant 1.000000e+00 : f32
    %805 = vector.broadcast %cst_209 : f32 to vector<2x32xf32>
    %806 = arith.addf %805, %804 : vector<2x32xf32>
    %807 = arith.divf %805, %806 : vector<2x32xf32>
    %808 = vector.extract_strided_slice %795 {offsets = [0, 64], sizes = [2, 32], strides = [1, 1]} : vector<2x128xf32> to vector<2x32xf32>
    %809 = math.tanh %808 : vector<2x32xf32>
    %810 = vector.extract_strided_slice %795 {offsets = [0, 96], sizes = [2, 32], strides = [1, 1]} : vector<2x128xf32> to vector<2x32xf32>
    %811 = arith.negf %810 : vector<2x32xf32>
    %812 = math.exp %811 : vector<2x32xf32>
    %cst_210 = arith.constant 1.000000e+00 : f32
    %813 = vector.broadcast %cst_210 : f32 to vector<2x32xf32>
    %814 = arith.addf %813, %812 : vector<2x32xf32>
    %815 = arith.divf %813, %814 : vector<2x32xf32>
    %816 = arith.mulf %807, %757 : vector<2x32xf32>
    %817 = arith.mulf %801, %809 : vector<2x32xf32>
    %818 = arith.addf %816, %817 : vector<2x32xf32>
    %819 = math.tanh %818 : vector<2x32xf32>
    %820 = arith.mulf %815, %819 : vector<2x32xf32>
    %821 = vector.broadcast %c7_i32_197 : i32 to vector<2x1xi32>
    %822 = arith.cmpi slt, %821, %89 : vector<2x1xi32>
    %823 = vector.broadcast %758 : i32 to vector<2x1xi32>
    %824 = arith.cmpi slt, %823, %89 : vector<2x1xi32>
    %cst_211 = arith.constant 0.000000e+00 : f32
    %825 = vector.shape_cast %822 : vector<2x1xi1> to vector<2x1xi1>
    %826 = vector.broadcast %825 : vector<2x1xi1> to vector<2x32xi1>
    %827 = vector.broadcast %cst_211 : f32 to vector<2x32xf32>
    %828 = arith.select %826, %791, %827 : vector<2x32xi1>, vector<2x32xf32>
    %829 = arith.index_cast %c7_i32_197 : i32 to index
    %c0_212 = arith.constant 0 : index
    %c0_213 = arith.constant 0 : index
    %830 = vector.load %arg15[%829, %c0_212, %c0_213] : memref<8x2x32xf32, #tpu.memory_space<vmem>>, vector<1x2x32xf32>
    %831 = vector.shape_cast %830 : vector<1x2x32xf32> to vector<2x32xf32>
    %832 = vector.shape_cast %828 : vector<2x32xf32> to vector<1x2x32xf32>
    tpu.vector_store %arg15[%829, %c0_212, %c0_213], %832 {strides = array<i32>} : memref<8x2x32xf32, #tpu.memory_space<vmem>>, vector<1x2x32xf32>,
    %cst_214 = arith.constant 0.000000e+00 : f32
    %833 = vector.shape_cast %824 : vector<2x1xi1> to vector<2x1xi1>
    %834 = vector.broadcast %833 : vector<2x1xi1> to vector<2x32xi1>
    %835 = vector.broadcast %cst_214 : f32 to vector<2x32xf32>
    %836 = arith.select %834, %820, %835 : vector<2x32xi1>, vector<2x32xf32>
    %837 = arith.index_cast %758 : i32 to index
    %c0_215 = arith.constant 0 : index
    %c0_216 = arith.constant 0 : index
    %838 = vector.load %arg16[%837, %c0_215, %c0_216] : memref<8x2x32xf32, #tpu.memory_space<vmem>>, vector<1x2x32xf32>
    %839 = vector.shape_cast %838 : vector<1x2x32xf32> to vector<2x32xf32>
    %840 = vector.shape_cast %836 : vector<2x32xf32> to vector<1x2x32xf32>
    tpu.vector_store %arg16[%837, %c0_215, %c0_216], %840 {strides = array<i32>} : memref<8x2x32xf32, #tpu.memory_space<vmem>>, vector<1x2x32xf32>,
    %841 = vector.shape_cast %822 : vector<2x1xi1> to vector<2x1xi1>
    %842 = vector.broadcast %841 : vector<2x1xi1> to vector<2x32xi1>
    %843 = arith.select %842, %791, %748 : vector<2x32xi1>, vector<2x32xf32>
    %844 = vector.shape_cast %822 : vector<2x1xi1> to vector<2x1xi1>
    %845 = vector.broadcast %844 : vector<2x1xi1> to vector<2x32xi1>
    %846 = arith.select %845, %789, %751 : vector<2x32xi1>, vector<2x32xf32>
    %847 = vector.shape_cast %824 : vector<2x1xi1> to vector<2x1xi1>
    %848 = vector.broadcast %847 : vector<2x1xi1> to vector<2x32xi1>
    %849 = arith.select %848, %820, %754 : vector<2x32xi1>, vector<2x32xf32>
    %850 = vector.shape_cast %824 : vector<2x1xi1> to vector<2x1xi1>
    %851 = vector.broadcast %850 : vector<2x1xi1> to vector<2x32xi1>
    %852 = arith.select %851, %818, %757 : vector<2x32xi1>, vector<2x32xf32>
    %c8_i32 = arith.constant 8 : i32
    %c0_217 = arith.constant 0 : index
    %c0_218 = arith.constant 0 : index
    %c0_219 = arith.constant 0 : index
    %853 = vector.load %arg15[%c0_217, %c0_218, %c0_219] : memref<8x2x32xf32, #tpu.memory_space<vmem>>, vector<8x2x32xf32>
    %c0_220 = arith.constant 0 : index
    %c0_221 = arith.constant 0 : index
    %c0_222 = arith.constant 0 : index
    %854 = vector.load %arg16[%c0_220, %c0_221, %c0_222] : memref<8x2x32xf32, #tpu.memory_space<vmem>>, vector<8x2x32xf32>
    %c0_223 = arith.constant 0 : index
    %c0_224 = arith.constant 0 : index
    %855 = vector.load %arg10[%c0_223, %c0_224] : memref<64x8xbf16, #tpu.memory_space<vmem>>, vector<64x8xbf16>
    %c0_225 = arith.constant 0 : index
    %c0_226 = arith.constant 0 : index
    %856 = vector.load %arg11[%c0_225, %c0_226] : memref<1x8xf32, #tpu.memory_space<vmem>>, vector<1x8xf32>
    %857 = vector.extract_strided_slice %853 {offsets = [0, 0, 0], sizes = [8, 1, 32], strides = [1, 1, 1]} : vector<8x2x32xf32> to vector<8x1x32xf32>
    %858 = vector.shape_cast %857 : vector<8x1x32xf32> to vector<8x32xf32>
    %859 = vector.extract_strided_slice %854 {offsets = [0, 0, 0], sizes = [8, 1, 32], strides = [1, 1, 1]} : vector<8x2x32xf32> to vector<8x1x32xf32>
    %860 = vector.shape_cast %859 : vector<8x1x32xf32> to vector<8x32xf32>
    %861 = tpu.concatenate %858, %860 in 1 : vector<8x32xf32>, vector<8x32xf32> -> vector<8x64xf32>
    %862 = arith.truncf %861 : vector<8x64xf32> to vector<8x64xbf16>
    %cst_227 = arith.constant dense<0.000000e+00> : vector<8x8xf32>
    %863 = tpu.matmul %862, %862, %cst_227 {dimension_numbers = #tpu.dot_dimension_numbers<[1], [1], [0], [0], [0, 0, 1, 0], [], []>} : vector<8x64xbf16>, vector<8x64xbf16>, vector<8x8xf32> -> vector<8x8xf32>
    %cst_228 = arith.constant 1.250000e-01 : f32
    %864 = vector.broadcast %cst_228 : f32 to vector<8x8xf32>
    %865 = arith.mulf %863, %864 : vector<8x8xf32>
    %cst_229 = arith.constant dense<0xFF800000> : vector<8xf32>
    %866 = vector.multi_reduction <maximumf>, %865, %cst_229 [1] : vector<8x8xf32> to vector<8xf32>
    %867 = vector.shape_cast %866 : vector<8xf32> to vector<8x1xf32>
    %868 = vector.broadcast %867 : vector<8x1xf32> to vector<8x8xf32>
    %869 = arith.subf %865, %868 : vector<8x8xf32>
    %870 = math.exp %869 : vector<8x8xf32>
    %cst_230 = arith.constant dense<0.000000e+00> : vector<8xf32>
    %871 = vector.multi_reduction <add>, %870, %cst_230 [1] : vector<8x8xf32> to vector<8xf32>
    %872 = vector.shape_cast %871 : vector<8xf32> to vector<8x1xf32>
    %873 = tpu.reciprocal %872 {approx = true} : vector<8x1xf32> -> vector<8x1xf32>
    %874 = vector.broadcast %873 : vector<8x1xf32> to vector<8x8xf32>
    %875 = arith.mulf %870, %874 : vector<8x8xf32>
    %876 = arith.truncf %875 : vector<8x8xf32> to vector<8x8xbf16>
    %cst_231 = arith.constant dense<0.000000e+00> : vector<8x64xf32>
    %877 = tpu.matmul %876, %862, %cst_231 {dimension_numbers = #tpu.dot_dimension_numbers<[1], [0], [0], [1], [0, 0, 1, 1], [], []>} : vector<8x8xbf16>, vector<8x64xbf16>, vector<8x64xf32> -> vector<8x64xf32>
    %878 = arith.truncf %877 : vector<8x64xf32> to vector<8x64xbf16>
    %cst_232 = arith.constant dense<0.000000e+00> : vector<8x8xf32>
    %879 = tpu.matmul %878, %855, %cst_232 {dimension_numbers = #tpu.dot_dimension_numbers<[1], [0], [0], [1], [0, 0, 1, 1], [], []>} : vector<8x64xbf16>, vector<64x8xbf16>, vector<8x8xf32> -> vector<8x8xf32>
    %880 = vector.broadcast %856 : vector<1x8xf32> to vector<8x8xf32>
    %881 = arith.addf %879, %880 : vector<8x8xf32>
    %c0_233 = arith.constant 0 : index
    %c0_234 = arith.constant 0 : index
    %c0_235 = arith.constant 0 : index
    %882 = vector.load %arg12[%c0_233, %c0_234, %c0_235] : memref<2x8x8xf32, #tpu.memory_space<vmem>>, vector<1x8x8xf32>
    %883 = vector.shape_cast %882 : vector<1x8x8xf32> to vector<8x8xf32>
    %884 = vector.shape_cast %881 : vector<8x8xf32> to vector<1x8x8xf32>
    tpu.vector_store %arg12[%c0_233, %c0_234, %c0_235], %884 {strides = array<i32>} : memref<2x8x8xf32, #tpu.memory_space<vmem>>, vector<1x8x8xf32>,
    %885 = vector.extract_strided_slice %853 {offsets = [0, 1, 0], sizes = [8, 1, 32], strides = [1, 1, 1]} : vector<8x2x32xf32> to vector<8x1x32xf32>
    %886 = vector.shape_cast %885 : vector<8x1x32xf32> to vector<8x32xf32>
    %887 = vector.extract_strided_slice %854 {offsets = [0, 1, 0], sizes = [8, 1, 32], strides = [1, 1, 1]} : vector<8x2x32xf32> to vector<8x1x32xf32>
    %888 = vector.shape_cast %887 : vector<8x1x32xf32> to vector<8x32xf32>
    %889 = tpu.concatenate %886, %888 in 1 : vector<8x32xf32>, vector<8x32xf32> -> vector<8x64xf32>
    %890 = arith.truncf %889 : vector<8x64xf32> to vector<8x64xbf16>
    %cst_236 = arith.constant dense<0.000000e+00> : vector<8x8xf32>
    %891 = tpu.matmul %890, %890, %cst_236 {dimension_numbers = #tpu.dot_dimension_numbers<[1], [1], [0], [0], [0, 0, 1, 0], [], []>} : vector<8x64xbf16>, vector<8x64xbf16>, vector<8x8xf32> -> vector<8x8xf32>
    %cst_237 = arith.constant 1.250000e-01 : f32
    %892 = vector.broadcast %cst_237 : f32 to vector<8x8xf32>
    %893 = arith.mulf %891, %892 : vector<8x8xf32>
    %cst_238 = arith.constant dense<0xFF800000> : vector<8xf32>
    %894 = vector.multi_reduction <maximumf>, %893, %cst_238 [1] : vector<8x8xf32> to vector<8xf32>
    %895 = vector.shape_cast %894 : vector<8xf32> to vector<8x1xf32>
    %896 = vector.broadcast %895 : vector<8x1xf32> to vector<8x8xf32>
    %897 = arith.subf %893, %896 : vector<8x8xf32>
    %898 = math.exp %897 : vector<8x8xf32>
    %cst_239 = arith.constant dense<0.000000e+00> : vector<8xf32>
    %899 = vector.multi_reduction <add>, %898, %cst_239 [1] : vector<8x8xf32> to vector<8xf32>
    %900 = vector.shape_cast %899 : vector<8xf32> to vector<8x1xf32>
    %901 = tpu.reciprocal %900 {approx = true} : vector<8x1xf32> -> vector<8x1xf32>
    %902 = vector.broadcast %901 : vector<8x1xf32> to vector<8x8xf32>
    %903 = arith.mulf %898, %902 : vector<8x8xf32>
    %904 = arith.truncf %903 : vector<8x8xf32> to vector<8x8xbf16>
    %cst_240 = arith.constant dense<0.000000e+00> : vector<8x64xf32>
    %905 = tpu.matmul %904, %890, %cst_240 {dimension_numbers = #tpu.dot_dimension_numbers<[1], [0], [0], [1], [0, 0, 1, 1], [], []>} : vector<8x8xbf16>, vector<8x64xbf16>, vector<8x64xf32> -> vector<8x64xf32>
    %906 = arith.truncf %905 : vector<8x64xf32> to vector<8x64xbf16>
    %cst_241 = arith.constant dense<0.000000e+00> : vector<8x8xf32>
    %907 = tpu.matmul %906, %855, %cst_241 {dimension_numbers = #tpu.dot_dimension_numbers<[1], [0], [0], [1], [0, 0, 1, 1], [], []>} : vector<8x64xbf16>, vector<64x8xbf16>, vector<8x8xf32> -> vector<8x8xf32>
    %908 = vector.broadcast %856 : vector<1x8xf32> to vector<8x8xf32>
    %909 = arith.addf %907, %908 : vector<8x8xf32>
    %c1_242 = arith.constant 1 : index
    %c0_243 = arith.constant 0 : index
    %c0_244 = arith.constant 0 : index
    %910 = vector.load %arg12[%c1_242, %c0_243, %c0_244] : memref<2x8x8xf32, #tpu.memory_space<vmem>>, vector<1x8x8xf32>
    %911 = vector.shape_cast %910 : vector<1x8x8xf32> to vector<8x8xf32>
    %912 = vector.shape_cast %909 : vector<8x8xf32> to vector<1x8x8xf32>
    tpu.vector_store %arg12[%c1_242, %c0_243, %c0_244], %912 {strides = array<i32>} : memref<2x8x8xf32, #tpu.memory_space<vmem>>, vector<1x8x8xf32>,
    return
  }
}

</mosaic_0001>

<llo_original>
// kernel: dblstm_forward.1
$region0: #{dblstm_forward.1}
  #allocation0 [shape = 'u32[]', space=smem, size = 0x4, offset = 0x4, fixed_abs, tag = 'smem constant byte address 0x4 - core index']
  #allocation1 [shape = 'u32[144,128]{1,0:T(1,128)}', space=vmem, size = 0x12000, scoped, tag = 'internal scratch']
  #allocation2 [shape = 'f32[8,2,128]{2,1,0:T(2,128)}', space=vmem, size = 0x2000, scoped, tag = 'scratch operand']
  #allocation3 [shape = 'f32[8,2,128]{2,1,0:T(2,128)}', space=vmem, size = 0x2000, scoped, tag = 'scratch operand']
  #allocation4 [shape = 'f32[8,2,32]{2,1,0:T(2,128)}', space=vmem, size = 0x2000, scoped, tag = 'scratch operand']
  #allocation5 [shape = 'f32[8,2,32]{2,1,0:T(2,128)}', space=vmem, size = 0x2000, scoped, tag = 'scratch operand']
  %s0 = inlined_call_operand.vmem [shape: f32[16,16], index: 0, kind: input, shape index: {}]
  %s1 = inlined_call_operand.vmem [shape: s32[2,1], index: 1, kind: input, shape index: {}]
  %s2 = inlined_call_operand.hbm [shape: bf16[16,32], index: 2, kind: input, shape index: {}]
  %s3 = inlined_call_operand.hbm [shape: f32[1,32], index: 3, kind: input, shape index: {}]
  %s4 = inlined_call_operand.vmem [shape: bf16[32,32], index: 4, kind: input, shape index: {}]
  %s5 = inlined_call_operand.vmem [shape: f32[1,32], index: 5, kind: input, shape index: {}]
  %s6 = inlined_call_operand.vmem [shape: bf16[32,256], index: 6, kind: input, shape index: {}]
  %s7 = inlined_call_operand.hbm [shape: f32[1,256], index: 7, kind: input, shape index: {}]
  %s8 = inlined_call_operand.vmem [shape: bf16[32,128], index: 8, kind: input, shape index: {}]
  %s9 = inlined_call_operand.vmem [shape: bf16[32,128], index: 9, kind: input, shape index: {}]
  %s10 = inlined_call_operand.vmem [shape: bf16[64,8], index: 10, kind: input, shape index: {}]
  %s11 = inlined_call_operand.hbm [shape: f32[1,8], index: 11, kind: input, shape index: {}]
  %s12 = inlined_call_operand.hbm [shape: f32[2,8,8], index: 12, kind: output, shape index: {}]
  %s13 = sld [smem:[#allocation0]]
  $region74: #{dblstm_forward.1} parent=0
    _
  %s15 = ssub.s32 1, %s13
  %s16 = scalar_select 0, %s15, %s13
  $region1: #{dblstm_forward.1} parent=0
    #allocation6 [shape = 'u8[4096]{0}', space=vmem, size = 0x1000, scoped, tag = 'input window, operand 2, single buffered']
    #allocation7 [shape = 's32[1]{0}', space=sflag, size = 0x4, scoped, tag = 'scoped memory for dblstm_forward.1']
    #allocation8 [shape = 's32[1]{0}', space=sflag, size = 0x4, scoped, tag = 'scoped memory for dblstm_forward.1']
    #allocation9 [shape = 'u8[512]{0}', space=vmem, size = 0x400, scoped, tag = 'input window, operand 3, single buffered']
    #allocation10 [shape = 's32[1]{0}', space=sflag, size = 0x4, scoped, tag = 'scoped memory for dblstm_forward.1']
    #allocation11 [shape = 'u8[1024]{0}', space=vmem, size = 0x400, scoped, tag = 'input window, operand 7, single buffered']
    #allocation12 [shape = 'u8[512]{0}', space=vmem, size = 0x400, scoped, tag = 'input window, operand 11, single buffered']
    #allocation13 [shape = 's32[1]{0}', space=sflag, size = 0x4, scoped, tag = 'scoped memory for dblstm_forward.1']
    #allocation14 [shape = 'u8[8192]{0}', space=vmem, size = 0x2000, scoped, tag = 'output window, operand 0, single buffered']
    %17 = vsyncpa [#allocation7], 0
    %18 = vsyncpa [#allocation10], 0
    %19 = vsyncpa [#allocation13], 0
    %20 = vsyncpa [#allocation8], 0
    // Predicated region
    $region2: #{dblstm_forward.1} parent=1 // pred_check
      _
    $region3: #{dblstm_forward.1} parent=1 // pred_check_branch
      %22 = sbr.rel (0) target = $region5
    $region4: #{dblstm_forward.1} parent=1 // pred_region
      _
    $region5: #{dblstm_forward.1} parent=1 // pred_fallthru
      _
    // Predicated region
    $region6: #{dblstm_forward.1} parent=1 // pred_check
      _
    $region7: #{dblstm_forward.1} parent=1 // pred_check_branch
      %24 = sbr.rel (0) target = $region9
    $region8: #{dblstm_forward.1} parent=1 // pred_region
      _
    $region9: #{dblstm_forward.1} parent=1 // pred_fallthru
      _
    // Predicated region
    $region10: #{dblstm_forward.1} parent=1 // pred_check
      _
    $region11: #{dblstm_forward.1} parent=1 // pred_check_branch
      %26 = sbr.rel (0) target = $region13
    $region12: #{dblstm_forward.1} parent=1 // pred_region
      %s28 = ssub.s32 128, 128
      %29 = vsyncadd [#allocation7], %s28
      %s30 = sshll.u32 [#allocation6], 4
      %s31 = int_to_ptr.vmem [resolvable:$true] %s30
      %36 = dma.hbm_to_vmem [thread:$0]  %s2, 128, %s31, [#allocation7], 64, 64, 4
    $region13: #{dblstm_forward.1} parent=1 // pred_fallthru
      _
    // Predicated region
    $region14: #{dblstm_forward.1} parent=1 // pred_check
      _
    $region15: #{dblstm_forward.1} parent=1 // pred_check_branch
      %38 = sbr.rel (0) target = $region17
    $region16: #{dblstm_forward.1} parent=1 // pred_region
      %s40 = ssub.s32 16, 16
      %41 = vsyncadd [#allocation10], %s40
      %s43 = sshll.u32 [#allocation9], 4
      %s44 = int_to_ptr.vmem [resolvable:$true] %s43
      %46 = dma.hbm_to_vmem [thread:$0]  %s3, 16, %s44, [#allocation10]
    $region17: #{dblstm_forward.1} parent=1 // pred_fallthru
      _
    // Predicated region
    $region18: #{dblstm_forward.1} parent=1 // pred_check
      _
    $region19: #{dblstm_forward.1} parent=1 // pred_check_branch
      %48 = sbr.rel (0) target = $region21
    $region20: #{dblstm_forward.1} parent=1 // pred_region
      _
    $region21: #{dblstm_forward.1} parent=1 // pred_fallthru
      _
    // Predicated region
    $region22: #{dblstm_forward.1} parent=1 // pred_check
      _
    $region23: #{dblstm_forward.1} parent=1 // pred_check_branch
      %50 = sbr.rel (0) target = $region25
    $region24: #{dblstm_forward.1} parent=1 // pred_region
      _
    $region25: #{dblstm_forward.1} parent=1 // pred_fallthru
      _
    // Predicated region
    $region26: #{dblstm_forward.1} parent=1 // pred_check
      _
    $region27: #{dblstm_forward.1} parent=1 // pred_check_branch
      %52 = sbr.rel (0) target = $region29
    $region28: #{dblstm_forward.1} parent=1 // pred_region
      _
    $region29: #{dblstm_forward.1} parent=1 // pred_fallthru
      _
    // Predicated region
    $region30: #{dblstm_forward.1} parent=1 // pred_check
      _
    $region31: #{dblstm_forward.1} parent=1 // pred_check_branch
      %54 = sbr.rel (0) target = $region33
    $region32: #{dblstm_forward.1} parent=1 // pred_region
      %s56 = ssub.s32 32, 32
      %57 = vsyncadd [#allocation10], %s56
      %s59 = sshll.u32 [#allocation11], 4
      %s60 = int_to_ptr.vmem [resolvable:$true] %s59
      %62 = dma.hbm_to_vmem [thread:$0]  %s7, 32, %s60, [#allocation10]
    $region33: #{dblstm_forward.1} parent=1 // pred_fallthru
      _
    // Predicated region
    $region34: #{dblstm_forward.1} parent=1 // pred_check
      _
    $region35: #{dblstm_forward.1} parent=1 // pred_check_branch
      %64 = sbr.rel (0) target = $region37
    $region36: #{dblstm_forward.1} parent=1 // pred_region
      _
    $region37: #{dblstm_forward.1} parent=1 // pred_fallthru
      _
    // Predicated region
    $region38: #{dblstm_forward.1} parent=1 // pred_check
      _
    $region39: #{dblstm_forward.1} parent=1 // pred_check_branch
      %66 = sbr.rel (0) target = $region41
    $region40: #{dblstm_forward.1} parent=1 // pred_region
      _
    $region41: #{dblstm_forward.1} parent=1 // pred_fallthru
      _
    // Predicated region
    $region42: #{dblstm_forward.1} parent=1 // pred_check
      _
    $region43: #{dblstm_forward.1} parent=1 // pred_check_branch
      %68 = sbr.rel (0) target = $region45
    $region44: #{dblstm_forward.1} parent=1 // pred_region
      _
    $region45: #{dblstm_forward.1} parent=1 // pred_fallthru
      _
    // Predicated region
    $region46: #{dblstm_forward.1} parent=1 // pred_check
      _
    $region47: #{dblstm_forward.1} parent=1 // pred_check_branch
      %70 = sbr.rel (0) target = $region49
    $region48: #{dblstm_forward.1} parent=1 // pred_region
      %s72 = ssub.s32 16, 16
      %73 = vsyncadd [#allocation13], %s72
      %s75 = sshll.u32 [#allocation12], 4
      %s76 = int_to_ptr.vmem [resolvable:$true] %s75
      %78 = dma.hbm_to_vmem [thread:$0]  %s11, 16, %s76, [#allocation13]
    $region49: #{dblstm_forward.1} parent=1 // pred_fallthru
      _
    // Predicated region
    $region50: #{dblstm_forward.1} parent=1 // pred_check
      _
    $region51: #{dblstm_forward.1} parent=1 // pred_check_branch
      %80 = sbr.rel (0) target = $region53
    $region52: #{dblstm_forward.1} parent=1 // pred_region
      %81 = dma.done [#allocation7], 128
    $region53: #{dblstm_forward.1} parent=1 // pred_fallthru
      _
    // Predicated region
    $region54: #{dblstm_forward.1} parent=1 // pred_check
      _
    $region55: #{dblstm_forward.1} parent=1 // pred_check_branch
      %83 = sbr.rel (0) target = $region57
    $region56: #{dblstm_forward.1} parent=1 // pred_region
      %84 = dma.done [#allocation10], 16
    $region57: #{dblstm_forward.1} parent=1 // pred_fallthru
      _
    // Predicated region
    $region58: #{dblstm_forward.1} parent=1 // pred_check
      _
    $region59: #{dblstm_forward.1} parent=1 // pred_check_branch
      %86 = sbr.rel (0) target = $region61
    $region60: #{dblstm_forward.1} parent=1 // pred_region
      %87 = dma.done [#allocation10], 32
    $region61: #{dblstm_forward.1} parent=1 // pred_fallthru
      _
    // Predicated region
    $region62: #{dblstm_forward.1} parent=1 // pred_check
      _
    $region63: #{dblstm_forward.1} parent=1 // pred_check_branch
      %89 = sbr.rel (0) target = $region65
    $region64: #{dblstm_forward.1} parent=1 // pred_region
      %90 = dma.done [#allocation13], 16
    $region65: #{dblstm_forward.1} parent=1 // pred_fallthru
      _
    %v92 = vld [vmem:[%s0] sm:$0xff]
    %v93 = vld [vmem:[%s0 + $0x8] sm:$0xff]
    %v94 = vpack.c.bf16 %v93, %v92
    %v95 = vld [vmem:[#allocation6] sm:$0xf]
    %v96 = vld [vmem:[#allocation6 + $0x4] sm:$0xf]
    %v97 = vld [vmem:[#allocation9] sm:$0x1]
    %v99 = vlaneseq
    %v100 = vshrl.u32 %v99, 7
    %v101 = vsub.s32 0, %v100
    %v102 = vrot.slane %v97, %v101
    %v106 = vunpack.c.l.b16 %v95
    %v107 = vunpack.c.l.b16 %v96
    %v108 = vpack.c.b16 %v107, %v106
    %vm110 = vcmask 130048
    %v112 = vsel %vm110, %v94, 0
    %114 = vmatprep.subr.bf16.mxu0 0
    %115 = vmatpush1.bf16.msra.mxu0 0
    %116 = vmatprep.subr.bf16.mxu0 0
    %117 = vmatpush1.bf16.msra.mxu0 0
    %118 = vmatprep.subr.bf16.mxu0 0
    %119 = vmatpush1.bf16.msra.mxu0 0
    %120 = vmatprep.subr.bf16.mxu0 0
    %121 = vmatpush1.bf16.msra.mxu0 0
    %122 = vmatprep.subr.bf16.mxu0 0
    %123 = vmatpush1.bf16.msra.mxu0 0
    %124 = vmatprep.subr.bf16.mxu0 0
    %125 = vmatpush1.bf16.msra.mxu0 0
    %126 = vmatprep.subr.bf16.mxu0 0
    %127 = vmatpush1.bf16.msra.mxu0 0
    %128 = vmatprep.subr.bf16.mxu0 0
    %129 = vmatpush1.bf16.msra.mxu0 %v108
    %130 = vmatprep.subr.bf16.mxu0 0
    %131 = vmatpush2.bf16.msra.mxu0 0
    %132 = vmatprep.subr.bf16.mxu0 0
    %133 = vmatpush2.bf16.msra.mxu0 0
    %134 = vmatprep.subr.bf16.mxu0 0
    %135 = vmatpush2.bf16.msra.mxu0 0
    %136 = vmatprep.subr.bf16.mxu0 0
    %137 = vmatpush2.bf16.msra.mxu0 0
    %138 = vmatprep.subr.bf16.mxu0 0
    %139 = vmatpush2.bf16.msra.mxu0 0
    %140 = vmatprep.subr.bf16.mxu0 0
    %141 = vmatpush2.bf16.msra.mxu0 0
    %142 = vmatprep.subr.bf16.mxu0 0
    %143 = vmatpush2.bf16.msra.mxu0 0
    %144 = vmatprep.subr.bf16.mxu0 0
    %145 = vmatpush2.bf16.msra.mxu0 0
    %146 = vmatprep.mubr.bf16.mxu0 0
    %147 = vmatmul.mubr.bf16.gmra.mxu0 %v112
    %v148 = vpop.f32.mrf.mxu0
    %v149 = vadd.f32 %v102, %v148
    %v150 = vpop.f32.mrf.mxu0
    %v151 = vpop.f32.mrf.mxu0
    %v152 = vadd.f32 %v102, %v151
    %v153 = vpop.f32.mrf.mxu0
    %154 = vdwg.mxu0
    %v155 = vmax.f32 %v149, 0.0
    %v156 = vmax.f32 %v152, 0.0
    %v157 = vpack.c.bf16 %v156, %v155
    %v158 = vld [vmem:[%s4] sm:$0xf]
    %v159 = vld [vmem:[%s4 + $0x4] sm:$0xf]
    %v160 = vld [vmem:[%s4 + $0x8] sm:$0xf]
    %v161 = vld [vmem:[%s4 + $0xc] sm:$0xf]
    %v162 = vld [vmem:[%s5] sm:$0x1]
    %v164 = vlaneseq
    %v165 = vshrl.u32 %v164, 7
    %v166 = vsub.s32 0, %v165
    %v167 = vrot.slane %v162, %v166
    %v173 = vunpack.c.l.b16 %v158
    %v174 = vunpack.c.l.b16 %v159
    %v175 = vunpack.c.l.b16 %v160
    %v176 = vunpack.c.l.b16 %v161
    %v177 = vpack.c.b16 %v174, %v173
    %v178 = vpack.c.b16 %v176, %v175
    %vm181 = vcmask 261120
    %v183 = vsel %vm181, %v157, 0
    %185 = vmatprep.subr.bf16.mxu0 0
    %186 = vmatpush1.bf16.msra.mxu0 0
    %187 = vmatprep.subr.bf16.mxu0 0
    %188 = vmatpush1.bf16.msra.mxu0 0
    %189 = vmatprep.subr.bf16.mxu0 0
    %190 = vmatpush1.bf16.msra.mxu0 0
    %191 = vmatprep.subr.bf16.mxu0 0
    %192 = vmatpush1.bf16.msra.mxu0 0
    %193 = vmatprep.subr.bf16.mxu0 0
    %194 = vmatpush1.bf16.msra.mxu0 0
    %195 = vmatprep.subr.bf16.mxu0 0
    %196 = vmatpush1.bf16.msra.mxu0 0
    %197 = vmatprep.subr.bf16.mxu0 0
    %198 = vmatpush1.bf16.msra.mxu0 %v178
    %199 = vmatprep.subr.bf16.mxu0 0
    %200 = vmatpush1.bf16.msra.mxu0 %v177
    %201 = vmatprep.subr.bf16.mxu0 0
    %202 = vmatpush2.bf16.msra.mxu0 0
    %203 = vmatprep.subr.bf16.mxu0 0
    %204 = vmatpush2.bf16.msra.mxu0 0
    %205 = vmatprep.subr.bf16.mxu0 0
    %206 = vmatpush2.bf16.msra.mxu0 0
    %207 = vmatprep.subr.bf16.mxu0 0
    %208 = vmatpush2.bf16.msra.mxu0 0
    %209 = vmatprep.subr.bf16.mxu0 0
    %210 = vmatpush2.bf16.msra.mxu0 0
    %211 = vmatprep.subr.bf16.mxu0 0
    %212 = vmatpush2.bf16.msra.mxu0 0
    %213 = vmatprep.subr.bf16.mxu0 0
    %214 = vmatpush2.bf16.msra.mxu0 0
    %215 = vmatprep.subr.bf16.mxu0 0
    %216 = vmatpush2.bf16.msra.mxu0 0
    %217 = vmatprep.mubr.bf16.mxu0 0
    %218 = vmatmul.mubr.bf16.gmra.mxu0 %v183
    %v219 = vpop.f32.mrf.mxu0
    %v220 = vadd.f32 %v167, %v219
    %v221 = vpop.f32.mrf.mxu0
    %v222 = vpop.f32.mrf.mxu0
    %v223 = vadd.f32 %v167, %v222
    %v224 = vpop.f32.mrf.mxu0
    %225 = vdwg.mxu0
    %v226 = vmax.f32 %v220, 0.0
    %v227 = vmax.f32 %v223, 0.0
    %v228 = vpack.c.bf16 %v227, %v226
    %v229 = vld [vmem:[%s6] sm:$0xff]
    %v230 = vld [vmem:[%s6 + $0x8] sm:$0xff]
    %v231 = vld [vmem:[%s6 + $0x10] sm:$0xff]
    %v232 = vld [vmem:[%s6 + $0x18] sm:$0xff]
    %v233 = vld [vmem:[#allocation11] sm:$0x3]
    %v235 = vlaneseq
    %v236 = vshrl.u32 %v235, 7
    %v237 = vsub.s32 0, %v236
    %v238 = vrot.slane %v233, %v237
    %v239 = vlaneseq
    %v240 = vshrl.u32 %v239, 7
    %v241 = vsub.s32 1, %v240
    %v242 = vrot.slane %v233, %v241
    %v249 = vunpack.c.l.b16 %v229
    %v250 = vunpack.c.h.b16 %v229
    %v251 = vunpack.c.l.b16 %v230
    %v252 = vunpack.c.h.b16 %v230
    %v253 = vunpack.c.l.b16 %v231
    %v254 = vunpack.c.h.b16 %v231
    %v255 = vunpack.c.l.b16 %v232
    %v256 = vunpack.c.h.b16 %v232
    %v257 = vpack.c.b16 %v251, %v249
    %v258 = vpack.c.b16 %v252, %v250
    %v259 = vpack.c.b16 %v255, %v253
    %v260 = vpack.c.b16 %v256, %v254
    %v266 = vsel %vm181, %v228, 0
    %268 = vmatprep.subr.bf16.mxu0 0
    %269 = vmatpush1.bf16.msra.mxu0 0
    %270 = vmatprep.subr.bf16.mxu0 0
    %271 = vmatpush1.bf16.msra.mxu0 0
    %272 = vmatprep.subr.bf16.mxu0 0
    %273 = vmatpush1.bf16.msra.mxu0 0
    %274 = vmatprep.subr.bf16.mxu0 0
    %275 = vmatpush1.bf16.msra.mxu0 0
    %276 = vmatprep.subr.bf16.mxu0 0
    %277 = vmatpush1.bf16.msra.mxu0 0
    %278 = vmatprep.subr.bf16.mxu0 0
    %279 = vmatpush1.bf16.msra.mxu0 0
    %280 = vmatprep.subr.bf16.mxu0 %v260
    %281 = vmatpush1.bf16.msra.mxu0 %v259
    %282 = vmatprep.subr.bf16.mxu0 %v258
    %283 = vmatpush1.bf16.msra.mxu0 %v257
    %284 = vmatprep.subr.bf16.mxu0 0
    %285 = vmatpush2.bf16.msra.mxu0 0
    %286 = vmatprep.subr.bf16.mxu0 0
    %287 = vmatpush2.bf16.msra.mxu0 0
    %288 = vmatprep.subr.bf16.mxu0 0
    %289 = vmatpush2.bf16.msra.mxu0 0
    %290 = vmatprep.subr.bf16.mxu0 0
    %291 = vmatpush2.bf16.msra.mxu0 0
    %292 = vmatprep.subr.bf16.mxu0 0
    %293 = vmatpush2.bf16.msra.mxu0 0
    %294 = vmatprep.subr.bf16.mxu0 0
    %295 = vmatpush2.bf16.msra.mxu0 0
    %296 = vmatprep.subr.bf16.mxu0 0
    %297 = vmatpush2.bf16.msra.mxu0 0
    %298 = vmatprep.subr.bf16.mxu0 0
    %299 = vmatpush2.bf16.msra.mxu0 0
    %300 = vmatprep.mubr.bf16.mxu0 0
    %301 = vmatmul.mubr.bf16.gmra.mxu0 %v266
    %v302 = vpop.f32.mrf.mxu0
    %v303 = vadd.f32 %v238, %v302
    %v304 = vpop.f32.mrf.mxu0
    %v305 = vadd.f32 %v242, %v304
    %v306 = vpop.f32.mrf.mxu0
    %v307 = vadd.f32 %v238, %v306
    %v308 = vpop.f32.mrf.mxu0
    %v309 = vadd.f32 %v242, %v308
    %310 = vdwg.mxu0
    %311 = vst [vmem:[#allocation2] sm:$0x3] %v303
    %312 = vst [vmem:[#allocation3] sm:$0x3] %v305
    %s313 = scalar_lea.vmem [#allocation2], 2
    %314 = vst [vmem:[%s313 - $0x2] sm:$0xc] %v303
    %s315 = scalar_lea.vmem [#allocation3], 2
    %316 = vst [vmem:[%s315 - $0x2] sm:$0xc] %v305
    %s317 = scalar_lea.vmem [#allocation2], 4
    %318 = vst [vmem:[%s317 - $0x4] sm:$0x30] %v303
    %s319 = scalar_lea.vmem [#allocation3], 4
    %320 = vst [vmem:[%s319 - $0x4] sm:$0x30] %v305
    %s321 = scalar_lea.vmem [#allocation2], 6
    %322 = vst [vmem:[%s321 - $0x6] sm:$0xc0] %v303
    %s323 = scalar_lea.vmem [#allocation3], 6
    %324 = vst [vmem:[%s323 - $0x6] sm:$0xc0] %v305
    %s325 = scalar_lea.vmem [#allocation2], 8
    %326 = vst [vmem:[%s325] sm:$0x3] %v307
    %s327 = scalar_lea.vmem [#allocation3], 8
    %328 = vst [vmem:[%s327] sm:$0x3] %v309
    %s329 = scalar_lea.vmem [#allocation2], 10
    %330 = vst [vmem:[%s329 - $0x2] sm:$0xc] %v307
    %s331 = scalar_lea.vmem [#allocation3], 10
    %332 = vst [vmem:[%s331 - $0x2] sm:$0xc] %v309
    %s333 = scalar_lea.vmem [#allocation2], 12
    %334 = vst [vmem:[%s333 - $0x4] sm:$0x30] %v307
    %s335 = scalar_lea.vmem [#allocation3], 12
    %336 = vst [vmem:[%s335 - $0x4] sm:$0x30] %v309
    %s337 = scalar_lea.vmem [#allocation2], 14
    %338 = vst [vmem:[%s337 - $0x6] sm:$0xc0] %v307
    %s339 = scalar_lea.vmem [#allocation3], 14
    %340 = vst [vmem:[%s339 - $0x6] sm:$0xc0] %v309
    %v341 = vld [vmem:[%s1] sm:$0x3]
    %v342 = vld [vmem:[%s8] sm:$0xf]
    %v343 = vld [vmem:[%s8 + $0x4] sm:$0xf]
    %v344 = vld [vmem:[%s8 + $0x8] sm:$0xf]
    %v345 = vld [vmem:[%s8 + $0xc] sm:$0xf]
    %v346 = vld [vmem:[%s9] sm:$0xf]
    %v347 = vld [vmem:[%s9 + $0x4] sm:$0xf]
    %v348 = vld [vmem:[%s9 + $0x8] sm:$0xf]
    %v349 = vld [vmem:[%s9 + $0xc] sm:$0xf]
    %v354 = vunpack.c.l.b16 %v342
    %v355 = vunpack.c.l.b16 %v343
    %v356 = vunpack.c.l.b16 %v344
    %v357 = vunpack.c.l.b16 %v345
    %v358 = vpack.c.b16 %v355, %v354
    %v359 = vpack.c.b16 %v357, %v356
    %v363 = vsel %vm181, 0, 0
    %365 = vmatprep.subr.bf16.mxu0 0
    %366 = vmatpush1.bf16.msra.mxu0 0
    %367 = vmatprep.subr.bf16.mxu0 0
    %368 = vmatpush1.bf16.msra.mxu0 0
    %369 = vmatprep.subr.bf16.mxu0 0
    %370 = vmatpush1.bf16.msra.mxu0 0
    %371 = vmatprep.subr.bf16.mxu0 0
    %372 = vmatpush1.bf16.msra.mxu0 0
    %373 = vmatprep.subr.bf16.mxu0 0
    %374 = vmatpush1.bf16.msra.mxu0 0
    %375 = vmatprep.subr.bf16.mxu0 0
    %376 = vmatpush1.bf16.msra.mxu0 0
    %377 = vmatprep.subr.bf16.mxu0 0
    %378 = vmatpush1.bf16.msra.mxu0 %v359
    %379 = vmatprep.subr.bf16.mxu0 0
    %380 = vmatpush1.bf16.msra.mxu0 %v358
    %381 = vmatprep.subr.bf16.mxu0 0
    %382 = vmatpush2.bf16.msra.mxu0 0
    %383 = vmatprep.subr.bf16.mxu0 0
    %384 = vmatpush2.bf16.msra.mxu0 0
    %385 = vmatprep.subr.bf16.mxu0 0
    %386 = vmatpush2.bf16.msra.mxu0 0
    %387 = vmatprep.subr.bf16.mxu0 0
    %388 = vmatpush2.bf16.msra.mxu0 0
    %389 = vmatprep.subr.bf16.mxu0 0
    %390 = vmatpush2.bf16.msra.mxu0 0
    %391 = vmatprep.subr.bf16.mxu0 0
    %392 = vmatpush2.bf16.msra.mxu0 0
    %393 = vmatprep.subr.bf16.mxu0 0
    %394 = vmatpush2.bf16.msra.mxu0 0
    %395 = vmatprep.subr.bf16.mxu0 0
    %396 = vmatpush2.bf16.msra.mxu0 0
    %397 = vmatprep.mubr.bf16.mxu0 0
    %398 = vmatmul.mubr.bf16.gmra.mxu0 %v363
    %v399 = vpop.f32.mrf.mxu0
    %v400 = vadd.f32 0.0, %v399
    %v401 = vpop.f32.mrf.mxu0
    %v402 = vpop.f32.mrf.mxu0
    %v403 = vpop.f32.mrf.mxu0
    %404 = vdwg.mxu0
    %v409 = vunpack.c.l.b16 %v346
    %v410 = vunpack.c.l.b16 %v347
    %v411 = vunpack.c.l.b16 %v348
    %v412 = vunpack.c.l.b16 %v349
    %v413 = vpack.c.b16 %v410, %v409
    %v414 = vpack.c.b16 %v412, %v411
    %417 = vmatprep.subr.bf16.mxu0 0
    %418 = vmatpush1.bf16.msra.mxu0 0
    %419 = vmatprep.subr.bf16.mxu0 0
    %420 = vmatpush1.bf16.msra.mxu0 0
    %421 = vmatprep.subr.bf16.mxu0 0
    %422 = vmatpush1.bf16.msra.mxu0 0
    %423 = vmatprep.subr.bf16.mxu0 0
    %424 = vmatpush1.bf16.msra.mxu0 0
    %425 = vmatprep.subr.bf16.mxu0 0
    %426 = vmatpush1.bf16.msra.mxu0 0
    %427 = vmatprep.subr.bf16.mxu0 0
    %428 = vmatpush1.bf16.msra.mxu0 0
    %429 = vmatprep.subr.bf16.mxu0 0
    %430 = vmatpush1.bf16.msra.mxu0 %v414
    %431 = vmatprep.subr.bf16.mxu0 0
    %432 = vmatpush1.bf16.msra.mxu0 %v413
    %433 = vmatprep.subr.bf16.mxu0 0
    %434 = vmatpush2.bf16.msra.mxu0 0
    %435 = vmatprep.subr.bf16.mxu0 0
    %436 = vmatpush2.bf16.msra.mxu0 0
    %437 = vmatprep.subr.bf16.mxu0 0
    %438 = vmatpush2.bf16.msra.mxu0 0
    %439 = vmatprep.subr.bf16.mxu0 0
    %440 = vmatpush2.bf16.msra.mxu0 0
    %441 = vmatprep.subr.bf16.mxu0 0
    %442 = vmatpush2.bf16.msra.mxu0 0
    %443 = vmatprep.subr.bf16.mxu0 0
    %444 = vmatpush2.bf16.msra.mxu0 0
    %445 = vmatprep.subr.bf16.mxu0 0
    %446 = vmatpush2.bf16.msra.mxu0 0
    %447 = vmatprep.subr.bf16.mxu0 0
    %448 = vmatpush2.bf16.msra.mxu0 0
    %449 = vmatprep.mubr.bf16.mxu0 0
    %450 = vmatmul.mubr.bf16.gmra.mxu0 %v363
    %v451 = vpop.f32.mrf.mxu0
    %v452 = vadd.f32 0.0, %v451
    %v453 = vpop.f32.mrf.mxu0
    %v454 = vpop.f32.mrf.mxu0
    %v455 = vpop.f32.mrf.mxu0
    %456 = vdwg.mxu0
    %v457 = vld [vmem:[#allocation2] sm:$0x3]
    %v458 = vadd.f32 %v457, %v400
    %v459 = vxor.u32 %v458, 2147483648
    %v460 = vmul.f32 %v459, 1.442695
    %v461 = vpow.pop %v460
    %v462 = vadd.f32 %v461, 1.0
    %v463 = vrcp.pop %v462
    %v464 = vmul.f32 1.0, %v463
    %v465 = vtanh.pop %v458
    %v466 = vmul.f32 %v464, 0.0
    %468 = vrot.lane.b32.xlu0 %v465, 64
    %v469 = vpop.permute.xlu0 %468
    %v471 = vmul.f32 %v464, %v469
    %473 = vrot.lane.b32.xlu0 %v471, 32
    %v474 = vpop.permute.xlu0 %473
    %v476 = vadd.f32 %v466, %v474
    %v477 = vtanh.pop %v476
    %479 = vrot.lane.b32.xlu0 %v477, 64
    %v480 = vpop.permute.xlu0 %479
    %v482 = vmul.f32 %v464, %v480
    %v483 = vld [vmem:[%s339] sm:$0x3]
    %v484 = vadd.f32 %v483, %v452
    %v485 = vxor.u32 %v484, 2147483648
    %v486 = vmul.f32 %v485, 1.442695
    %v487 = vpow.pop %v486
    %v488 = vadd.f32 %v487, 1.0
    %v489 = vrcp.pop %v488
    %v490 = vmul.f32 1.0, %v489
    %v491 = vtanh.pop %v484
    %v492 = vmul.f32 %v490, 0.0
    %494 = vrot.lane.b32.xlu0 %v491, 64
    %v495 = vpop.permute.xlu0 %494
    %v497 = vmul.f32 %v490, %v495
    %499 = vrot.lane.b32.xlu0 %v497, 32
    %v500 = vpop.permute.xlu0 %499
    %v502 = vadd.f32 %v492, %v500
    %v503 = vtanh.pop %v502
    %505 = vrot.lane.b32.xlu0 %v503, 64
    %v506 = vpop.permute.xlu0 %505
    %v508 = vmul.f32 %v490, %v506
    %vm509 = vcmp.gt.s32.totalorder %v341, 0
    %vm510 = vcmp.gt.s32.totalorder %v341, 7
    %v511 = vsel %vm509, 1, 0
    %512 = vset.pattern.permute.xlu0 0
    %513 = vperm.xlu0 %512, %v511
    %v514 = vpop.permute.xlu0 %513
    %vm515 = vcmp.eq.s32.totalorder %v514, 1
    %v516 = vsel %vm515, %v482, 0.0
    %518 = vrot.lane.b32.xlu0 %v516, 32
    %v519 = vpop.permute.xlu0 %518
    %vm521 = vcmask 254976
    %522 = vst.msk [vmem:[#allocation4] sm:$0x3] %vm521, %v519
    %v523 = vsel %vm510, 1, 0
    %524 = vset.pattern.permute.xlu0 0
    %525 = vperm.xlu0 %524, %v523
    %v526 = vpop.permute.xlu0 %525
    %vm527 = vcmp.eq.s32.totalorder %v526, 1
    %v528 = vsel %vm527, %v508, 0.0
    %530 = vrot.lane.b32.xlu0 %v528, 32
    %v531 = vpop.permute.xlu0 %530
    %s533 = scalar_lea.vmem [#allocation5], 14
    %534 = vst.msk [vmem:[%s533] sm:$0x3] %vm521, %v531
    %v535 = vsel %vm515, %v476, 0.0
    %v536 = vsel %vm527, %v502, 0.0
    %v537 = vpack.c.bf16 %v516, %v516
    %539 = vrot.lane.b32.xlu0 %v537, 32
    %v540 = vpop.permute.xlu0 %539
    %v542 = vsel %vm181, %v540, 0
    %544 = vmatprep.subr.bf16.mxu0 0
    %545 = vmatpush1.bf16.msra.mxu0 0
    %546 = vmatprep.subr.bf16.mxu0 0
    %547 = vmatpush1.bf16.msra.mxu0 0
    %548 = vmatprep.subr.bf16.mxu0 0
    %549 = vmatpush1.bf16.msra.mxu0 0
    %550 = vmatprep.subr.bf16.mxu0 0
    %551 = vmatpush1.bf16.msra.mxu0 0
    %552 = vmatprep.subr.bf16.mxu0 0
    %553 = vmatpush1.bf16.msra.mxu0 0
    %554 = vmatprep.subr.bf16.mxu0 0
    %555 = vmatpush1.bf16.msra.mxu0 0
    %556 = vmatprep.subr.bf16.mxu0 0
    %557 = vmatpush1.bf16.msra.mxu0 %v359
    %558 = vmatprep.subr.bf16.mxu0 0
    %559 = vmatpush1.bf16.msra.mxu0 %v358
    %560 = vmatprep.subr.bf16.mxu0 0
    %561 = vmatpush2.bf16.msra.mxu0 0
    %562 = vmatprep.subr.bf16.mxu0 0
    %563 = vmatpush2.bf16.msra.mxu0 0
    %564 = vmatprep.subr.bf16.mxu0 0
    %565 = vmatpush2.bf16.msra.mxu0 0
    %566 = vmatprep.subr.bf16.mxu0 0
    %567 = vmatpush2.bf16.msra.mxu0 0
    %568 = vmatprep.subr.bf16.mxu0 0
    %569 = vmatpush2.bf16.msra.mxu0 0
    %570 = vmatprep.subr.bf16.mxu0 0
    %571 = vmatpush2.bf16.msra.mxu0 0
    %572 = vmatprep.subr.bf16.mxu0 0
    %573 = vmatpush2.bf16.msra.mxu0 0
    %574 = vmatprep.subr.bf16.mxu0 0
    %575 = vmatpush2.bf16.msra.mxu0 0
    %576 = vmatprep.mubr.bf16.mxu0 0
    %577 = vmatmul.mubr.bf16.gmra.mxu0 %v542
    %v578 = vpop.f32.mrf.mxu0
    %v579 = vadd.f32 0.0, %v578
    %v580 = vpop.f32.mrf.mxu0
    %v581 = vpop.f32.mrf.mxu0
    %v582 = vpop.f32.mrf.mxu0
    %583 = vdwg.mxu0
    %v584 = vpack.c.bf16 %v528, %v528
    %586 = vrot.lane.b32.xlu0 %v584, 32
    %v587 = vpop.permute.xlu0 %586
    %v589 = vsel %vm181, %v587, 0
    %591 = vmatprep.subr.bf16.mxu0 0
    %592 = vmatpush1.bf16.msra.mxu0 0
    %593 = vmatprep.subr.bf16.mxu0 0
    %594 = vmatpush1.bf16.msra.mxu0 0
    %595 = vmatprep.subr.bf16.mxu0 0
    %596 = vmatpush1.bf16.msra.mxu0 0
    %597 = vmatprep.subr.bf16.mxu0 0
    %598 = vmatpush1.bf16.msra.mxu0 0
    %599 = vmatprep.subr.bf16.mxu0 0
    %600 = vmatpush1.bf16.msra.mxu0 0
    %601 = vmatprep.subr.bf16.mxu0 0
    %602 = vmatpush1.bf16.msra.mxu0 0
    %603 = vmatprep.subr.bf16.mxu0 0
    %604 = vmatpush1.bf16.msra.mxu0 %v414
    %605 = vmatprep.subr.bf16.mxu0 0
    %606 = vmatpush1.bf16.msra.mxu0 %v413
    %607 = vmatprep.subr.bf16.mxu0 0
    %608 = vmatpush2.bf16.msra.mxu0 0
    %609 = vmatprep.subr.bf16.mxu0 0
    %610 = vmatpush2.bf16.msra.mxu0 0
    %611 = vmatprep.subr.bf16.mxu0 0
    %612 = vmatpush2.bf16.msra.mxu0 0
    %613 = vmatprep.subr.bf16.mxu0 0
    %614 = vmatpush2.bf16.msra.mxu0 0
    %615 = vmatprep.subr.bf16.mxu0 0
    %616 = vmatpush2.bf16.msra.mxu0 0
    %617 = vmatprep.subr.bf16.mxu0 0
    %618 = vmatpush2.bf16.msra.mxu0 0
    %619 = vmatprep.subr.bf16.mxu0 0
    %620 = vmatpush2.bf16.msra.mxu0 0
    %621 = vmatprep.subr.bf16.mxu0 0
    %622 = vmatpush2.bf16.msra.mxu0 0
    %623 = vmatprep.mubr.bf16.mxu0 0
    %624 = vmatmul.mubr.bf16.gmra.mxu0 %v589
    %v625 = vpop.f32.mrf.mxu0
    %v626 = vadd.f32 0.0, %v625
    %v627 = vpop.f32.mrf.mxu0
    %v628 = vpop.f32.mrf.mxu0
    %v629 = vpop.f32.mrf.mxu0
    %630 = vdwg.mxu0
    %v631 = vld [vmem:[%s313] sm:$0x3]
    %v632 = vadd.f32 %v631, %v579
    %v633 = vxor.u32 %v632, 2147483648
    %v634 = vmul.f32 %v633, 1.442695
    %v635 = vpow.pop %v634
    %v636 = vadd.f32 %v635, 1.0
    %v637 = vrcp.pop %v636
    %v638 = vmul.f32 1.0, %v637
    %v639 = vtanh.pop %v632
    %v640 = vmul.f32 %v638, %v535
    %642 = vrot.lane.b32.xlu0 %v639, 64
    %v643 = vpop.permute.xlu0 %642
    %v645 = vmul.f32 %v638, %v643
    %647 = vrot.lane.b32.xlu0 %v645, 32
    %v648 = vpop.permute.xlu0 %647
    %v650 = vadd.f32 %v640, %v648
    %v651 = vtanh.pop %v650
    %653 = vrot.lane.b32.xlu0 %v651, 64
    %v654 = vpop.permute.xlu0 %653
    %v656 = vmul.f32 %v638, %v654
    %v657 = vld [vmem:[%s335] sm:$0x3]
    %v658 = vadd.f32 %v657, %v626
    %v659 = vxor.u32 %v658, 2147483648
    %v660 = vmul.f32 %v659, 1.442695
    %v661 = vpow.pop %v660
    %v662 = vadd.f32 %v661, 1.0
    %v663 = vrcp.pop %v662
    %v664 = vmul.f32 1.0, %v663
    %v665 = vtanh.pop %v658
    %v666 = vmul.f32 %v664, %v536
    %668 = vrot.lane.b32.xlu0 %v665, 64
    %v669 = vpop.permute.xlu0 %668
    %v671 = vmul.f32 %v664, %v669
    %673 = vrot.lane.b32.xlu0 %v671, 32
    %v674 = vpop.permute.xlu0 %673
    %v676 = vadd.f32 %v666, %v674
    %v677 = vtanh.pop %v676
    %679 = vrot.lane.b32.xlu0 %v677, 64
    %v680 = vpop.permute.xlu0 %679
    %v682 = vmul.f32 %v664, %v680
    %vm683 = vcmp.gt.s32.totalorder %v341, 1
    %vm684 = vcmp.gt.s32.totalorder %v341, 6
    %v685 = vsel %vm683, 1, 0
    %686 = vset.pattern.permute.xlu0 0
    %687 = vperm.xlu0 %686, %v685
    %v688 = vpop.permute.xlu0 %687
    %vm689 = vcmp.eq.s32.totalorder %v688, 1
    %v690 = vsel %vm689, %v656, 0.0
    %692 = vrot.lane.b32.xlu0 %v690, 32
    %v693 = vpop.permute.xlu0 %692
    %s695 = scalar_lea.vmem [#allocation4], 2
    %696 = vst.msk [vmem:[%s695] sm:$0x3] %vm521, %v693
    %v697 = vsel %vm684, 1, 0
    %698 = vset.pattern.permute.xlu0 0
    %699 = vperm.xlu0 %698, %v697
    %v700 = vpop.permute.xlu0 %699
    %vm701 = vcmp.eq.s32.totalorder %v700, 1
    %v702 = vsel %vm701, %v682, 0.0
    %704 = vrot.lane.b32.xlu0 %v702, 32
    %v705 = vpop.permute.xlu0 %704
    %s707 = scalar_lea.vmem [#allocation5], 12
    %708 = vst.msk [vmem:[%s707] sm:$0x3] %vm521, %v705
    %v709 = vsel %vm689, %v656, %v516
    %v710 = vsel %vm689, %v650, %v535
    %v711 = vsel %vm701, %v682, %v528
    %v712 = vsel %vm701, %v676, %v536
    %v713 = vpack.c.bf16 %v709, %v709
    %715 = vrot.lane.b32.xlu0 %v713, 32
    %v716 = vpop.permute.xlu0 %715
    %v718 = vsel %vm181, %v716, 0
    %720 = vmatprep.subr.bf16.mxu0 0
    %721 = vmatpush1.bf16.msra.mxu0 0
    %722 = vmatprep.subr.bf16.mxu0 0
    %723 = vmatpush1.bf16.msra.mxu0 0
    %724 = vmatprep.subr.bf16.mxu0 0
    %725 = vmatpush1.bf16.msra.mxu0 0
    %726 = vmatprep.subr.bf16.mxu0 0
    %727 = vmatpush1.bf16.msra.mxu0 0
    %728 = vmatprep.subr.bf16.mxu0 0
    %729 = vmatpush1.bf16.msra.mxu0 0
    %730 = vmatprep.subr.bf16.mxu0 0
    %731 = vmatpush1.bf16.msra.mxu0 0
    %732 = vmatprep.subr.bf16.mxu0 0
    %733 = vmatpush1.bf16.msra.mxu0 %v359
    %734 = vmatprep.subr.bf16.mxu0 0
    %735 = vmatpush1.bf16.msra.mxu0 %v358
    %736 = vmatprep.subr.bf16.mxu0 0
    %737 = vmatpush2.bf16.msra.mxu0 0
    %738 = vmatprep.subr.bf16.mxu0 0
    %739 = vmatpush2.bf16.msra.mxu0 0
    %740 = vmatprep.subr.bf16.mxu0 0
    %741 = vmatpush2.bf16.msra.mxu0 0
    %742 = vmatprep.subr.bf16.mxu0 0
    %743 = vmatpush2.bf16.msra.mxu0 0
    %744 = vmatprep.subr.bf16.mxu0 0
    %745 = vmatpush2.bf16.msra.mxu0 0
    %746 = vmatprep.subr.bf16.mxu0 0
    %747 = vmatpush2.bf16.msra.mxu0 0
    %748 = vmatprep.subr.bf16.mxu0 0
    %749 = vmatpush2.bf16.msra.mxu0 0
    %750 = vmatprep.subr.bf16.mxu0 0
    %751 = vmatpush2.bf16.msra.mxu0 0
    %752 = vmatprep.mubr.bf16.mxu0 0
    %753 = vmatmul.mubr.bf16.gmra.mxu0 %v718
    %v754 = vpop.f32.mrf.mxu0
    %v755 = vadd.f32 0.0, %v754
    %v756 = vpop.f32.mrf.mxu0
    %v757 = vpop.f32.mrf.mxu0
    %v758 = vpop.f32.mrf.mxu0
    %759 = vdwg.mxu0
    %v760 = vpack.c.bf16 %v711, %v711
    %762 = vrot.lane.b32.xlu0 %v760, 32
    %v763 = vpop.permute.xlu0 %762
    %v765 = vsel %vm181, %v763, 0
    %767 = vmatprep.subr.bf16.mxu0 0
    %768 = vmatpush1.bf16.msra.mxu0 0
    %769 = vmatprep.subr.bf16.mxu0 0
    %770 = vmatpush1.bf16.msra.mxu0 0
    %771 = vmatprep.subr.bf16.mxu0 0
    %772 = vmatpush1.bf16.msra.mxu0 0
    %773 = vmatprep.subr.bf16.mxu0 0
    %774 = vmatpush1.bf16.msra.mxu0 0
    %775 = vmatprep.subr.bf16.mxu0 0
    %776 = vmatpush1.bf16.msra.mxu0 0
    %777 = vmatprep.subr.bf16.mxu0 0
    %778 = vmatpush1.bf16.msra.mxu0 0
    %779 = vmatprep.subr.bf16.mxu0 0
    %780 = vmatpush1.bf16.msra.mxu0 %v414
    %781 = vmatprep.subr.bf16.mxu0 0
    %782 = vmatpush1.bf16.msra.mxu0 %v413
    %783 = vmatprep.subr.bf16.mxu0 0
    %784 = vmatpush2.bf16.msra.mxu0 0
    %785 = vmatprep.subr.bf16.mxu0 0
    %786 = vmatpush2.bf16.msra.mxu0 0
    %787 = vmatprep.subr.bf16.mxu0 0
    %788 = vmatpush2.bf16.msra.mxu0 0
    %789 = vmatprep.subr.bf16.mxu0 0
    %790 = vmatpush2.bf16.msra.mxu0 0
    %791 = vmatprep.subr.bf16.mxu0 0
    %792 = vmatpush2.bf16.msra.mxu0 0
    %793 = vmatprep.subr.bf16.mxu0 0
    %794 = vmatpush2.bf16.msra.mxu0 0
    %795 = vmatprep.subr.bf16.mxu0 0
    %796 = vmatpush2.bf16.msra.mxu0 0
    %797 = vmatprep.subr.bf16.mxu0 0
    %798 = vmatpush2.bf16.msra.mxu0 0
    %799 = vmatprep.mubr.bf16.mxu0 0
    %800 = vmatmul.mubr.bf16.gmra.mxu0 %v765
    %v801 = vpop.f32.mrf.mxu0
    %v802 = vadd.f32 0.0, %v801
    %v803 = vpop.f32.mrf.mxu0
    %v804 = vpop.f32.mrf.mxu0
    %v805 = vpop.f32.mrf.mxu0
    %806 = vdwg.mxu0
    %v807 = vld [vmem:[%s317] sm:$0x3]
    %v808 = vadd.f32 %v807, %v755
    %v809 = vxor.u32 %v808, 2147483648
    %v810 = vmul.f32 %v809, 1.442695
    %v811 = vpow.pop %v810
    %v812 = vadd.f32 %v811, 1.0
    %v813 = vrcp.pop %v812
    %v814 = vmul.f32 1.0, %v813
    %v815 = vtanh.pop %v808
    %v816 = vmul.f32 %v814, %v710
    %818 = vrot.lane.b32.xlu0 %v815, 64
    %v819 = vpop.permute.xlu0 %818
    %v821 = vmul.f32 %v814, %v819
    %823 = vrot.lane.b32.xlu0 %v821, 32
    %v824 = vpop.permute.xlu0 %823
    %v826 = vadd.f32 %v816, %v824
    %v827 = vtanh.pop %v826
    %829 = vrot.lane.b32.xlu0 %v827, 64
    %v830 = vpop.permute.xlu0 %829
    %v832 = vmul.f32 %v814, %v830
    %v833 = vld [vmem:[%s331] sm:$0x3]
    %v834 = vadd.f32 %v833, %v802
    %v835 = vxor.u32 %v834, 2147483648
    %v836 = vmul.f32 %v835, 1.442695
    %v837 = vpow.pop %v836
    %v838 = vadd.f32 %v837, 1.0
    %v839 = vrcp.pop %v838
    %v840 = vmul.f32 1.0, %v839
    %v841 = vtanh.pop %v834
    %v842 = vmul.f32 %v840, %v712
    %844 = vrot.lane.b32.xlu0 %v841, 64
    %v845 = vpop.permute.xlu0 %844
    %v847 = vmul.f32 %v840, %v845
    %849 = vrot.lane.b32.xlu0 %v847, 32
    %v850 = vpop.permute.xlu0 %849
    %v852 = vadd.f32 %v842, %v850
    %v853 = vtanh.pop %v852
    %855 = vrot.lane.b32.xlu0 %v853, 64
    %v856 = vpop.permute.xlu0 %855
    %v858 = vmul.f32 %v840, %v856
    %vm859 = vcmp.gt.s32.totalorder %v341, 2
    %vm860 = vcmp.gt.s32.totalorder %v341, 5
    %v861 = vsel %vm859, 1, 0
    %862 = vset.pattern.permute.xlu0 0
    %863 = vperm.xlu0 %862, %v861
    %v864 = vpop.permute.xlu0 %863
    %vm865 = vcmp.eq.s32.totalorder %v864, 1
    %v866 = vsel %vm865, %v832, 0.0
    %868 = vrot.lane.b32.xlu0 %v866, 32
    %v869 = vpop.permute.xlu0 %868
    %s871 = scalar_lea.vmem [#allocation4], 4
    %872 = vst.msk [vmem:[%s871] sm:$0x3] %vm521, %v869
    %v873 = vsel %vm860, 1, 0
    %874 = vset.pattern.permute.xlu0 0
    %875 = vperm.xlu0 %874, %v873
    %v876 = vpop.permute.xlu0 %875
    %vm877 = vcmp.eq.s32.totalorder %v876, 1
    %v878 = vsel %vm877, %v858, 0.0
    %880 = vrot.lane.b32.xlu0 %v878, 32
    %v881 = vpop.permute.xlu0 %880
    %s883 = scalar_lea.vmem [#allocation5], 10
    %884 = vst.msk [vmem:[%s883] sm:$0x3] %vm521, %v881
    %v885 = vsel %vm865, %v832, %v709
    %v886 = vsel %vm865, %v826, %v710
    %v887 = vsel %vm877, %v858, %v711
    %v888 = vsel %vm877, %v852, %v712
    %v889 = vpack.c.bf16 %v885, %v885
    %891 = vrot.lane.b32.xlu0 %v889, 32
    %v892 = vpop.permute.xlu0 %891
    %v894 = vsel %vm181, %v892, 0
    %896 = vmatprep.subr.bf16.mxu0 0
    %897 = vmatpush1.bf16.msra.mxu0 0
    %898 = vmatprep.subr.bf16.mxu0 0
    %899 = vmatpush1.bf16.msra.mxu0 0
    %900 = vmatprep.subr.bf16.mxu0 0
    %901 = vmatpush1.bf16.msra.mxu0 0
    %902 = vmatprep.subr.bf16.mxu0 0
    %903 = vmatpush1.bf16.msra.mxu0 0
    %904 = vmatprep.subr.bf16.mxu0 0
    %905 = vmatpush1.bf16.msra.mxu0 0
    %906 = vmatprep.subr.bf16.mxu0 0
    %907 = vmatpush1.bf16.msra.mxu0 0
    %908 = vmatprep.subr.bf16.mxu0 0
    %909 = vmatpush1.bf16.msra.mxu0 %v359
    %910 = vmatprep.subr.bf16.mxu0 0
    %911 = vmatpush1.bf16.msra.mxu0 %v358
    %912 = vmatprep.subr.bf16.mxu0 0
    %913 = vmatpush2.bf16.msra.mxu0 0
    %914 = vmatprep.subr.bf16.mxu0 0
    %915 = vmatpush2.bf16.msra.mxu0 0
    %916 = vmatprep.subr.bf16.mxu0 0
    %917 = vmatpush2.bf16.msra.mxu0 0
    %918 = vmatprep.subr.bf16.mxu0 0
    %919 = vmatpush2.bf16.msra.mxu0 0
    %920 = vmatprep.subr.bf16.mxu0 0
    %921 = vmatpush2.bf16.msra.mxu0 0
    %922 = vmatprep.subr.bf16.mxu0 0
    %923 = vmatpush2.bf16.msra.mxu0 0
    %924 = vmatprep.subr.bf16.mxu0 0
    %925 = vmatpush2.bf16.msra.mxu0 0
    %926 = vmatprep.subr.bf16.mxu0 0
    %927 = vmatpush2.bf16.msra.mxu0 0
    %928 = vmatprep.mubr.bf16.mxu0 0
    %929 = vmatmul.mubr.bf16.gmra.mxu0 %v894
    %v930 = vpop.f32.mrf.mxu0
    %v931 = vadd.f32 0.0, %v930
    %v932 = vpop.f32.mrf.mxu0
    %v933 = vpop.f32.mrf.mxu0
    %v934 = vpop.f32.mrf.mxu0
    %935 = vdwg.mxu0
    %v936 = vpack.c.bf16 %v887, %v887
    %938 = vrot.lane.b32.xlu0 %v936, 32
    %v939 = vpop.permute.xlu0 %938
    %v941 = vsel %vm181, %v939, 0
    %943 = vmatprep.subr.bf16.mxu0 0
    %944 = vmatpush1.bf16.msra.mxu0 0
    %945 = vmatprep.subr.bf16.mxu0 0
    %946 = vmatpush1.bf16.msra.mxu0 0
    %947 = vmatprep.subr.bf16.mxu0 0
    %948 = vmatpush1.bf16.msra.mxu0 0
    %949 = vmatprep.subr.bf16.mxu0 0
    %950 = vmatpush1.bf16.msra.mxu0 0
    %951 = vmatprep.subr.bf16.mxu0 0
    %952 = vmatpush1.bf16.msra.mxu0 0
    %953 = vmatprep.subr.bf16.mxu0 0
    %954 = vmatpush1.bf16.msra.mxu0 0
    %955 = vmatprep.subr.bf16.mxu0 0
    %956 = vmatpush1.bf16.msra.mxu0 %v414
    %957 = vmatprep.subr.bf16.mxu0 0
    %958 = vmatpush1.bf16.msra.mxu0 %v413
    %959 = vmatprep.subr.bf16.mxu0 0
    %960 = vmatpush2.bf16.msra.mxu0 0
    %961 = vmatprep.subr.bf16.mxu0 0
    %962 = vmatpush2.bf16.msra.mxu0 0
    %963 = vmatprep.subr.bf16.mxu0 0
    %964 = vmatpush2.bf16.msra.mxu0 0
    %965 = vmatprep.subr.bf16.mxu0 0
    %966 = vmatpush2.bf16.msra.mxu0 0
    %967 = vmatprep.subr.bf16.mxu0 0
    %968 = vmatpush2.bf16.msra.mxu0 0
    %969 = vmatprep.subr.bf16.mxu0 0
    %970 = vmatpush2.bf16.msra.mxu0 0
    %971 = vmatprep.subr.bf16.mxu0 0
    %972 = vmatpush2.bf16.msra.mxu0 0
    %973 = vmatprep.subr.bf16.mxu0 0
    %974 = vmatpush2.bf16.msra.mxu0 0
    %975 = vmatprep.mubr.bf16.mxu0 0
    %976 = vmatmul.mubr.bf16.gmra.mxu0 %v941
    %v977 = vpop.f32.mrf.mxu0
    %v978 = vadd.f32 0.0, %v977
    %v979 = vpop.f32.mrf.mxu0
    %v980 = vpop.f32.mrf.mxu0
    %v981 = vpop.f32.mrf.mxu0
    %982 = vdwg.mxu0
    %v983 = vld [vmem:[%s321] sm:$0x3]
    %v984 = vadd.f32 %v983, %v931
    %v985 = vxor.u32 %v984, 2147483648
    %v986 = vmul.f32 %v985, 1.442695
    %v987 = vpow.pop %v986
    %v988 = vadd.f32 %v987, 1.0
    %v989 = vrcp.pop %v988
    %v990 = vmul.f32 1.0, %v989
    %v991 = vtanh.pop %v984
    %v992 = vmul.f32 %v990, %v886
    %994 = vrot.lane.b32.xlu0 %v991, 64
    %v995 = vpop.permute.xlu0 %994
    %v997 = vmul.f32 %v990, %v995
    %999 = vrot.lane.b32.xlu0 %v997, 32
    %v1000 = vpop.permute.xlu0 %999
    %v1002 = vadd.f32 %v992, %v1000
    %v1003 = vtanh.pop %v1002
    %1005 = vrot.lane.b32.xlu0 %v1003, 64
    %v1006 = vpop.permute.xlu0 %1005
    %v1008 = vmul.f32 %v990, %v1006
    %v1009 = vld [vmem:[%s327] sm:$0x3]
    %v1010 = vadd.f32 %v1009, %v978
    %v1011 = vxor.u32 %v1010, 2147483648
    %v1012 = vmul.f32 %v1011, 1.442695
    %v1013 = vpow.pop %v1012
    %v1014 = vadd.f32 %v1013, 1.0
    %v1015 = vrcp.pop %v1014
    %v1016 = vmul.f32 1.0, %v1015
    %v1017 = vtanh.pop %v1010
    %v1018 = vmul.f32 %v1016, %v888
    %1020 = vrot.lane.b32.xlu0 %v1017, 64
    %v1021 = vpop.permute.xlu0 %1020
    %v1023 = vmul.f32 %v1016, %v1021
    %1025 = vrot.lane.b32.xlu0 %v1023, 32
    %v1026 = vpop.permute.xlu0 %1025
    %v1028 = vadd.f32 %v1018, %v1026
    %v1029 = vtanh.pop %v1028
    %1031 = vrot.lane.b32.xlu0 %v1029, 64
    %v1032 = vpop.permute.xlu0 %1031
    %v1034 = vmul.f32 %v1016, %v1032
    %vm1035 = vcmp.gt.s32.totalorder %v341, 3
    %vm1036 = vcmp.gt.s32.totalorder %v341, 4
    %v1037 = vsel %vm1035, 1, 0
    %1038 = vset.pattern.permute.xlu0 0
    %1039 = vperm.xlu0 %1038, %v1037
    %v1040 = vpop.permute.xlu0 %1039
    %vm1041 = vcmp.eq.s32.totalorder %v1040, 1
    %v1042 = vsel %vm1041, %v1008, 0.0
    %1044 = vrot.lane.b32.xlu0 %v1042, 32
    %v1045 = vpop.permute.xlu0 %1044
    %s1047 = scalar_lea.vmem [#allocation4], 6
    %1048 = vst.msk [vmem:[%s1047] sm:$0x3] %vm521, %v1045
    %v1049 = vsel %vm1036, 1, 0
    %1050 = vset.pattern.permute.xlu0 0
    %1051 = vperm.xlu0 %1050, %v1049
    %v1052 = vpop.permute.xlu0 %1051
    %vm1053 = vcmp.eq.s32.totalorder %v1052, 1
    %v1054 = vsel %vm1053, %v1034, 0.0
    %1056 = vrot.lane.b32.xlu0 %v1054, 32
    %v1057 = vpop.permute.xlu0 %1056
    %s1059 = scalar_lea.vmem [#allocation5], 8
    %1060 = vst.msk [vmem:[%s1059] sm:$0x3] %vm521, %v1057
    %v1061 = vsel %vm1041, %v1008, %v885
    %v1062 = vsel %vm1041, %v1002, %v886
    %v1063 = vsel %vm1053, %v1034, %v887
    %v1064 = vsel %vm1053, %v1028, %v888
    %v1065 = vpack.c.bf16 %v1061, %v1061
    %1067 = vrot.lane.b32.xlu0 %v1065, 32
    %v1068 = vpop.permute.xlu0 %1067
    %v1070 = vsel %vm181, %v1068, 0
    %1072 = vmatprep.subr.bf16.mxu0 0
    %1073 = vmatpush1.bf16.msra.mxu0 0
    %1074 = vmatprep.subr.bf16.mxu0 0
    %1075 = vmatpush1.bf16.msra.mxu0 0
    %1076 = vmatprep.subr.bf16.mxu0 0
    %1077 = vmatpush1.bf16.msra.mxu0 0
    %1078 = vmatprep.subr.bf16.mxu0 0
    %1079 = vmatpush1.bf16.msra.mxu0 0
    %1080 = vmatprep.subr.bf16.mxu0 0
    %1081 = vmatpush1.bf16.msra.mxu0 0
    %1082 = vmatprep.subr.bf16.mxu0 0
    %1083 = vmatpush1.bf16.msra.mxu0 0
    %1084 = vmatprep.subr.bf16.mxu0 0
    %1085 = vmatpush1.bf16.msra.mxu0 %v359
    %1086 = vmatprep.subr.bf16.mxu0 0
    %1087 = vmatpush1.bf16.msra.mxu0 %v358
    %1088 = vmatprep.subr.bf16.mxu0 0
    %1089 = vmatpush2.bf16.msra.mxu0 0
    %1090 = vmatprep.subr.bf16.mxu0 0
    %1091 = vmatpush2.bf16.msra.mxu0 0
    %1092 = vmatprep.subr.bf16.mxu0 0
    %1093 = vmatpush2.bf16.msra.mxu0 0
    %1094 = vmatprep.subr.bf16.mxu0 0
    %1095 = vmatpush2.bf16.msra.mxu0 0
    %1096 = vmatprep.subr.bf16.mxu0 0
    %1097 = vmatpush2.bf16.msra.mxu0 0
    %1098 = vmatprep.subr.bf16.mxu0 0
    %1099 = vmatpush2.bf16.msra.mxu0 0
    %1100 = vmatprep.subr.bf16.mxu0 0
    %1101 = vmatpush2.bf16.msra.mxu0 0
    %1102 = vmatprep.subr.bf16.mxu0 0
    %1103 = vmatpush2.bf16.msra.mxu0 0
    %1104 = vmatprep.mubr.bf16.mxu0 0
    %1105 = vmatmul.mubr.bf16.gmra.mxu0 %v1070
    %v1106 = vpop.f32.mrf.mxu0
    %v1107 = vadd.f32 0.0, %v1106
    %v1108 = vpop.f32.mrf.mxu0
    %v1109 = vpop.f32.mrf.mxu0
    %v1110 = vpop.f32.mrf.mxu0
    %1111 = vdwg.mxu0
    %v1112 = vpack.c.bf16 %v1063, %v1063
    %1114 = vrot.lane.b32.xlu0 %v1112, 32
    %v1115 = vpop.permute.xlu0 %1114
    %v1117 = vsel %vm181, %v1115, 0
    %1119 = vmatprep.subr.bf16.mxu0 0
    %1120 = vmatpush1.bf16.msra.mxu0 0
    %1121 = vmatprep.subr.bf16.mxu0 0
    %1122 = vmatpush1.bf16.msra.mxu0 0
    %1123 = vmatprep.subr.bf16.mxu0 0
    %1124 = vmatpush1.bf16.msra.mxu0 0
    %1125 = vmatprep.subr.bf16.mxu0 0
    %1126 = vmatpush1.bf16.msra.mxu0 0
    %1127 = vmatprep.subr.bf16.mxu0 0
    %1128 = vmatpush1.bf16.msra.mxu0 0
    %1129 = vmatprep.subr.bf16.mxu0 0
    %1130 = vmatpush1.bf16.msra.mxu0 0
    %1131 = vmatprep.subr.bf16.mxu0 0
    %1132 = vmatpush1.bf16.msra.mxu0 %v414
    %1133 = vmatprep.subr.bf16.mxu0 0
    %1134 = vmatpush1.bf16.msra.mxu0 %v413
    %1135 = vmatprep.subr.bf16.mxu0 0
    %1136 = vmatpush2.bf16.msra.mxu0 0
    %1137 = vmatprep.subr.bf16.mxu0 0
    %1138 = vmatpush2.bf16.msra.mxu0 0
    %1139 = vmatprep.subr.bf16.mxu0 0
    %1140 = vmatpush2.bf16.msra.mxu0 0
    %1141 = vmatprep.subr.bf16.mxu0 0
    %1142 = vmatpush2.bf16.msra.mxu0 0
    %1143 = vmatprep.subr.bf16.mxu0 0
    %1144 = vmatpush2.bf16.msra.mxu0 0
    %1145 = vmatprep.subr.bf16.mxu0 0
    %1146 = vmatpush2.bf16.msra.mxu0 0
    %1147 = vmatprep.subr.bf16.mxu0 0
    %1148 = vmatpush2.bf16.msra.mxu0 0
    %1149 = vmatprep.subr.bf16.mxu0 0
    %1150 = vmatpush2.bf16.msra.mxu0 0
    %1151 = vmatprep.mubr.bf16.mxu0 0
    %1152 = vmatmul.mubr.bf16.gmra.mxu0 %v1117
    %v1153 = vpop.f32.mrf.mxu0
    %v1154 = vadd.f32 0.0, %v1153
    %v1155 = vpop.f32.mrf.mxu0
    %v1156 = vpop.f32.mrf.mxu0
    %v1157 = vpop.f32.mrf.mxu0
    %1158 = vdwg.mxu0
    %v1159 = vld [vmem:[%s325] sm:$0x3]
    %v1160 = vadd.f32 %v1159, %v1107
    %v1161 = vxor.u32 %v1160, 2147483648
    %v1162 = vmul.f32 %v1161, 1.442695
    %v1163 = vpow.pop %v1162
    %v1164 = vadd.f32 %v1163, 1.0
    %v1165 = vrcp.pop %v1164
    %v1166 = vmul.f32 1.0, %v1165
    %v1167 = vtanh.pop %v1160
    %v1168 = vmul.f32 %v1166, %v1062
    %1170 = vrot.lane.b32.xlu0 %v1167, 64
    %v1171 = vpop.permute.xlu0 %1170
    %v1173 = vmul.f32 %v1166, %v1171
    %1175 = vrot.lane.b32.xlu0 %v1173, 32
    %v1176 = vpop.permute.xlu0 %1175
    %v1178 = vadd.f32 %v1168, %v1176
    %v1179 = vtanh.pop %v1178
    %1181 = vrot.lane.b32.xlu0 %v1179, 64
    %v1182 = vpop.permute.xlu0 %1181
    %v1184 = vmul.f32 %v1166, %v1182
    %v1185 = vld [vmem:[%s323] sm:$0x3]
    %v1186 = vadd.f32 %v1185, %v1154
    %v1187 = vxor.u32 %v1186, 2147483648
    %v1188 = vmul.f32 %v1187, 1.442695
    %v1189 = vpow.pop %v1188
    %v1190 = vadd.f32 %v1189, 1.0
    %v1191 = vrcp.pop %v1190
    %v1192 = vmul.f32 1.0, %v1191
    %v1193 = vtanh.pop %v1186
    %v1194 = vmul.f32 %v1192, %v1064
    %1196 = vrot.lane.b32.xlu0 %v1193, 64
    %v1197 = vpop.permute.xlu0 %1196
    %v1199 = vmul.f32 %v1192, %v1197
    %1201 = vrot.lane.b32.xlu0 %v1199, 32
    %v1202 = vpop.permute.xlu0 %1201
    %v1204 = vadd.f32 %v1194, %v1202
    %v1205 = vtanh.pop %v1204
    %1207 = vrot.lane.b32.xlu0 %v1205, 64
    %v1208 = vpop.permute.xlu0 %1207
    %v1210 = vmul.f32 %v1192, %v1208
    %v1211 = vsel %vm1053, %v1184, 0.0
    %1213 = vrot.lane.b32.xlu0 %v1211, 32
    %v1214 = vpop.permute.xlu0 %1213
    %s1216 = scalar_lea.vmem [#allocation4], 8
    %1217 = vst.msk [vmem:[%s1216] sm:$0x3] %vm521, %v1214
    %v1218 = vsel %vm1041, %v1210, 0.0
    %1220 = vrot.lane.b32.xlu0 %v1218, 32
    %v1221 = vpop.permute.xlu0 %1220
    %s1223 = scalar_lea.vmem [#allocation5], 6
    %1224 = vst.msk [vmem:[%s1223] sm:$0x3] %vm521, %v1221
    %v1225 = vsel %vm1053, %v1184, %v1061
    %v1226 = vsel %vm1053, %v1178, %v1062
    %v1227 = vsel %vm1041, %v1210, %v1063
    %v1228 = vsel %vm1041, %v1204, %v1064
    %v1229 = vpack.c.bf16 %v1225, %v1225
    %1231 = vrot.lane.b32.xlu0 %v1229, 32
    %v1232 = vpop.permute.xlu0 %1231
    %v1234 = vsel %vm181, %v1232, 0
    %1236 = vmatprep.subr.bf16.mxu0 0
    %1237 = vmatpush1.bf16.msra.mxu0 0
    %1238 = vmatprep.subr.bf16.mxu0 0
    %1239 = vmatpush1.bf16.msra.mxu0 0
    %1240 = vmatprep.subr.bf16.mxu0 0
    %1241 = vmatpush1.bf16.msra.mxu0 0
    %1242 = vmatprep.subr.bf16.mxu0 0
    %1243 = vmatpush1.bf16.msra.mxu0 0
    %1244 = vmatprep.subr.bf16.mxu0 0
    %1245 = vmatpush1.bf16.msra.mxu0 0
    %1246 = vmatprep.subr.bf16.mxu0 0
    %1247 = vmatpush1.bf16.msra.mxu0 0
    %1248 = vmatprep.subr.bf16.mxu0 0
    %1249 = vmatpush1.bf16.msra.mxu0 %v359
    %1250 = vmatprep.subr.bf16.mxu0 0
    %1251 = vmatpush1.bf16.msra.mxu0 %v358
    %1252 = vmatprep.subr.bf16.mxu0 0
    %1253 = vmatpush2.bf16.msra.mxu0 0
    %1254 = vmatprep.subr.bf16.mxu0 0
    %1255 = vmatpush2.bf16.msra.mxu0 0
    %1256 = vmatprep.subr.bf16.mxu0 0
    %1257 = vmatpush2.bf16.msra.mxu0 0
    %1258 = vmatprep.subr.bf16.mxu0 0
    %1259 = vmatpush2.bf16.msra.mxu0 0
    %1260 = vmatprep.subr.bf16.mxu0 0
    %1261 = vmatpush2.bf16.msra.mxu0 0
    %1262 = vmatprep.subr.bf16.mxu0 0
    %1263 = vmatpush2.bf16.msra.mxu0 0
    %1264 = vmatprep.subr.bf16.mxu0 0
    %1265 = vmatpush2.bf16.msra.mxu0 0
    %1266 = vmatprep.subr.bf16.mxu0 0
    %1267 = vmatpush2.bf16.msra.mxu0 0
    %1268 = vmatprep.mubr.bf16.mxu0 0
    %1269 = vmatmul.mubr.bf16.gmra.mxu0 %v1234
    %v1270 = vpop.f32.mrf.mxu0
    %v1271 = vadd.f32 0.0, %v1270
    %v1272 = vpop.f32.mrf.mxu0
    %v1273 = vpop.f32.mrf.mxu0
    %v1274 = vpop.f32.mrf.mxu0
    %1275 = vdwg.mxu0
    %v1276 = vpack.c.bf16 %v1227, %v1227
    %1278 = vrot.lane.b32.xlu0 %v1276, 32
    %v1279 = vpop.permute.xlu0 %1278
    %v1281 = vsel %vm181, %v1279, 0
    %1283 = vmatprep.subr.bf16.mxu0 0
    %1284 = vmatpush1.bf16.msra.mxu0 0
    %1285 = vmatprep.subr.bf16.mxu0 0
    %1286 = vmatpush1.bf16.msra.mxu0 0
    %1287 = vmatprep.subr.bf16.mxu0 0
    %1288 = vmatpush1.bf16.msra.mxu0 0
    %1289 = vmatprep.subr.bf16.mxu0 0
    %1290 = vmatpush1.bf16.msra.mxu0 0
    %1291 = vmatprep.subr.bf16.mxu0 0
    %1292 = vmatpush1.bf16.msra.mxu0 0
    %1293 = vmatprep.subr.bf16.mxu0 0
    %1294 = vmatpush1.bf16.msra.mxu0 0
    %1295 = vmatprep.subr.bf16.mxu0 0
    %1296 = vmatpush1.bf16.msra.mxu0 %v414
    %1297 = vmatprep.subr.bf16.mxu0 0
    %1298 = vmatpush1.bf16.msra.mxu0 %v413
    %1299 = vmatprep.subr.bf16.mxu0 0
    %1300 = vmatpush2.bf16.msra.mxu0 0
    %1301 = vmatprep.subr.bf16.mxu0 0
    %1302 = vmatpush2.bf16.msra.mxu0 0
    %1303 = vmatprep.subr.bf16.mxu0 0
    %1304 = vmatpush2.bf16.msra.mxu0 0
    %1305 = vmatprep.subr.bf16.mxu0 0
    %1306 = vmatpush2.bf16.msra.mxu0 0
    %1307 = vmatprep.subr.bf16.mxu0 0
    %1308 = vmatpush2.bf16.msra.mxu0 0
    %1309 = vmatprep.subr.bf16.mxu0 0
    %1310 = vmatpush2.bf16.msra.mxu0 0
    %1311 = vmatprep.subr.bf16.mxu0 0
    %1312 = vmatpush2.bf16.msra.mxu0 0
    %1313 = vmatprep.subr.bf16.mxu0 0
    %1314 = vmatpush2.bf16.msra.mxu0 0
    %1315 = vmatprep.mubr.bf16.mxu0 0
    %1316 = vmatmul.mubr.bf16.gmra.mxu0 %v1281
    %v1317 = vpop.f32.mrf.mxu0
    %v1318 = vadd.f32 0.0, %v1317
    %v1319 = vpop.f32.mrf.mxu0
    %v1320 = vpop.f32.mrf.mxu0
    %v1321 = vpop.f32.mrf.mxu0
    %1322 = vdwg.mxu0
    %v1323 = vld [vmem:[%s329] sm:$0x3]
    %v1324 = vadd.f32 %v1323, %v1271
    %v1325 = vxor.u32 %v1324, 2147483648
    %v1326 = vmul.f32 %v1325, 1.442695
    %v1327 = vpow.pop %v1326
    %v1328 = vadd.f32 %v1327, 1.0
    %v1329 = vrcp.pop %v1328
    %v1330 = vmul.f32 1.0, %v1329
    %v1331 = vtanh.pop %v1324
    %v1332 = vmul.f32 %v1330, %v1226
    %1334 = vrot.lane.b32.xlu0 %v1331, 64
    %v1335 = vpop.permute.xlu0 %1334
    %v1337 = vmul.f32 %v1330, %v1335
    %1339 = vrot.lane.b32.xlu0 %v1337, 32
    %v1340 = vpop.permute.xlu0 %1339
    %v1342 = vadd.f32 %v1332, %v1340
    %v1343 = vtanh.pop %v1342
    %1345 = vrot.lane.b32.xlu0 %v1343, 64
    %v1346 = vpop.permute.xlu0 %1345
    %v1348 = vmul.f32 %v1330, %v1346
    %v1349 = vld [vmem:[%s319] sm:$0x3]
    %v1350 = vadd.f32 %v1349, %v1318
    %v1351 = vxor.u32 %v1350, 2147483648
    %v1352 = vmul.f32 %v1351, 1.442695
    %v1353 = vpow.pop %v1352
    %v1354 = vadd.f32 %v1353, 1.0
    %v1355 = vrcp.pop %v1354
    %v1356 = vmul.f32 1.0, %v1355
    %v1357 = vtanh.pop %v1350
    %v1358 = vmul.f32 %v1356, %v1228
    %1360 = vrot.lane.b32.xlu0 %v1357, 64
    %v1361 = vpop.permute.xlu0 %1360
    %v1363 = vmul.f32 %v1356, %v1361
    %1365 = vrot.lane.b32.xlu0 %v1363, 32
    %v1366 = vpop.permute.xlu0 %1365
    %v1368 = vadd.f32 %v1358, %v1366
    %v1369 = vtanh.pop %v1368
    %1371 = vrot.lane.b32.xlu0 %v1369, 64
    %v1372 = vpop.permute.xlu0 %1371
    %v1374 = vmul.f32 %v1356, %v1372
    %v1375 = vsel %vm877, %v1348, 0.0
    %1377 = vrot.lane.b32.xlu0 %v1375, 32
    %v1378 = vpop.permute.xlu0 %1377
    %s1380 = scalar_lea.vmem [#allocation4], 10
    %1381 = vst.msk [vmem:[%s1380] sm:$0x3] %vm521, %v1378
    %v1382 = vsel %vm865, %v1374, 0.0
    %1384 = vrot.lane.b32.xlu0 %v1382, 32
    %v1385 = vpop.permute.xlu0 %1384
    %s1387 = scalar_lea.vmem [#allocation5], 4
    %1388 = vst.msk [vmem:[%s1387] sm:$0x3] %vm521, %v1385
    %v1389 = vsel %vm877, %v1348, %v1225
    %v1390 = vsel %vm877, %v1342, %v1226
    %v1391 = vsel %vm865, %v1374, %v1227
    %v1392 = vsel %vm865, %v1368, %v1228
    %v1393 = vpack.c.bf16 %v1389, %v1389
    %1395 = vrot.lane.b32.xlu0 %v1393, 32
    %v1396 = vpop.permute.xlu0 %1395
    %v1398 = vsel %vm181, %v1396, 0
    %1400 = vmatprep.subr.bf16.mxu0 0
    %1401 = vmatpush1.bf16.msra.mxu0 0
    %1402 = vmatprep.subr.bf16.mxu0 0
    %1403 = vmatpush1.bf16.msra.mxu0 0
    %1404 = vmatprep.subr.bf16.mxu0 0
    %1405 = vmatpush1.bf16.msra.mxu0 0
    %1406 = vmatprep.subr.bf16.mxu0 0
    %1407 = vmatpush1.bf16.msra.mxu0 0
    %1408 = vmatprep.subr.bf16.mxu0 0
    %1409 = vmatpush1.bf16.msra.mxu0 0
    %1410 = vmatprep.subr.bf16.mxu0 0
    %1411 = vmatpush1.bf16.msra.mxu0 0
    %1412 = vmatprep.subr.bf16.mxu0 0
    %1413 = vmatpush1.bf16.msra.mxu0 %v359
    %1414 = vmatprep.subr.bf16.mxu0 0
    %1415 = vmatpush1.bf16.msra.mxu0 %v358
    %1416 = vmatprep.subr.bf16.mxu0 0
    %1417 = vmatpush2.bf16.msra.mxu0 0
    %1418 = vmatprep.subr.bf16.mxu0 0
    %1419 = vmatpush2.bf16.msra.mxu0 0
    %1420 = vmatprep.subr.bf16.mxu0 0
    %1421 = vmatpush2.bf16.msra.mxu0 0
    %1422 = vmatprep.subr.bf16.mxu0 0
    %1423 = vmatpush2.bf16.msra.mxu0 0
    %1424 = vmatprep.subr.bf16.mxu0 0
    %1425 = vmatpush2.bf16.msra.mxu0 0
    %1426 = vmatprep.subr.bf16.mxu0 0
    %1427 = vmatpush2.bf16.msra.mxu0 0
    %1428 = vmatprep.subr.bf16.mxu0 0
    %1429 = vmatpush2.bf16.msra.mxu0 0
    %1430 = vmatprep.subr.bf16.mxu0 0
    %1431 = vmatpush2.bf16.msra.mxu0 0
    %1432 = vmatprep.mubr.bf16.mxu0 0
    %1433 = vmatmul.mubr.bf16.gmra.mxu0 %v1398
    %v1434 = vpop.f32.mrf.mxu0
    %v1435 = vadd.f32 0.0, %v1434
    %v1436 = vpop.f32.mrf.mxu0
    %v1437 = vpop.f32.mrf.mxu0
    %v1438 = vpop.f32.mrf.mxu0
    %1439 = vdwg.mxu0
    %v1440 = vpack.c.bf16 %v1391, %v1391
    %1442 = vrot.lane.b32.xlu0 %v1440, 32
    %v1443 = vpop.permute.xlu0 %1442
    %v1445 = vsel %vm181, %v1443, 0
    %1447 = vmatprep.subr.bf16.mxu0 0
    %1448 = vmatpush1.bf16.msra.mxu0 0
    %1449 = vmatprep.subr.bf16.mxu0 0
    %1450 = vmatpush1.bf16.msra.mxu0 0
    %1451 = vmatprep.subr.bf16.mxu0 0
    %1452 = vmatpush1.bf16.msra.mxu0 0
    %1453 = vmatprep.subr.bf16.mxu0 0
    %1454 = vmatpush1.bf16.msra.mxu0 0
    %1455 = vmatprep.subr.bf16.mxu0 0
    %1456 = vmatpush1.bf16.msra.mxu0 0
    %1457 = vmatprep.subr.bf16.mxu0 0
    %1458 = vmatpush1.bf16.msra.mxu0 0
    %1459 = vmatprep.subr.bf16.mxu0 0
    %1460 = vmatpush1.bf16.msra.mxu0 %v414
    %1461 = vmatprep.subr.bf16.mxu0 0
    %1462 = vmatpush1.bf16.msra.mxu0 %v413
    %1463 = vmatprep.subr.bf16.mxu0 0
    %1464 = vmatpush2.bf16.msra.mxu0 0
    %1465 = vmatprep.subr.bf16.mxu0 0
    %1466 = vmatpush2.bf16.msra.mxu0 0
    %1467 = vmatprep.subr.bf16.mxu0 0
    %1468 = vmatpush2.bf16.msra.mxu0 0
    %1469 = vmatprep.subr.bf16.mxu0 0
    %1470 = vmatpush2.bf16.msra.mxu0 0
    %1471 = vmatprep.subr.bf16.mxu0 0
    %1472 = vmatpush2.bf16.msra.mxu0 0
    %1473 = vmatprep.subr.bf16.mxu0 0
    %1474 = vmatpush2.bf16.msra.mxu0 0
    %1475 = vmatprep.subr.bf16.mxu0 0
    %1476 = vmatpush2.bf16.msra.mxu0 0
    %1477 = vmatprep.subr.bf16.mxu0 0
    %1478 = vmatpush2.bf16.msra.mxu0 0
    %1479 = vmatprep.mubr.bf16.mxu0 0
    %1480 = vmatmul.mubr.bf16.gmra.mxu0 %v1445
    %v1481 = vpop.f32.mrf.mxu0
    %v1482 = vadd.f32 0.0, %v1481
    %v1483 = vpop.f32.mrf.mxu0
    %v1484 = vpop.f32.mrf.mxu0
    %v1485 = vpop.f32.mrf.mxu0
    %1486 = vdwg.mxu0
    %v1487 = vld [vmem:[%s333] sm:$0x3]
    %v1488 = vadd.f32 %v1487, %v1435
    %v1489 = vxor.u32 %v1488, 2147483648
    %v1490 = vmul.f32 %v1489, 1.442695
    %v1491 = vpow.pop %v1490
    %v1492 = vadd.f32 %v1491, 1.0
    %v1493 = vrcp.pop %v1492
    %v1494 = vmul.f32 1.0, %v1493
    %v1495 = vtanh.pop %v1488
    %v1496 = vmul.f32 %v1494, %v1390
    %1498 = vrot.lane.b32.xlu0 %v1495, 64
    %v1499 = vpop.permute.xlu0 %1498
    %v1501 = vmul.f32 %v1494, %v1499
    %1503 = vrot.lane.b32.xlu0 %v1501, 32
    %v1504 = vpop.permute.xlu0 %1503
    %v1506 = vadd.f32 %v1496, %v1504
    %v1507 = vtanh.pop %v1506
    %1509 = vrot.lane.b32.xlu0 %v1507, 64
    %v1510 = vpop.permute.xlu0 %1509
    %v1512 = vmul.f32 %v1494, %v1510
    %v1513 = vld [vmem:[%s315] sm:$0x3]
    %v1514 = vadd.f32 %v1513, %v1482
    %v1515 = vxor.u32 %v1514, 2147483648
    %v1516 = vmul.f32 %v1515, 1.442695
    %v1517 = vpow.pop %v1516
    %v1518 = vadd.f32 %v1517, 1.0
    %v1519 = vrcp.pop %v1518
    %v1520 = vmul.f32 1.0, %v1519
    %v1521 = vtanh.pop %v1514
    %v1522 = vmul.f32 %v1520, %v1392
    %1524 = vrot.lane.b32.xlu0 %v1521, 64
    %v1525 = vpop.permute.xlu0 %1524
    %v1527 = vmul.f32 %v1520, %v1525
    %1529 = vrot.lane.b32.xlu0 %v1527, 32
    %v1530 = vpop.permute.xlu0 %1529
    %v1532 = vadd.f32 %v1522, %v1530
    %v1533 = vtanh.pop %v1532
    %1535 = vrot.lane.b32.xlu0 %v1533, 64
    %v1536 = vpop.permute.xlu0 %1535
    %v1538 = vmul.f32 %v1520, %v1536
    %v1539 = vsel %vm701, %v1512, 0.0
    %1541 = vrot.lane.b32.xlu0 %v1539, 32
    %v1542 = vpop.permute.xlu0 %1541
    %s1544 = scalar_lea.vmem [#allocation4], 12
    %1545 = vst.msk [vmem:[%s1544] sm:$0x3] %vm521, %v1542
    %v1546 = vsel %vm689, %v1538, 0.0
    %1548 = vrot.lane.b32.xlu0 %v1546, 32
    %v1549 = vpop.permute.xlu0 %1548
    %s1551 = scalar_lea.vmem [#allocation5], 2
    %1552 = vst.msk [vmem:[%s1551] sm:$0x3] %vm521, %v1549
    %v1553 = vsel %vm701, %v1512, %v1389
    %v1554 = vsel %vm701, %v1506, %v1390
    %v1555 = vsel %vm689, %v1538, %v1391
    %v1556 = vsel %vm689, %v1532, %v1392
    %v1557 = vpack.c.bf16 %v1553, %v1553
    %1559 = vrot.lane.b32.xlu0 %v1557, 32
    %v1560 = vpop.permute.xlu0 %1559
    %v1562 = vsel %vm181, %v1560, 0
    %1564 = vmatprep.subr.bf16.mxu0 0
    %1565 = vmatpush1.bf16.msra.mxu0 0
    %1566 = vmatprep.subr.bf16.mxu0 0
    %1567 = vmatpush1.bf16.msra.mxu0 0
    %1568 = vmatprep.subr.bf16.mxu0 0
    %1569 = vmatpush1.bf16.msra.mxu0 0
    %1570 = vmatprep.subr.bf16.mxu0 0
    %1571 = vmatpush1.bf16.msra.mxu0 0
    %1572 = vmatprep.subr.bf16.mxu0 0
    %1573 = vmatpush1.bf16.msra.mxu0 0
    %1574 = vmatprep.subr.bf16.mxu0 0
    %1575 = vmatpush1.bf16.msra.mxu0 0
    %1576 = vmatprep.subr.bf16.mxu0 0
    %1577 = vmatpush1.bf16.msra.mxu0 %v359
    %1578 = vmatprep.subr.bf16.mxu0 0
    %1579 = vmatpush1.bf16.msra.mxu0 %v358
    %1580 = vmatprep.subr.bf16.mxu0 0
    %1581 = vmatpush2.bf16.msra.mxu0 0
    %1582 = vmatprep.subr.bf16.mxu0 0
    %1583 = vmatpush2.bf16.msra.mxu0 0
    %1584 = vmatprep.subr.bf16.mxu0 0
    %1585 = vmatpush2.bf16.msra.mxu0 0
    %1586 = vmatprep.subr.bf16.mxu0 0
    %1587 = vmatpush2.bf16.msra.mxu0 0
    %1588 = vmatprep.subr.bf16.mxu0 0
    %1589 = vmatpush2.bf16.msra.mxu0 0
    %1590 = vmatprep.subr.bf16.mxu0 0
    %1591 = vmatpush2.bf16.msra.mxu0 0
    %1592 = vmatprep.subr.bf16.mxu0 0
    %1593 = vmatpush2.bf16.msra.mxu0 0
    %1594 = vmatprep.subr.bf16.mxu0 0
    %1595 = vmatpush2.bf16.msra.mxu0 0
    %1596 = vmatprep.mubr.bf16.mxu0 0
    %1597 = vmatmul.mubr.bf16.gmra.mxu0 %v1562
    %v1598 = vpop.f32.mrf.mxu0
    %v1599 = vadd.f32 0.0, %v1598
    %v1600 = vpop.f32.mrf.mxu0
    %v1601 = vpop.f32.mrf.mxu0
    %v1602 = vpop.f32.mrf.mxu0
    %1603 = vdwg.mxu0
    %v1604 = vpack.c.bf16 %v1555, %v1555
    %1606 = vrot.lane.b32.xlu0 %v1604, 32
    %v1607 = vpop.permute.xlu0 %1606
    %v1609 = vsel %vm181, %v1607, 0
    %1611 = vmatprep.subr.bf16.mxu0 0
    %1612 = vmatpush1.bf16.msra.mxu0 0
    %1613 = vmatprep.subr.bf16.mxu0 0
    %1614 = vmatpush1.bf16.msra.mxu0 0
    %1615 = vmatprep.subr.bf16.mxu0 0
    %1616 = vmatpush1.bf16.msra.mxu0 0
    %1617 = vmatprep.subr.bf16.mxu0 0
    %1618 = vmatpush1.bf16.msra.mxu0 0
    %1619 = vmatprep.subr.bf16.mxu0 0
    %1620 = vmatpush1.bf16.msra.mxu0 0
    %1621 = vmatprep.subr.bf16.mxu0 0
    %1622 = vmatpush1.bf16.msra.mxu0 0
    %1623 = vmatprep.subr.bf16.mxu0 0
    %1624 = vmatpush1.bf16.msra.mxu0 %v414
    %1625 = vmatprep.subr.bf16.mxu0 0
    %1626 = vmatpush1.bf16.msra.mxu0 %v413
    %1627 = vmatprep.subr.bf16.mxu0 0
    %1628 = vmatpush2.bf16.msra.mxu0 0
    %1629 = vmatprep.subr.bf16.mxu0 0
    %1630 = vmatpush2.bf16.msra.mxu0 0
    %1631 = vmatprep.subr.bf16.mxu0 0
    %1632 = vmatpush2.bf16.msra.mxu0 0
    %1633 = vmatprep.subr.bf16.mxu0 0
    %1634 = vmatpush2.bf16.msra.mxu0 0
    %1635 = vmatprep.subr.bf16.mxu0 0
    %1636 = vmatpush2.bf16.msra.mxu0 0
    %1637 = vmatprep.subr.bf16.mxu0 0
    %1638 = vmatpush2.bf16.msra.mxu0 0
    %1639 = vmatprep.subr.bf16.mxu0 0
    %1640 = vmatpush2.bf16.msra.mxu0 0
    %1641 = vmatprep.subr.bf16.mxu0 0
    %1642 = vmatpush2.bf16.msra.mxu0 0
    %1643 = vmatprep.mubr.bf16.mxu0 0
    %1644 = vmatmul.mubr.bf16.gmra.mxu0 %v1609
    %v1645 = vpop.f32.mrf.mxu0
    %v1646 = vadd.f32 0.0, %v1645
    %v1647 = vpop.f32.mrf.mxu0
    %v1648 = vpop.f32.mrf.mxu0
    %v1649 = vpop.f32.mrf.mxu0
    %1650 = vdwg.mxu0
    %v1651 = vld [vmem:[%s337] sm:$0x3]
    %v1652 = vadd.f32 %v1651, %v1599
    %v1653 = vxor.u32 %v1652, 2147483648
    %v1654 = vmul.f32 %v1653, 1.442695
    %v1655 = vpow.pop %v1654
    %v1656 = vadd.f32 %v1655, 1.0
    %v1657 = vrcp.pop %v1656
    %v1658 = vmul.f32 1.0, %v1657
    %v1659 = vtanh.pop %v1652
    %v1660 = vmul.f32 %v1658, %v1554
    %1662 = vrot.lane.b32.xlu0 %v1659, 64
    %v1663 = vpop.permute.xlu0 %1662
    %v1665 = vmul.f32 %v1658, %v1663
    %1667 = vrot.lane.b32.xlu0 %v1665, 32
    %v1668 = vpop.permute.xlu0 %1667
    %v1670 = vadd.f32 %v1660, %v1668
    %v1671 = vtanh.pop %v1670
    %1673 = vrot.lane.b32.xlu0 %v1671, 64
    %v1674 = vpop.permute.xlu0 %1673
    %v1676 = vmul.f32 %v1658, %v1674
    %v1677 = vld [vmem:[#allocation3] sm:$0x3]
    %v1678 = vadd.f32 %v1677, %v1646
    %v1679 = vxor.u32 %v1678, 2147483648
    %v1680 = vmul.f32 %v1679, 1.442695
    %v1681 = vpow.pop %v1680
    %v1682 = vadd.f32 %v1681, 1.0
    %v1683 = vrcp.pop %v1682
    %v1684 = vmul.f32 1.0, %v1683
    %v1685 = vtanh.pop %v1678
    %v1686 = vmul.f32 %v1684, %v1556
    %1688 = vrot.lane.b32.xlu0 %v1685, 64
    %v1689 = vpop.permute.xlu0 %1688
    %v1691 = vmul.f32 %v1684, %v1689
    %1693 = vrot.lane.b32.xlu0 %v1691, 32
    %v1694 = vpop.permute.xlu0 %1693
    %v1696 = vadd.f32 %v1686, %v1694
    %v1697 = vtanh.pop %v1696
    %1699 = vrot.lane.b32.xlu0 %v1697, 64
    %v1700 = vpop.permute.xlu0 %1699
    %v1702 = vmul.f32 %v1684, %v1700
    %v1703 = vsel %vm527, %v1676, 0.0
    %1705 = vrot.lane.b32.xlu0 %v1703, 32
    %v1706 = vpop.permute.xlu0 %1705
    %s1708 = scalar_lea.vmem [#allocation4], 14
    %1709 = vst.msk [vmem:[%s1708] sm:$0x3] %vm521, %v1706
    %v1710 = vsel %vm515, %v1702, 0.0
    %1712 = vrot.lane.b32.xlu0 %v1710, 32
    %v1713 = vpop.permute.xlu0 %1712
    %1715 = vst.msk [vmem:[#allocation5] sm:$0x3] %vm521, %v1713
    %v1716 = vld [vmem:[#allocation4] sm:$0x3]
    %v1717 = vld [vmem:[#allocation4 + $0x2] sm:$0x3]
    %v1718 = vld [vmem:[#allocation4 + $0x4] sm:$0x3]
    %v1719 = vld [vmem:[#allocation4 + $0x6] sm:$0x3]
    %v1720 = vld [vmem:[#allocation4 + $0x8] sm:$0x3]
    %v1721 = vld [vmem:[#allocation4 + $0xa] sm:$0x3]
    %v1722 = vld [vmem:[#allocation4 + $0xc] sm:$0x3]
    %v1723 = vld [vmem:[#allocation4 + $0xe] sm:$0x3]
    %v1724 = vld [vmem:[#allocation5] sm:$0x3]
    %v1725 = vld [vmem:[#allocation5 + $0x2] sm:$0x3]
    %v1726 = vld [vmem:[#allocation5 + $0x4] sm:$0x3]
    %v1727 = vld [vmem:[#allocation5 + $0x6] sm:$0x3]
    %v1728 = vld [vmem:[#allocation5 + $0x8] sm:$0x3]
    %v1729 = vld [vmem:[#allocation5 + $0xa] sm:$0x3]
    %v1730 = vld [vmem:[#allocation5 + $0xc] sm:$0x3]
    %v1731 = vld [vmem:[#allocation5 + $0xe] sm:$0x3]
    %v1732 = vld [vmem:[%s10] sm:$0xf]
    %v1733 = vld [vmem:[%s10 + $0x4] sm:$0xf]
    %v1734 = vld [vmem:[%s10 + $0x8] sm:$0xf]
    %v1735 = vld [vmem:[%s10 + $0xc] sm:$0xf]
    %v1736 = vld [vmem:[%s10 + $0x10] sm:$0xf]
    %v1737 = vld [vmem:[%s10 + $0x14] sm:$0xf]
    %v1738 = vld [vmem:[%s10 + $0x18] sm:$0xf]
    %v1739 = vld [vmem:[%s10 + $0x1c] sm:$0xf]
    %v1740 = vld [vmem:[#allocation12] sm:$0x1]
    %v1749 = vrot.slane %v1717, 7
    %vm1750 = vcmask 1041409
    %v1751 = vsel %vm1750, %v1749, %v1716
    %v1752 = vrot.slane %v1718, 6
    %vm1753 = vcmask 1042434
    %v1754 = vsel %vm1753, %v1752, %v1751
    %v1755 = vrot.slane %v1719, 5
    %vm1756 = vcmask 1043459
    %v1757 = vsel %vm1756, %v1755, %v1754
    %v1758 = vrot.slane %v1720, 4
    %vm1759 = vcmask 1044484
    %v1760 = vsel %vm1759, %v1758, %v1757
    %v1761 = vrot.slane %v1721, 3
    %vm1762 = vcmask 1045509
    %v1763 = vsel %vm1762, %v1761, %v1760
    %v1764 = vrot.slane %v1722, 2
    %vm1765 = vcmask 1046534
    %v1766 = vsel %vm1765, %v1764, %v1763
    %v1767 = vrot.slane %v1723, 1
    %vm1768 = vcmask 1047559
    %v1769 = vsel %vm1768, %v1767, %v1766
    %v1779 = vrot.slane %v1725, 7
    %v1780 = vsel %vm1750, %v1779, %v1724
    %v1781 = vrot.slane %v1726, 6
    %v1782 = vsel %vm1753, %v1781, %v1780
    %v1783 = vrot.slane %v1727, 5
    %v1784 = vsel %vm1756, %v1783, %v1782
    %v1785 = vrot.slane %v1728, 4
    %v1786 = vsel %vm1759, %v1785, %v1784
    %v1787 = vrot.slane %v1729, 3
    %v1788 = vsel %vm1762, %v1787, %v1786
    %v1789 = vrot.slane %v1730, 2
    %v1790 = vsel %vm1765, %v1789, %v1788
    %v1791 = vrot.slane %v1731, 1
    %v1792 = vsel %vm1768, %v1791, %v1790
    %1793 = vrot.lane.b32.xlu0 %v1792, 32
    %v1794 = vpop.permute.xlu0 %1793
    %v1796 = vsel %vm181, %v1769, %v1794
    %v1797 = vpack.c.bf16 %v1796, %v1796
    %vm1798 = vcmask 523264
    %v1800 = vsel %vm1798, %v1797, 0
    %1802 = vmatprep.subr.bf16.mxu0 0
    %1803 = vmatpush1.bf16.xpose.msra.mxu0 0
    %1804 = vmatprep.subr.bf16.mxu0 0
    %1805 = vmatpush1.bf16.xpose.msra.mxu0 0
    %1806 = vmatprep.subr.bf16.mxu0 0
    %1807 = vmatpush1.bf16.xpose.msra.mxu0 0
    %1808 = vmatprep.subr.bf16.mxu0 0
    %1809 = vmatpush1.bf16.xpose.msra.mxu0 0
    %1810 = vmatprep.subr.bf16.mxu0 0
    %1811 = vmatpush1.bf16.xpose.msra.mxu0 0
    %1812 = vmatprep.subr.bf16.mxu0 0
    %1813 = vmatpush1.bf16.xpose.msra.mxu0 0
    %1814 = vmatprep.subr.bf16.mxu0 0
    %1815 = vmatpush1.bf16.xpose.msra.mxu0 0
    %1816 = vmatprep.subr.bf16.mxu0 0
    %1817 = vmatpush1.bf16.xpose.msra.mxu0 %v1800
    %1818 = vmatprep.subr.bf16.mxu0 0
    %1819 = vmatpush2.bf16.xpose.msra.mxu0 0
    %1820 = vmatprep.subr.bf16.mxu0 0
    %1821 = vmatpush2.bf16.xpose.msra.mxu0 0
    %1822 = vmatprep.subr.bf16.mxu0 0
    %1823 = vmatpush2.bf16.xpose.msra.mxu0 0
    %1824 = vmatprep.subr.bf16.mxu0 0
    %1825 = vmatpush2.bf16.xpose.msra.mxu0 0
    %1826 = vmatprep.subr.bf16.mxu0 0
    %1827 = vmatpush2.bf16.xpose.msra.mxu0 0
    %1828 = vmatprep.subr.bf16.mxu0 0
    %1829 = vmatpush2.bf16.xpose.msra.mxu0 0
    %1830 = vmatprep.subr.bf16.mxu0 0
    %1831 = vmatpush2.bf16.xpose.msra.mxu0 0
    %1832 = vmatprep.subr.bf16.mxu0 0
    %1833 = vmatpush2.bf16.xpose.msra.mxu0 0
    %1834 = vmatprep.mubr.bf16.mxu0 0
    %1835 = vmatmul.mubr.bf16.gmra.mxu0 %v1800
    %v1836 = vpop.f32.mrf.mxu0
    %v1837 = vadd.f32 0.0, %v1836
    %v1838 = vpop.f32.mrf.mxu0
    %v1839 = vpop.f32.mrf.mxu0
    %v1840 = vpop.f32.mrf.mxu0
    %1841 = vdwg.mxu0
    %v1842 = vmul.f32 %v1837, 0.125
    %vm1843 = vcmask 64512
    %v1844 = vsel %vm1843, %v1842, -inf
    %1845 = vmax.xlane.f32.xlu0 %v1844
    %v1846 = vpop.xlane.xlu0 %1845
    %v1847 = vsub.f32 %v1842, %v1846
    %v1848 = vmul.f32 %v1847, 1.442695
    %v1849 = vpow.pop %v1848
    %v1850 = vsel %vm1843, %v1849, 0.0
    %1851 = vadd.xlane.f32.xlu0 %v1850
    %v1852 = vpop.xlane.xlu0 %1851
    %v1853 = vrcp.pop %v1852
    %v1854 = vmul.f32 %v1849, %v1853
    %v1855 = vpack.c.bf16 %v1854, %v1854
    %v1857 = vsel %vm1843, %v1855, 0
    %vm1859 = vcmask 1043456
    %v1860 = vsel %vm1859, %v1797, 0
    %1862 = vmatprep.subr.bf16.mxu0 0
    %1863 = vmatpush1.bf16.msra.mxu0 0
    %1864 = vmatprep.subr.bf16.mxu0 0
    %1865 = vmatpush1.bf16.msra.mxu0 0
    %1866 = vmatprep.subr.bf16.mxu0 0
    %1867 = vmatpush1.bf16.msra.mxu0 0
    %1868 = vmatprep.subr.bf16.mxu0 0
    %1869 = vmatpush1.bf16.msra.mxu0 0
    %1870 = vmatprep.subr.bf16.mxu0 0
    %1871 = vmatpush1.bf16.msra.mxu0 0
    %1872 = vmatprep.subr.bf16.mxu0 0
    %1873 = vmatpush1.bf16.msra.mxu0 0
    %1874 = vmatprep.subr.bf16.mxu0 0
    %1875 = vmatpush1.bf16.msra.mxu0 0
    %1876 = vmatprep.subr.bf16.mxu0 0
    %1877 = vmatpush1.bf16.msra.mxu0 %v1860
    %1878 = vmatprep.subr.bf16.mxu0 0
    %1879 = vmatpush2.bf16.msra.mxu0 0
    %1880 = vmatprep.subr.bf16.mxu0 0
    %1881 = vmatpush2.bf16.msra.mxu0 0
    %1882 = vmatprep.subr.bf16.mxu0 0
    %1883 = vmatpush2.bf16.msra.mxu0 0
    %1884 = vmatprep.subr.bf16.mxu0 0
    %1885 = vmatpush2.bf16.msra.mxu0 0
    %1886 = vmatprep.subr.bf16.mxu0 0
    %1887 = vmatpush2.bf16.msra.mxu0 0
    %1888 = vmatprep.subr.bf16.mxu0 0
    %1889 = vmatpush2.bf16.msra.mxu0 0
    %1890 = vmatprep.subr.bf16.mxu0 0
    %1891 = vmatpush2.bf16.msra.mxu0 0
    %1892 = vmatprep.subr.bf16.mxu0 0
    %1893 = vmatpush2.bf16.msra.mxu0 0
    %1894 = vmatprep.mubr.bf16.mxu0 0
    %1895 = vmatmul.mubr.bf16.gmra.mxu0 %v1857
    %v1896 = vpop.f32.mrf.mxu0
    %v1897 = vadd.f32 0.0, %v1896
    %v1898 = vpop.f32.mrf.mxu0
    %v1899 = vpop.f32.mrf.mxu0
    %v1900 = vpop.f32.mrf.mxu0
    %1901 = vdwg.mxu0
    %v1902 = vpack.c.bf16 %v1897, %v1897
    %v1904 = vlaneseq
    %v1905 = vshrl.u32 %v1904, 7
    %v1906 = vsub.s32 0, %v1905
    %v1907 = vrot.slane %v1740, %v1906
    %v1917 = vunpack.c.l.b16 %v1732
    %v1918 = vunpack.c.l.b16 %v1733
    %v1919 = vunpack.c.l.b16 %v1734
    %v1920 = vunpack.c.l.b16 %v1735
    %v1921 = vunpack.c.l.b16 %v1736
    %v1922 = vunpack.c.l.b16 %v1737
    %v1923 = vunpack.c.l.b16 %v1738
    %v1924 = vunpack.c.l.b16 %v1739
    %v1925 = vpack.c.b16 %v1918, %v1917
    %v1926 = vpack.c.b16 %v1920, %v1919
    %v1927 = vpack.c.b16 %v1922, %v1921
    %v1928 = vpack.c.b16 %v1924, %v1923
    %v1934 = vsel %vm1798, %v1902, 0
    %1936 = vmatprep.subr.bf16.mxu0 0
    %1937 = vmatpush1.bf16.msra.mxu0 0
    %1938 = vmatprep.subr.bf16.mxu0 0
    %1939 = vmatpush1.bf16.msra.mxu0 0
    %1940 = vmatprep.subr.bf16.mxu0 0
    %1941 = vmatpush1.bf16.msra.mxu0 0
    %1942 = vmatprep.subr.bf16.mxu0 0
    %1943 = vmatpush1.bf16.msra.mxu0 0
    %1944 = vmatprep.subr.bf16.mxu0 0
    %1945 = vmatpush1.bf16.msra.mxu0 %v1928
    %1946 = vmatprep.subr.bf16.mxu0 0
    %1947 = vmatpush1.bf16.msra.mxu0 %v1927
    %1948 = vmatprep.subr.bf16.mxu0 0
    %1949 = vmatpush1.bf16.msra.mxu0 %v1926
    %1950 = vmatprep.subr.bf16.mxu0 0
    %1951 = vmatpush1.bf16.msra.mxu0 %v1925
    %1952 = vmatprep.subr.bf16.mxu0 0
    %1953 = vmatpush2.bf16.msra.mxu0 0
    %1954 = vmatprep.subr.bf16.mxu0 0
    %1955 = vmatpush2.bf16.msra.mxu0 0
    %1956 = vmatprep.subr.bf16.mxu0 0
    %1957 = vmatpush2.bf16.msra.mxu0 0
    %1958 = vmatprep.subr.bf16.mxu0 0
    %1959 = vmatpush2.bf16.msra.mxu0 0
    %1960 = vmatprep.subr.bf16.mxu0 0
    %1961 = vmatpush2.bf16.msra.mxu0 0
    %1962 = vmatprep.subr.bf16.mxu0 0
    %1963 = vmatpush2.bf16.msra.mxu0 0
    %1964 = vmatprep.subr.bf16.mxu0 0
    %1965 = vmatpush2.bf16.msra.mxu0 0
    %1966 = vmatprep.subr.bf16.mxu0 0
    %1967 = vmatpush2.bf16.msra.mxu0 0
    %1968 = vmatprep.mubr.bf16.mxu0 0
    %1969 = vmatmul.mubr.bf16.gmra.mxu0 %v1934
    %v1970 = vpop.f32.mrf.mxu0
    %v1971 = vadd.f32 %v1907, %v1970
    %v1972 = vpop.f32.mrf.mxu0
    %v1973 = vpop.f32.mrf.mxu0
    %v1974 = vpop.f32.mrf.mxu0
    %1975 = vdwg.mxu0
    %1976 = vst.msk [vmem:[#allocation14] sm:$0xff] %vm1843, %v1971
    %v1977 = vsel %vm1753, %v1749, %v1716
    %v1978 = vsel %vm1756, %v1752, %v1977
    %v1979 = vsel %vm1759, %v1755, %v1978
    %v1980 = vsel %vm1762, %v1758, %v1979
    %v1981 = vsel %vm1765, %v1761, %v1980
    %v1982 = vsel %vm1768, %v1764, %v1981
    %v1985 = vsel %vm1753, %v1779, %v1724
    %v1986 = vsel %vm1756, %v1781, %v1985
    %v1987 = vsel %vm1759, %v1783, %v1986
    %v1988 = vsel %vm1762, %v1785, %v1987
    %v1989 = vsel %vm1765, %v1787, %v1988
    %v1990 = vsel %vm1768, %v1789, %v1989
    %1991 = vrot.lane.b32.xlu0 %v1990, 32
    %v1992 = vpop.permute.xlu0 %1991
    %1993 = vrot.lane.b32.xlu0 %v1791, 32
    %v1994 = vpop.permute.xlu0 %1993
    %v1997 = vsel %vm181, %v1982, %v1992
    %v1998 = vsel %vm181, %v1767, %v1994
    %v1999 = vpack.c.bf16 %v1998, %v1997
    %v2001 = vshrl.u32 %v1999, 16
    %v2003 = vshll.u32 %v1999, 16
    %v2005 = vrot.slane %v2003, 1
    %v2006 = vor.u32 %v2001, %v2005
    %v2008 = vsel %vm1798, %v2006, 0
    %2010 = vmatprep.subr.bf16.mxu0 0
    %2011 = vmatpush1.bf16.xpose.msra.mxu0 0
    %2012 = vmatprep.subr.bf16.mxu0 0
    %2013 = vmatpush1.bf16.xpose.msra.mxu0 0
    %2014 = vmatprep.subr.bf16.mxu0 0
    %2015 = vmatpush1.bf16.xpose.msra.mxu0 0
    %2016 = vmatprep.subr.bf16.mxu0 0
    %2017 = vmatpush1.bf16.xpose.msra.mxu0 0
    %2018 = vmatprep.subr.bf16.mxu0 0
    %2019 = vmatpush1.bf16.xpose.msra.mxu0 0
    %2020 = vmatprep.subr.bf16.mxu0 0
    %2021 = vmatpush1.bf16.xpose.msra.mxu0 0
    %2022 = vmatprep.subr.bf16.mxu0 0
    %2023 = vmatpush1.bf16.xpose.msra.mxu0 0
    %2024 = vmatprep.subr.bf16.mxu0 0
    %2025 = vmatpush1.bf16.xpose.msra.mxu0 %v2008
    %2026 = vmatprep.subr.bf16.mxu0 0
    %2027 = vmatpush2.bf16.xpose.msra.mxu0 0
    %2028 = vmatprep.subr.bf16.mxu0 0
    %2029 = vmatpush2.bf16.xpose.msra.mxu0 0
    %2030 = vmatprep.subr.bf16.mxu0 0
    %2031 = vmatpush2.bf16.xpose.msra.mxu0 0
    %2032 = vmatprep.subr.bf16.mxu0 0
    %2033 = vmatpush2.bf16.xpose.msra.mxu0 0
    %2034 = vmatprep.subr.bf16.mxu0 0
    %2035 = vmatpush2.bf16.xpose.msra.mxu0 0
    %2036 = vmatprep.subr.bf16.mxu0 0
    %2037 = vmatpush2.bf16.xpose.msra.mxu0 0
    %2038 = vmatprep.subr.bf16.mxu0 0
    %2039 = vmatpush2.bf16.xpose.msra.mxu0 0
    %2040 = vmatprep.subr.bf16.mxu0 0
    %2041 = vmatpush2.bf16.xpose.msra.mxu0 0
    %2042 = vmatprep.mubr.bf16.mxu0 0
    %2043 = vmatmul.mubr.bf16.gmra.mxu0 %v2008
    %v2044 = vpop.f32.mrf.mxu0
    %v2045 = vadd.f32 0.0, %v2044
    %v2046 = vpop.f32.mrf.mxu0
    %v2047 = vpop.f32.mrf.mxu0
    %v2048 = vpop.f32.mrf.mxu0
    %2049 = vdwg.mxu0
    %v2050 = vmul.f32 %v2045, 0.125
    %v2051 = vsel %vm1843, %v2050, -inf
    %2052 = vmax.xlane.f32.xlu0 %v2051
    %v2053 = vpop.xlane.xlu0 %2052
    %v2054 = vsub.f32 %v2050, %v2053
    %v2055 = vmul.f32 %v2054, 1.442695
    %v2056 = vpow.pop %v2055
    %v2057 = vsel %vm1843, %v2056, 0.0
    %2058 = vadd.xlane.f32.xlu0 %v2057
    %v2059 = vpop.xlane.xlu0 %2058
    %v2060 = vrcp.pop %v2059
    %v2061 = vmul.f32 %v2056, %v2060
    %v2062 = vpack.c.bf16 %v2061, %v2061
    %v2064 = vsel %vm1843, %v2062, 0
    %v2066 = vsel %vm1859, %v2006, 0
    %2068 = vmatprep.subr.bf16.mxu0 0
    %2069 = vmatpush1.bf16.msra.mxu0 0
    %2070 = vmatprep.subr.bf16.mxu0 0
    %2071 = vmatpush1.bf16.msra.mxu0 0
    %2072 = vmatprep.subr.bf16.mxu0 0
    %2073 = vmatpush1.bf16.msra.mxu0 0
    %2074 = vmatprep.subr.bf16.mxu0 0
    %2075 = vmatpush1.bf16.msra.mxu0 0
    %2076 = vmatprep.subr.bf16.mxu0 0
    %2077 = vmatpush1.bf16.msra.mxu0 0
    %2078 = vmatprep.subr.bf16.mxu0 0
    %2079 = vmatpush1.bf16.msra.mxu0 0
    %2080 = vmatprep.subr.bf16.mxu0 0
    %2081 = vmatpush1.bf16.msra.mxu0 0
    %2082 = vmatprep.subr.bf16.mxu0 0
    %2083 = vmatpush1.bf16.msra.mxu0 %v2066
    %2084 = vmatprep.subr.bf16.mxu0 0
    %2085 = vmatpush2.bf16.msra.mxu0 0
    %2086 = vmatprep.subr.bf16.mxu0 0
    %2087 = vmatpush2.bf16.msra.mxu0 0
    %2088 = vmatprep.subr.bf16.mxu0 0
    %2089 = vmatpush2.bf16.msra.mxu0 0
    %2090 = vmatprep.subr.bf16.mxu0 0
    %2091 = vmatpush2.bf16.msra.mxu0 0
    %2092 = vmatprep.subr.bf16.mxu0 0
    %2093 = vmatpush2.bf16.msra.mxu0 0
    %2094 = vmatprep.subr.bf16.mxu0 0
    %2095 = vmatpush2.bf16.msra.mxu0 0
    %2096 = vmatprep.subr.bf16.mxu0 0
    %2097 = vmatpush2.bf16.msra.mxu0 0
    %2098 = vmatprep.subr.bf16.mxu0 0
    %2099 = vmatpush2.bf16.msra.mxu0 0
    %2100 = vmatprep.mubr.bf16.mxu0 0
    %2101 = vmatmul.mubr.bf16.gmra.mxu0 %v2064
    %v2102 = vpop.f32.mrf.mxu0
    %v2103 = vadd.f32 0.0, %v2102
    %v2104 = vpop.f32.mrf.mxu0
    %v2105 = vpop.f32.mrf.mxu0
    %v2106 = vpop.f32.mrf.mxu0
    %2107 = vdwg.mxu0
    %v2108 = vpack.c.bf16 %v2103, %v2103
    %v2110 = vsel %vm1798, %v2108, 0
    %2112 = vmatprep.subr.bf16.mxu0 0
    %2113 = vmatpush1.bf16.msra.mxu0 0
    %2114 = vmatprep.subr.bf16.mxu0 0
    %2115 = vmatpush1.bf16.msra.mxu0 0
    %2116 = vmatprep.subr.bf16.mxu0 0
    %2117 = vmatpush1.bf16.msra.mxu0 0
    %2118 = vmatprep.subr.bf16.mxu0 0
    %2119 = vmatpush1.bf16.msra.mxu0 0
    %2120 = vmatprep.subr.bf16.mxu0 0
    %2121 = vmatpush1.bf16.msra.mxu0 %v1928
    %2122 = vmatprep.subr.bf16.mxu0 0
    %2123 = vmatpush1.bf16.msra.mxu0 %v1927
    %2124 = vmatprep.subr.bf16.mxu0 0
    %2125 = vmatpush1.bf16.msra.mxu0 %v1926
    %2126 = vmatprep.subr.bf16.mxu0 0
    %2127 = vmatpush1.bf16.msra.mxu0 %v1925
    %2128 = vmatprep.subr.bf16.mxu0 0
    %2129 = vmatpush2.bf16.msra.mxu0 0
    %2130 = vmatprep.subr.bf16.mxu0 0
    %2131 = vmatpush2.bf16.msra.mxu0 0
    %2132 = vmatprep.subr.bf16.mxu0 0
    %2133 = vmatpush2.bf16.msra.mxu0 0
    %2134 = vmatprep.subr.bf16.mxu0 0
    %2135 = vmatpush2.bf16.msra.mxu0 0
    %2136 = vmatprep.subr.bf16.mxu0 0
    %2137 = vmatpush2.bf16.msra.mxu0 0
    %2138 = vmatprep.subr.bf16.mxu0 0
    %2139 = vmatpush2.bf16.msra.mxu0 0
    %2140 = vmatprep.subr.bf16.mxu0 0
    %2141 = vmatpush2.bf16.msra.mxu0 0
    %2142 = vmatprep.subr.bf16.mxu0 0
    %2143 = vmatpush2.bf16.msra.mxu0 0
    %2144 = vmatprep.mubr.bf16.mxu0 0
    %2145 = vmatmul.mubr.bf16.gmra.mxu0 %v2110
    %v2146 = vpop.f32.mrf.mxu0
    %v2147 = vadd.f32 %v1907, %v2146
    %v2148 = vpop.f32.mrf.mxu0
    %v2149 = vpop.f32.mrf.mxu0
    %v2150 = vpop.f32.mrf.mxu0
    %2151 = vdwg.mxu0
    %s2152 = scalar_lea.vmem [#allocation14], 8
    %2153 = vst.msk [vmem:[%s2152] sm:$0xff] %vm1843, %v2147
    // Predicated region
    $region66: #{dblstm_forward.1} parent=1 // pred_check
      _
    $region67: #{dblstm_forward.1} parent=1 // pred_check_branch
      %2155 = sbr.rel (0) target = $region69
    $region68: #{dblstm_forward.1} parent=1 // pred_region
      %s2157 = ssub.s32 256, 256
      %2158 = vsyncadd [#allocation8], %s2157
      %s2159 = sshll.u32 [#allocation14], 4
      %s2160 = int_to_ptr.vmem [resolvable:$true] %s2159
      %2165 = dma.vmem_to_hbm [thread:$0]  %s2160, 256, %s12, [#allocation8], 128, 128, 8
    $region69: #{dblstm_forward.1} parent=1 // pred_fallthru
      _
    // Predicated region
    $region70: #{dblstm_forward.1} parent=1 // pred_check
      _
    $region71: #{dblstm_forward.1} parent=1 // pred_check_branch
      %2167 = sbr.rel (0) target = $region73
    $region72: #{dblstm_forward.1} parent=1 // pred_region
      %2168 = dma.done [#allocation8], 256
    $region73: #{dblstm_forward.1} parent=1 // pred_fallthru
      _
    %2169 = vsyncpa [#allocation7], 1
    %2170 = vsyncpa [#allocation10], 1
    %2171 = vsyncpa [#allocation13], 1
    %2172 = vsyncpa [#allocation8], 1

</llo_original>
